<compile_context>
chip_gen: v7x
topology: tpu7x:2x2x1
jax: 0.10.0
libtpu: 0.0.40
codegen_flags: <defaults>
</compile_context>

<pallas_src>
import functools

import jax
import jax.numpy as jnp
from jax.experimental import pallas as pl
from jax.experimental.pallas import tpu as pltpu


def _round_up(n, m):
    return ((n + m - 1) // m) * m


def _generative_kernel(
    yz_ref,                       # fused [tb, k_fused] = [ y | z | 0-pad ]
    wy_ref, by_ref,               # fused y-path weight [k_fused, 2*zy_pad] / bias
    w1_ref, b1_ref, w2_ref, b2_ref, w3_ref, b3_ref,
    ypack_out, xrec_out,
    *, zy_pad,
):
    f32 = jnp.float32
    bf16 = jnp.bfloat16

    yz = yz_ref[...].astype(bf16)

    # --- pzy(y): single fused matmul producing [y_mu | y_var_pre] ------------
    fused = jnp.dot(yz, wy_ref[...], preferred_element_type=f32) + by_ref[...]
    # split is at a 128-lane boundary -> both stores are unmasked, and softplus
    # (EUP) only runs over the var half.
    ypack_out[:, :zy_pad] = fused[:, :zy_pad].astype(ypack_out.dtype)
    ypack_out[:, zy_pad:] = jax.nn.softplus(fused[:, zy_pad:]).astype(ypack_out.dtype)

    # --- pxz(z): decoder MLP (bf16 MXU, f32 accumulation + elementwise) ------
    h = jnp.dot(yz, w1_ref[...], preferred_element_type=f32) + b1_ref[...]
    h = jnp.maximum(h, 0.0)                                               # ReLU
    h = jnp.dot(h.astype(bf16), w2_ref[...], preferred_element_type=f32) + b2_ref[...]
    h = jnp.maximum(h, 0.0)                                               # ReLU
    x = jnp.dot(h.astype(bf16), w3_ref[...], preferred_element_type=f32) + b3_ref[...]
    # sigmoid(x) = 1 / (1 + exp(-x)); approx reciprocal stays on the EUP slot.
    e = jnp.exp(-x)
    xrec_out[...] = pl.reciprocal(1.0 + e, approx=True).astype(xrec_out.dtype)


def pack_params(params):
    """One-time packing of PyTorch-style parameters for the kernel.

    - fuses y_mu / y_var weights into one [k_fused, 2*zy_pad] matrix
    - builds a fused-input layout: LHS = [ y | z | 0-pad ] of width k_fused;
      wy has zero rows under the z/pad columns, w1 has zero rows under y/pad
    - pads all output feature dims to multiples of 128 lanes
    - casts matmul weights to bf16 (biases stay f32; adds happen in f32)
    """
    wmu, bmu = params["y_mu"]
    wvar, bvar = params["y_var"]
    w1, b1 = params["l1"]
    w2, b2 = params["l2"]
    w3, b3 = params["l3"]

    z_dim = wmu.shape[0]
    zy_dim = wmu.shape[1]
    hidden = w1.shape[1]
    x_dim = w3.shape[1]
    zy_pad = _round_up(zy_dim, 128)
    x_pad = _round_up(x_dim, 128)
    k_fused = _round_up(2 * z_dim, 128)

    def padw_cols(w, n):
        pad = n - w.shape[1]
        return jnp.pad(w, ((0, 0), (0, pad))) if pad else w

    # y-path weight: rows 0:z_dim act on the y columns of the fused input.
    wy = jnp.concatenate([padw_cols(wmu, zy_pad), padw_cols(wvar, zy_pad)], axis=1)
    wy_f = jnp.zeros((k_fused, 2 * zy_pad), jnp.float32).at[:z_dim].set(wy)
    by = jnp.concatenate([padw_cols(bmu, zy_pad), padw_cols(bvar, zy_pad)], axis=1)

    # first MLP weight: rows z_dim:2*z_dim act on the z columns of the fused input.
    w1_f = jnp.zeros((k_fused, hidden), jnp.float32).at[z_dim : 2 * z_dim].set(w1)

    return {
        "wy": wy_f.astype(jnp.bfloat16), "by": by.astype(jnp.float32),
        "w1": w1_f.astype(jnp.bfloat16), "b1": b1.astype(jnp.float32),
        "w2": w2.astype(jnp.bfloat16), "b2": b2.astype(jnp.float32),
        "w3": padw_cols(w3, x_pad).astype(jnp.bfloat16),
        "b3": padw_cols(b3, x_pad).astype(jnp.float32),
        "z_dim": z_dim, "zy_dim": zy_dim, "x_dim": x_dim,
        "zy_pad": zy_pad, "x_pad": x_pad, "k_fused": k_fused,
    }


def _tensorcores_per_chip():
    try:
        kind = jax.devices()[0].device_kind.lower()
        return 2 if "7" in kind else 1
    except Exception:  # pragma: no cover - defensive
        return 1


def _pick_batch_tile(B, min_steps):
    # Largest tile dividing B that still yields >= min_steps grid steps
    # (>= 2 per TensorCore so software pipelining engages on every core);
    # otherwise fall back to the largest divisor (single big tile).
    candidates = (1024, 512, 256, 128, 64, 32, 16, 8)
    for t in candidates:
        if B % t == 0 and B // t >= min_steps:
            return t
    for t in candidates:
        if B % t == 0:
            return t
    raise ValueError("batch size must be a multiple of 8")


def generative_net_forward(z, y, packed, *, batch_tile=None, out_dtype=jnp.bfloat16):
    """Fused GenerativeNet forward via pallas_call.

    z: [B, z_dim], y: [B, z_dim]; `packed` comes from pack_params().
    Returns {'y_mean': [B, zy_dim], 'y_var': [B, zy_dim], 'x_rec': [B, x_dim]}
    in `out_dtype` (bf16 by default to halve kernel HBM writeback).
    """
    B, z_dim = z.shape
    assert y.shape == (B, z_dim)
    assert z_dim == packed["z_dim"]

    zy_dim, x_dim = packed["zy_dim"], packed["x_dim"]
    zy_pad, x_pad = packed["zy_pad"], packed["x_pad"]
    k_fused = packed["k_fused"]
    hidden = packed["w1"].shape[1]

    min_steps = 2 * _tensorcores_per_chip()
    tb = batch_tile if batch_tile is not None else _pick_batch_tile(B, min_steps)
    assert B % tb == 0
    grid = (B // tb,)

    # Single fused LHS [B, k_fused] = [ y | z | 0-pad ], f32 in HBM,
    # cast to bf16 at the dot inputs inside the kernel.
    yz = jnp.concatenate([y, z], axis=1)
    if k_fused > 2 * z_dim:
        yz = jnp.pad(yz, ((0, 0), (0, k_fused - 2 * z_dim)))

    act_spec = pl.BlockSpec((tb, k_fused), lambda i: (i, 0))

    def const_spec(arr):
        # Full array, constant block index -> resident across the grid loop.
        shape = arr.shape
        return pl.BlockSpec(shape, lambda i: (0,) * len(shape))

    out_shapes = (
        jax.ShapeDtypeStruct((B, 2 * zy_pad), out_dtype),   # [y_mu | y_var]
        jax.ShapeDtypeStruct((B, x_pad), out_dtype),        # x_rec (padded)
    )
    out_specs = (
        pl.BlockSpec((tb, 2 * zy_pad), lambda i: (i, 0)),
        pl.BlockSpec((tb, x_pad), lambda i: (i, 0)),
    )

    # Advisory cost estimate for the XLA scheduler.
    flops = 2 * B * (k_fused * 2 * zy_pad + k_fused * hidden
                     + hidden * hidden + hidden * x_pad)
    transcendentals = 2 * B * (zy_pad + x_pad)   # softplus(var half) + sigmoid
    weight_bytes = sum(
        int(packed[k].size) * packed[k].dtype.itemsize
        for k in ("wy", "by", "w1", "b1", "w2", "b2", "w3", "b3")
    )
    out_isize = jnp.dtype(out_dtype).itemsize
    bytes_accessed = (weight_bytes + yz.size * 4
                      + (B * 2 * zy_pad + B * x_pad) * out_isize)

    kernel = functools.partial(_generative_kernel, zy_pad=zy_pad)

    ypack, xrec = pl.pallas_call(
        kernel,
        out_shape=out_shapes,
        grid_spec=pltpu.PrefetchScalarGridSpec(
            num_scalar_prefetch=0,
            grid=grid,
            in_specs=[
                act_spec,
                const_spec(packed["wy"]), const_spec(packed["by"]),
                const_spec(packed["w1"]), const_spec(packed["b1"]),
                const_spec(packed["w2"]), const_spec(packed["b2"]),
                const_spec(packed["w3"]), const_spec(packed["b3"]),
            ],
            out_specs=out_specs,
        ),
        compiler_params=pltpu.CompilerParams(
            dimension_semantics=("parallel",),
        ),
        cost_estimate=pl.CostEstimate(
            flops=int(flops),
            transcendentals=int(transcendentals),
            bytes_accessed=int(bytes_accessed),
        ),
    )(yz, packed["wy"], packed["by"], packed["w1"], packed["b1"],
      packed["w2"], packed["b2"], packed["w3"], packed["b3"])

    # NOTE: padded lanes (y_mu pad = 0, y_var pad = softplus(0), x_rec pad = 0.5)
    # are sliced off here; do not consume the raw padded buffers downstream.
    return {
        "y_mean": ypack[:, :zy_dim],
        "y_var": ypack[:, zy_pad:zy_pad + zy_dim],
        "x_rec": xrec[:, :x_dim],
    }


def init_params(key, x_dim, z_dim, y_dim):
    """Deterministic init mimicking PyTorch Linear default (U[-1/sqrt(fan_in), +])."""
    def linear(key, fan_in, fan_out):
        kw, kb = jax.random.split(key)
        bound = 1.0 / jnp.sqrt(fan_in)
        w = jax.random.uniform(kw, (fan_in, fan_out), jnp.float32, -bound, bound)
        b = jax.random.uniform(kb, (1, fan_out), jnp.float32, -bound, bound)
        return w, b

    keys = jax.random.split(key, 5)
    return {
        "y_mu": linear(keys[0], z_dim, z_dim * y_dim),
        "y_var": linear(keys[1], z_dim, z_dim * y_dim),
        "l1": linear(keys[2], z_dim, 512),
        "l2": linear(keys[3], 512, 512),
        "l3": linear(keys[4], 512, x_dim),
    }


def reference_forward(z, y, params):
    """Pure-JAX f32 reference of the PyTorch forward, for correctness check."""
    wmu, bmu = params["y_mu"]
    wvar, bvar = params["y_var"]
    w1, b1 = params["l1"]
    w2, b2 = params["l2"]
    w3, b3 = params["l3"]
    y_mu = y @ wmu + bmu
    y_var = jax.nn.softplus(y @ wvar + bvar)
    h = jnp.maximum(z @ w1 + b1, 0.0)
    h = jnp.maximum(h @ w2 + b2, 0.0)
    x_rec = jax.nn.sigmoid(h @ w3 + b3)
    return {"y_mean": y_mu, "y_var": y_var, "x_rec": x_rec}


if __name__ == "__main__":
    # MNIST-like shapes: exercises output-dim padding (784 -> 896, 192 -> 256),
    # the fused [B, 128] input, and a multi-step grid of 64/128-row tiles.
    B, x_dim, z_dim, y_dim = 256, 784, 64, 3

    key = jax.random.PRNGKey(0)
    kp, kz, ky = jax.random.split(key, 3)

    params = init_params(kp, x_dim, z_dim, y_dim)
    packed = pack_params(params)
    z = jax.random.normal(kz, (B, z_dim), jnp.float32)
    y = jax.random.normal(ky, (B, z_dim), jnp.float32)

    out = generative_net_forward(z, y, packed)
    out = jax.block_until_ready(out)

    # Loose tolerance vs the f32 reference: kernel matmuls use bf16 operands,
    # outputs are stored in bf16, sigmoid uses the approx EUP reciprocal.
    ref = reference_forward(z, y, params)
    for k in ("y_mean", "y_var", "x_rec"):
        got = out[k].astype(jnp.float32)
        assert got.shape == ref[k].shape, (k, got.shape, ref[k].shape)
        assert jnp.allclose(got, ref[k], atol=3e-2, rtol=3e-2), (
            k, float(jnp.max(jnp.abs(got - ref[k]))))

    print("KERNEL_OK")
</pallas_src>

<mosaic_0001>
module attributes {stable_mosaic.version = 11 : i64} {
  func.func @_generative_kernel(%arg0: i32, %arg1: memref<128x128xf32, #tpu.memory_space<vmem>>, %arg2: memref<128x512xbf16, #tpu.memory_space<vmem>>, %arg3: memref<1x512xf32, #tpu.memory_space<vmem>>, %arg4: memref<128x512xbf16, #tpu.memory_space<vmem>>, %arg5: memref<1x512xf32, #tpu.memory_space<vmem>>, %arg6: memref<512x512xbf16, #tpu.memory_space<vmem>>, %arg7: memref<1x512xf32, #tpu.memory_space<vmem>>, %arg8: memref<512x896xbf16, #tpu.memory_space<vmem>>, %arg9: memref<1x896xf32, #tpu.memory_space<vmem>>, %arg10: memref<128x512xbf16, #tpu.memory_space<vmem>>, %arg11: memref<128x896xbf16, #tpu.memory_space<vmem>>) attributes {dimension_semantics = [#tpu.dimension_semantics<parallel>], iteration_bounds = array<i64: 2>, scalar_prefetch = 0 : i64, scratch_operands = 0 : i64, tpu.core_type = #tpu.core_type<tc>, window_params = [{transform_indices = @transform_0, window_bounds = array<i64: 128, 128>}, {pipeline_mode = #tpu.pipeline_mode<synchronous>, transform_indices = @transform_1, window_bounds = array<i64: 128, 512>}, {pipeline_mode = #tpu.pipeline_mode<synchronous>, transform_indices = @transform_2, window_bounds = array<i64: 1, 512>}, {pipeline_mode = #tpu.pipeline_mode<synchronous>, transform_indices = @transform_3, window_bounds = array<i64: 128, 512>}, {pipeline_mode = #tpu.pipeline_mode<synchronous>, transform_indices = @transform_4, window_bounds = array<i64: 1, 512>}, {pipeline_mode = #tpu.pipeline_mode<synchronous>, transform_indices = @transform_5, window_bounds = array<i64: 512, 512>}, {pipeline_mode = #tpu.pipeline_mode<synchronous>, transform_indices = @transform_6, window_bounds = array<i64: 1, 512>}, {pipeline_mode = #tpu.pipeline_mode<synchronous>, transform_indices = @transform_7, window_bounds = array<i64: 512, 896>}, {pipeline_mode = #tpu.pipeline_mode<synchronous>, transform_indices = @transform_8, window_bounds = array<i64: 1, 896>}, {transform_indices = @transform_9, window_bounds = array<i64: 128, 512>}, {transform_indices = @transform_10, window_bounds = array<i64: 128, 896>}]} {
    %c0 = arith.constant 0 : index
    %c0_0 = arith.constant 0 : index
    %0 = vector.load %arg1[%c0, %c0_0] : memref<128x128xf32, #tpu.memory_space<vmem>>, vector<128x128xf32>
    %1 = arith.truncf %0 : vector<128x128xf32> to vector<128x128xbf16>
    %c0_1 = arith.constant 0 : index
    %c0_2 = arith.constant 0 : index
    %2 = vector.load %arg2[%c0_1, %c0_2] : memref<128x512xbf16, #tpu.memory_space<vmem>>, vector<128x512xbf16>
    %cst = arith.constant dense<0.000000e+00> : vector<128x512xf32>
    %3 = tpu.matmul %1, %2, %cst {dimension_numbers = #tpu.dot_dimension_numbers<[1], [0], [0], [1], [0, 0, 1, 1], [], []>} : vector<128x128xbf16>, vector<128x512xbf16>, vector<128x512xf32> -> vector<128x512xf32>
    %c0_3 = arith.constant 0 : index
    %c0_4 = arith.constant 0 : index
    %4 = vector.load %arg3[%c0_3, %c0_4] : memref<1x512xf32, #tpu.memory_space<vmem>>, vector<1x512xf32>
    %5 = vector.broadcast %4 : vector<1x512xf32> to vector<128x512xf32>
    %6 = arith.addf %3, %5 : vector<128x512xf32>
    %7 = vector.extract_strided_slice %6 {offsets = [0, 0], sizes = [128, 256], strides = [1, 1]} : vector<128x512xf32> to vector<128x256xf32>
    %8 = arith.truncf %7 : vector<128x256xf32> to vector<128x256xbf16>
    %c0_5 = arith.constant 0 : index
    %c0_6 = arith.constant 0 : index
    %9 = vector.load %arg10[%c0_5, %c0_6] : memref<128x512xbf16, #tpu.memory_space<vmem>>, vector<128x256xbf16>
    tpu.vector_store %arg10[%c0_5, %c0_6], %8 {strides = array<i32>} : memref<128x512xbf16, #tpu.memory_space<vmem>>, vector<128x256xbf16>,
    %10 = vector.extract_strided_slice %6 {offsets = [0, 256], sizes = [128, 256], strides = [1, 1]} : vector<128x512xf32> to vector<128x256xf32>
    %cst_7 = arith.constant 0.000000e+00 : f32
    %11 = vector.broadcast %cst_7 : f32 to vector<128x256xf32>
    %12 = arith.maximumf %10, %11 : vector<128x256xf32>
    %13 = vector.broadcast %cst_7 : f32 to vector<128x256xf32>
    %14 = arith.subf %10, %13 : vector<128x256xf32>
    %15 = arith.cmpf one, %14, %14 : vector<128x256xf32>
    %16 = vector.broadcast %cst_7 : f32 to vector<128x256xf32>
    %17 = arith.addf %10, %16 : vector<128x256xf32>
    %18 = math.absf %14 : vector<128x256xf32>
    %cst_8 = arith.constant 0.000000e+00 : f32
    %19 = vector.broadcast %cst_8 : f32 to vector<128x256xf32>
    %20 = arith.subf %19, %18 : vector<128x256xf32>
    %21 = math.exp %20 : vector<128x256xf32>
    %22 = math.log1p %21 : vector<128x256xf32>
    %23 = arith.addf %12, %22 : vector<128x256xf32>
    %24 = arith.select %15, %17, %23 : vector<128x256xi1>, vector<128x256xf32>
    %25 = arith.truncf %24 : vector<128x256xf32> to vector<128x256xbf16>
    %c0_9 = arith.constant 0 : index
    %c256 = arith.constant 256 : index
    %26 = vector.load %arg10[%c0_9, %c256] : memref<128x512xbf16, #tpu.memory_space<vmem>>, vector<128x256xbf16>
    tpu.vector_store %arg10[%c0_9, %c256], %25 {strides = array<i32>} : memref<128x512xbf16, #tpu.memory_space<vmem>>, vector<128x256xbf16>,
    %c0_10 = arith.constant 0 : index
    %c0_11 = arith.constant 0 : index
    %27 = vector.load %arg4[%c0_10, %c0_11] : memref<128x512xbf16, #tpu.memory_space<vmem>>, vector<128x512xbf16>
    %cst_12 = arith.constant dense<0.000000e+00> : vector<128x512xf32>
    %28 = tpu.matmul %1, %27, %cst_12 {dimension_numbers = #tpu.dot_dimension_numbers<[1], [0], [0], [1], [0, 0, 1, 1], [], []>} : vector<128x128xbf16>, vector<128x512xbf16>, vector<128x512xf32> -> vector<128x512xf32>
    %c0_13 = arith.constant 0 : index
    %c0_14 = arith.constant 0 : index
    %29 = vector.load %arg5[%c0_13, %c0_14] : memref<1x512xf32, #tpu.memory_space<vmem>>, vector<1x512xf32>
    %30 = vector.broadcast %29 : vector<1x512xf32> to vector<128x512xf32>
    %31 = arith.addf %28, %30 : vector<128x512xf32>
    %cst_15 = arith.constant 0.000000e+00 : f32
    %32 = vector.broadcast %cst_15 : f32 to vector<128x512xf32>
    %33 = arith.maximumf %31, %32 : vector<128x512xf32>
    %34 = arith.truncf %33 : vector<128x512xf32> to vector<128x512xbf16>
    %c0_16 = arith.constant 0 : index
    %c0_17 = arith.constant 0 : index
    %35 = vector.load %arg6[%c0_16, %c0_17] : memref<512x512xbf16, #tpu.memory_space<vmem>>, vector<512x512xbf16>
    %cst_18 = arith.constant dense<0.000000e+00> : vector<128x512xf32>
    %36 = tpu.matmul %34, %35, %cst_18 {dimension_numbers = #tpu.dot_dimension_numbers<[1], [0], [0], [1], [0, 0, 1, 1], [], []>} : vector<128x512xbf16>, vector<512x512xbf16>, vector<128x512xf32> -> vector<128x512xf32>
    %c0_19 = arith.constant 0 : index
    %c0_20 = arith.constant 0 : index
    %37 = vector.load %arg7[%c0_19, %c0_20] : memref<1x512xf32, #tpu.memory_space<vmem>>, vector<1x512xf32>
    %38 = vector.broadcast %37 : vector<1x512xf32> to vector<128x512xf32>
    %39 = arith.addf %36, %38 : vector<128x512xf32>
    %cst_21 = arith.constant 0.000000e+00 : f32
    %40 = vector.broadcast %cst_21 : f32 to vector<128x512xf32>
    %41 = arith.maximumf %39, %40 : vector<128x512xf32>
    %42 = arith.truncf %41 : vector<128x512xf32> to vector<128x512xbf16>
    %c0_22 = arith.constant 0 : index
    %c0_23 = arith.constant 0 : index
    %43 = vector.load %arg8[%c0_22, %c0_23] : memref<512x896xbf16, #tpu.memory_space<vmem>>, vector<512x896xbf16>
    %cst_24 = arith.constant dense<0.000000e+00> : vector<128x896xf32>
    %44 = tpu.matmul %42, %43, %cst_24 {dimension_numbers = #tpu.dot_dimension_numbers<[1], [0], [0], [1], [0, 0, 1, 1], [], []>} : vector<128x512xbf16>, vector<512x896xbf16>, vector<128x896xf32> -> vector<128x896xf32>
    %c0_25 = arith.constant 0 : index
    %c0_26 = arith.constant 0 : index
    %45 = vector.load %arg9[%c0_25, %c0_26] : memref<1x896xf32, #tpu.memory_space<vmem>>, vector<1x896xf32>
    %46 = vector.broadcast %45 : vector<1x896xf32> to vector<128x896xf32>
    %47 = arith.addf %44, %46 : vector<128x896xf32>
    %cst_27 = arith.constant 0.000000e+00 : f32
    %48 = vector.broadcast %cst_27 : f32 to vector<128x896xf32>
    %49 = arith.subf %48, %47 : vector<128x896xf32>
    %50 = math.exp %49 : vector<128x896xf32>
    %cst_28 = arith.constant 1.000000e+00 : f32
    %51 = vector.broadcast %cst_28 : f32 to vector<128x896xf32>
    %52 = arith.addf %51, %50 : vector<128x896xf32>
    %53 = tpu.reciprocal %52 {approx = true} : vector<128x896xf32> -> vector<128x896xf32>
    %54 = arith.truncf %53 : vector<128x896xf32> to vector<128x896xbf16>
    %c0_29 = arith.constant 0 : index
    %c0_30 = arith.constant 0 : index
    %55 = vector.load %arg11[%c0_29, %c0_30] : memref<128x896xbf16, #tpu.memory_space<vmem>>, vector<128x896xbf16>
    tpu.vector_store %arg11[%c0_29, %c0_30], %54 {strides = array<i32>} : memref<128x896xbf16, #tpu.memory_space<vmem>>, vector<128x896xbf16>,
    return
  }
  func.func @transform_0(%arg0: i32) -> (i32, i32) {
    %c0_i32 = arith.constant 0 : i32
    %c0_i32_0 = arith.constant 0 : i32
    return %arg0, %c0_i32 : i32, i32
  }
  func.func @transform_1(%arg0: i32) -> (i32, i32) {
    %c0_i32 = arith.constant 0 : i32
    %c0_i32_0 = arith.constant 0 : i32
    %c0_i32_1 = arith.constant 0 : i32
    return %c0_i32, %c0_i32_0 : i32, i32
  }
  func.func @transform_2(%arg0: i32) -> (i32, i32) {
    %c0_i32 = arith.constant 0 : i32
    %c0_i32_0 = arith.constant 0 : i32
    %c0_i32_1 = arith.constant 0 : i32
    return %c0_i32, %c0_i32_0 : i32, i32
  }
  func.func @transform_3(%arg0: i32) -> (i32, i32) {
    %c0_i32 = arith.constant 0 : i32
    %c0_i32_0 = arith.constant 0 : i32
    %c0_i32_1 = arith.constant 0 : i32
    return %c0_i32, %c0_i32_0 : i32, i32
  }
  func.func @transform_4(%arg0: i32) -> (i32, i32) {
    %c0_i32 = arith.constant 0 : i32
    %c0_i32_0 = arith.constant 0 : i32
    %c0_i32_1 = arith.constant 0 : i32
    return %c0_i32, %c0_i32_0 : i32, i32
  }
  func.func @transform_5(%arg0: i32) -> (i32, i32) {
    %c0_i32 = arith.constant 0 : i32
    %c0_i32_0 = arith.constant 0 : i32
    %c0_i32_1 = arith.constant 0 : i32
    return %c0_i32, %c0_i32_0 : i32, i32
  }
  func.func @transform_6(%arg0: i32) -> (i32, i32) {
    %c0_i32 = arith.constant 0 : i32
    %c0_i32_0 = arith.constant 0 : i32
    %c0_i32_1 = arith.constant 0 : i32
    return %c0_i32, %c0_i32_0 : i32, i32
  }
  func.func @transform_7(%arg0: i32) -> (i32, i32) {
    %c0_i32 = arith.constant 0 : i32
    %c0_i32_0 = arith.constant 0 : i32
    %c0_i32_1 = arith.constant 0 : i32
    return %c0_i32, %c0_i32_0 : i32, i32
  }
  func.func @transform_8(%arg0: i32) -> (i32, i32) {
    %c0_i32 = arith.constant 0 : i32
    %c0_i32_0 = arith.constant 0 : i32
    %c0_i32_1 = arith.constant 0 : i32
    return %c0_i32, %c0_i32_0 : i32, i32
  }
  func.func @transform_9(%arg0: i32) -> (i32, i32) {
    %c0_i32 = arith.constant 0 : i32
    %c0_i32_0 = arith.constant 0 : i32
    return %arg0, %c0_i32 : i32, i32
  }
  func.func @transform_10(%arg0: i32) -> (i32, i32) {
    %c0_i32 = arith.constant 0 : i32
    %c0_i32_0 = arith.constant 0 : i32
    return %arg0, %c0_i32 : i32, i32
  }
}

</mosaic_0001>

<llo_original>
// kernel: tpu_custom_call.1
$region0: #{tpu_custom_call.1}
  #allocation0 [shape = 'u32[]', space=smem, size = 0x4, offset = 0x4, fixed_abs, tag = 'smem constant byte address 0x4 - core index']
  #allocation1 [shape = 'u32[144,128]{1,0:T(1,128)}', space=vmem, size = 0x12000, scoped, tag = 'internal scratch']
  %s0 = inlined_call_operand.hbm [shape: f32[256,128], index: 0, kind: input, shape index: {}]
  %s1 = inlined_call_operand.hbm [shape: bf16[128,512], index: 1, kind: input, shape index: {}]
  %s2 = inlined_call_operand.vmem [shape: f32[1,512], index: 2, kind: input, shape index: {}]
  %s3 = inlined_call_operand.hbm [shape: bf16[128,512], index: 3, kind: input, shape index: {}]
  %s4 = inlined_call_operand.vmem [shape: f32[1,512], index: 4, kind: input, shape index: {}]
  %s5 = inlined_call_operand.hbm [shape: bf16[512,512], index: 5, kind: input, shape index: {}]
  %s6 = inlined_call_operand.vmem [shape: f32[1,512], index: 6, kind: input, shape index: {}]
  %s7 = inlined_call_operand.hbm [shape: bf16[512,896], index: 7, kind: input, shape index: {}]
  %s8 = inlined_call_operand.vmem [shape: f32[1,896], index: 8, kind: input, shape index: {}]
  %s9 = inlined_call_operand.hbm [shape: bf16[256,512], index: 9, kind: output, shape index: {0}]
  %s10 = inlined_call_operand.hbm [shape: bf16[256,896], index: 10, kind: output, shape index: {1}]
  %11 = xla_tuple %s9, %s10
  %s12 = sld [smem:[#allocation0]]
  $region97: #{tpu_custom_call.1} parent=0
    _
  %s14 = ssub.s32 1, %s12
  %s15 = scalar_select 0, %s14, %s12
  $region1: #{tpu_custom_call.1} parent=0
    #allocation2 [shape = 'u8[131072]{0}', space=vmem, size = 0x20000, scoped, tag = 'input window, operand 0']
    #allocation3 [shape = 's32[2]{0}', space=sflag, size = 0x8, scoped, tag = 'scoped memory for tpu_custom_call.1']
    #allocation4 [shape = 's32[2]{0}', space=sflag, size = 0x8, scoped, tag = 'scoped memory for tpu_custom_call.1']
    #allocation5 [shape = 'u8[131072]{0}', space=vmem, size = 0x20000, scoped, tag = 'input window, operand 1, single buffered']
    #allocation6 [shape = 's32[1]{0}', space=sflag, size = 0x4, scoped, tag = 'scoped memory for tpu_custom_call.1']
    #allocation7 [shape = 'u8[131072]{0}', space=vmem, size = 0x20000, scoped, tag = 'input window, operand 3, single buffered']
    #allocation8 [shape = 'u8[524288]{0}', space=vmem, size = 0x80000, scoped, tag = 'input window, operand 5, single buffered']
    #allocation9 [shape = 's32[1]{0}', space=sflag, size = 0x4, scoped, tag = 'scoped memory for tpu_custom_call.1']
    #allocation10 [shape = 'u8[917504]{0}', space=vmem, size = 0xe0000, scoped, tag = 'input window, operand 7, single buffered']
    #allocation11 [shape = 'u8[262144]{0}', space=vmem, size = 0x40000, scoped, tag = 'output window, operand 0']
    #allocation12 [shape = 'u8[458752]{0}', space=vmem, size = 0x70000, scoped, tag = 'output window, operand 1']
    #allocation13 [shape = 's32[2]{0}', space=sflag, size = 0x8, scoped, tag = 'scoped memory for tpu_custom_call.1']
    %16 = vsyncpa [#allocation3], 0
    %s17 = scalar_lea.sflag [#allocation3], 1
    %18 = vsyncpa %s17, 0
    %19 = vsyncpa [#allocation6], 0
    %20 = vsyncpa [#allocation9], 0
    %21 = vsyncpa [#allocation4], 0
    %s22 = scalar_lea.sflag [#allocation4], 1
    %23 = vsyncpa %s22, 0
    %24 = vsyncpa [#allocation13], 0
    %s25 = scalar_lea.sflag [#allocation13], 1
    %26 = vsyncpa %s25, 0
    loop: start=0, step=1, limit=4
    $region2: #{tpu_custom_call.1} parent=1 // loop_pre_header
      _
    $region3: #{tpu_custom_call.1} parent=1 // loop_header
      %s28 = sphi 0, %s32
      %p29 = scmp.ge.s32.totalorder %s28, 4
      %s38 = sphi 0, %s40
      %s41 = sphi 0, %s38
      %s42 = sphi 0, %s41
      %s58 = sphi 0, %s42
      %s62 = sphi 0, %s62
      %s64 = sphi 0, %s62
      %s65 = sphi 0, %s64
      %s79 = sphi 0, %s65
      %s83 = sphi 0, %s83
      %s85 = sphi 0, %s83
      %s86 = sphi 0, %s85
      %s100 = sphi 0, %s86
      %s104 = sphi 0, %s104
      %s106 = sphi 0, %s104
      %s107 = sphi 0, %s106
      %s121 = sphi 0, %s107
      %s125 = sphi 0, %s125
      %s127 = sphi 0, %s125
      %s128 = sphi 0, %s127
      %s142 = sphi 0, %s128
      %s146 = sphi 0, %s146
      %s148 = sphi 0, %s146
      %s149 = sphi 0, %s148
      %s163 = sphi 0, %s149
      %s167 = sphi 0, %s167
      %s169 = sphi 0, %s167
      %s170 = sphi 0, %s169
      %s184 = sphi 0, %s170
      %s188 = sphi 0, %s188
      %s190 = sphi 0, %s188
      %s191 = sphi 0, %s190
      %s205 = sphi 0, %s191
      %s209 = sphi 0, %s209
      %s211 = sphi 0, %s209
      %s212 = sphi 0, %s211
      %s226 = sphi 0, %s212
      %s232 = sphi 0, %s234
      %s235 = sphi 0, %s232
      %s236 = sphi 0, %s235
      %s252 = sphi 0, %s236
      %s258 = sphi 0, %s260
      %s261 = sphi 0, %s258
      %s262 = sphi 0, %s261
      %s278 = sphi 0, %s262
    $region4: #{tpu_custom_call.1} parent=1 // loop_header_branch
      %31 = sbr.rel (%p29) target = $region8
    $region5: #{tpu_custom_call.1} parent=1 // loop_body
      %s33 = ssub.s32 %s28, 1
      %s34 = ssub.s32 %s28, 2
      %s35 = sadd.s32 %s28, 1
      %s36 = ssub.s32 %s28, %s35
      %p37 = scmp.eq.s32.totalorder %s36, 0
      %s39 = sadd.s32 %s38, 1
      %s40 = scalar_select %p37, %s38, %s39
      %p43 = pneg %p37
      %p44 = scmp.eq.s32.totalorder %s28, 1
      %p45 = por %p43, %p44
      %p46 = scmp.ne.s32.totalorder %s38, %s41
      %p47 = scmp.eq.s32.totalorder %s28, 0
      %p48 = por %p46, %p47
      %p49 = scmp.ne.s32.totalorder %s38, %s41
      %p50 = scmp.eq.s32.totalorder %s33, 1
      %p51 = por %p49, %p50
      %p52 = scmp.ne.s32.totalorder %s41, %s42
      %p53 = scmp.eq.s32.totalorder %s33, 0
      %p54 = por %p52, %p53
      %p55 = scmp.ne.s32.totalorder %s41, %s42
      %p56 = scmp.eq.s32.totalorder %s34, 1
      %p57 = por %p55, %p56
      %p59 = scmp.ne.s32.totalorder %s42, %s58
      %p60 = scmp.eq.s32.totalorder %s34, 0
      %p61 = por %p59, %p60
      %s63 = sadd.s32 %s62, 1
      %p66 = scmp.eq.s32.totalorder %s28, 1
      %p67 = scmp.ne.s32.totalorder %s62, %s64
      %p68 = scmp.eq.s32.totalorder %s28, 0
      %p69 = por %p67, %p68
      %p70 = scmp.ne.s32.totalorder %s62, %s64
      %p71 = scmp.eq.s32.totalorder %s33, 1
      %p72 = por %p70, %p71
      %p73 = scmp.ne.s32.totalorder %s64, %s65
      %p74 = scmp.eq.s32.totalorder %s33, 0
      %p75 = por %p73, %p74
      %p76 = scmp.ne.s32.totalorder %s64, %s65
      %p77 = scmp.eq.s32.totalorder %s34, 1
      %p78 = por %p76, %p77
      %p80 = scmp.ne.s32.totalorder %s65, %s79
      %p81 = scmp.eq.s32.totalorder %s34, 0
      %p82 = por %p80, %p81
      %s84 = sadd.s32 %s83, 1
      %p87 = scmp.eq.s32.totalorder %s28, 1
      %p88 = scmp.ne.s32.totalorder %s83, %s85
      %p89 = scmp.eq.s32.totalorder %s28, 0
      %p90 = por %p88, %p89
      %p91 = scmp.ne.s32.totalorder %s83, %s85
      %p92 = scmp.eq.s32.totalorder %s33, 1
      %p93 = por %p91, %p92
      %p94 = scmp.ne.s32.totalorder %s85, %s86
      %p95 = scmp.eq.s32.totalorder %s33, 0
      %p96 = por %p94, %p95
      %p97 = scmp.ne.s32.totalorder %s85, %s86
      %p98 = scmp.eq.s32.totalorder %s34, 1
      %p99 = por %p97, %p98
      %p101 = scmp.ne.s32.totalorder %s86, %s100
      %p102 = scmp.eq.s32.totalorder %s34, 0
      %p103 = por %p101, %p102
      %s105 = sadd.s32 %s104, 1
      %p108 = scmp.eq.s32.totalorder %s28, 1
      %p109 = scmp.ne.s32.totalorder %s104, %s106
      %p110 = scmp.eq.s32.totalorder %s28, 0
      %p111 = por %p109, %p110
      %p112 = scmp.ne.s32.totalorder %s104, %s106
      %p113 = scmp.eq.s32.totalorder %s33, 1
      %p114 = por %p112, %p113
      %p115 = scmp.ne.s32.totalorder %s106, %s107
      %p116 = scmp.eq.s32.totalorder %s33, 0
      %p117 = por %p115, %p116
      %p118 = scmp.ne.s32.totalorder %s106, %s107
      %p119 = scmp.eq.s32.totalorder %s34, 1
      %p120 = por %p118, %p119
      %p122 = scmp.ne.s32.totalorder %s107, %s121
      %p123 = scmp.eq.s32.totalorder %s34, 0
      %p124 = por %p122, %p123
      %s126 = sadd.s32 %s125, 1
      %p129 = scmp.eq.s32.totalorder %s28, 1
      %p130 = scmp.ne.s32.totalorder %s125, %s127
      %p131 = scmp.eq.s32.totalorder %s28, 0
      %p132 = por %p130, %p131
      %p133 = scmp.ne.s32.totalorder %s125, %s127
      %p134 = scmp.eq.s32.totalorder %s33, 1
      %p135 = por %p133, %p134
      %p136 = scmp.ne.s32.totalorder %s127, %s128
      %p137 = scmp.eq.s32.totalorder %s33, 0
      %p138 = por %p136, %p137
      %p139 = scmp.ne.s32.totalorder %s127, %s128
      %p140 = scmp.eq.s32.totalorder %s34, 1
      %p141 = por %p139, %p140
      %p143 = scmp.ne.s32.totalorder %s128, %s142
      %p144 = scmp.eq.s32.totalorder %s34, 0
      %p145 = por %p143, %p144
      %s147 = sadd.s32 %s146, 1
      %p150 = scmp.eq.s32.totalorder %s28, 1
      %p151 = scmp.ne.s32.totalorder %s146, %s148
      %p152 = scmp.eq.s32.totalorder %s28, 0
      %p153 = por %p151, %p152
      %p154 = scmp.ne.s32.totalorder %s146, %s148
      %p155 = scmp.eq.s32.totalorder %s33, 1
      %p156 = por %p154, %p155
      %p157 = scmp.ne.s32.totalorder %s148, %s149
      %p158 = scmp.eq.s32.totalorder %s33, 0
      %p159 = por %p157, %p158
      %p160 = scmp.ne.s32.totalorder %s148, %s149
      %p161 = scmp.eq.s32.totalorder %s34, 1
      %p162 = por %p160, %p161
      %p164 = scmp.ne.s32.totalorder %s149, %s163
      %p165 = scmp.eq.s32.totalorder %s34, 0
      %p166 = por %p164, %p165
      %s168 = sadd.s32 %s167, 1
      %p171 = scmp.eq.s32.totalorder %s28, 1
      %p172 = scmp.ne.s32.totalorder %s167, %s169
      %p173 = scmp.eq.s32.totalorder %s28, 0
      %p174 = por %p172, %p173
      %p175 = scmp.ne.s32.totalorder %s167, %s169
      %p176 = scmp.eq.s32.totalorder %s33, 1
      %p177 = por %p175, %p176
      %p178 = scmp.ne.s32.totalorder %s169, %s170
      %p179 = scmp.eq.s32.totalorder %s33, 0
      %p180 = por %p178, %p179
      %p181 = scmp.ne.s32.totalorder %s169, %s170
      %p182 = scmp.eq.s32.totalorder %s34, 1
      %p183 = por %p181, %p182
      %p185 = scmp.ne.s32.totalorder %s170, %s184
      %p186 = scmp.eq.s32.totalorder %s34, 0
      %p187 = por %p185, %p186
      %s189 = sadd.s32 %s188, 1
      %p192 = scmp.eq.s32.totalorder %s28, 1
      %p193 = scmp.ne.s32.totalorder %s188, %s190
      %p194 = scmp.eq.s32.totalorder %s28, 0
      %p195 = por %p193, %p194
      %p196 = scmp.ne.s32.totalorder %s188, %s190
      %p197 = scmp.eq.s32.totalorder %s33, 1
      %p198 = por %p196, %p197
      %p199 = scmp.ne.s32.totalorder %s190, %s191
      %p200 = scmp.eq.s32.totalorder %s33, 0
      %p201 = por %p199, %p200
      %p202 = scmp.ne.s32.totalorder %s190, %s191
      %p203 = scmp.eq.s32.totalorder %s34, 1
      %p204 = por %p202, %p203
      %p206 = scmp.ne.s32.totalorder %s191, %s205
      %p207 = scmp.eq.s32.totalorder %s34, 0
      %p208 = por %p206, %p207
      %s210 = sadd.s32 %s209, 1
      %p213 = scmp.eq.s32.totalorder %s28, 1
      %p214 = scmp.ne.s32.totalorder %s209, %s211
      %p215 = scmp.eq.s32.totalorder %s28, 0
      %p216 = por %p214, %p215
      %p217 = scmp.ne.s32.totalorder %s209, %s211
      %p218 = scmp.eq.s32.totalorder %s33, 1
      %p219 = por %p217, %p218
      %p220 = scmp.ne.s32.totalorder %s211, %s212
      %p221 = scmp.eq.s32.totalorder %s33, 0
      %p222 = por %p220, %p221
      %p223 = scmp.ne.s32.totalorder %s211, %s212
      %p224 = scmp.eq.s32.totalorder %s34, 1
      %p225 = por %p223, %p224
      %p227 = scmp.ne.s32.totalorder %s212, %s226
      %p228 = scmp.eq.s32.totalorder %s34, 0
      %p229 = por %p227, %p228
      %s230 = ssub.s32 %s28, %s35
      %p231 = scmp.eq.s32.totalorder %s230, 0
      %s233 = sadd.s32 %s232, 1
      %s234 = scalar_select %p231, %s232, %s233
      %p237 = pneg %p231
      %p238 = scmp.eq.s32.totalorder %s28, 1
      %p239 = por %p237, %p238
      %p240 = scmp.ne.s32.totalorder %s232, %s235
      %p241 = scmp.eq.s32.totalorder %s28, 0
      %p242 = por %p240, %p241
      %p243 = scmp.ne.s32.totalorder %s232, %s235
      %p244 = scmp.eq.s32.totalorder %s33, 1
      %p245 = por %p243, %p244
      %p246 = scmp.ne.s32.totalorder %s235, %s236
      %p247 = scmp.eq.s32.totalorder %s33, 0
      %p248 = por %p246, %p247
      %p249 = scmp.ne.s32.totalorder %s235, %s236
      %p250 = scmp.eq.s32.totalorder %s34, 1
      %p251 = por %p249, %p250
      %p253 = scmp.ne.s32.totalorder %s236, %s252
      %p254 = scmp.eq.s32.totalorder %s34, 0
      %p255 = por %p253, %p254
      %s256 = ssub.s32 %s28, %s35
      %p257 = scmp.eq.s32.totalorder %s256, 0
      %s259 = sadd.s32 %s258, 1
      %s260 = scalar_select %p257, %s258, %s259
      %p263 = pneg %p257
      %p264 = scmp.eq.s32.totalorder %s28, 1
      %p265 = por %p263, %p264
      %p266 = scmp.ne.s32.totalorder %s258, %s261
      %p267 = scmp.eq.s32.totalorder %s28, 0
      %p268 = por %p266, %p267
      %p269 = scmp.ne.s32.totalorder %s258, %s261
      %p270 = scmp.eq.s32.totalorder %s33, 1
      %p271 = por %p269, %p270
      %p272 = scmp.ne.s32.totalorder %s261, %s262
      %p273 = scmp.eq.s32.totalorder %s33, 0
      %p274 = por %p272, %p273
      %p275 = scmp.ne.s32.totalorder %s261, %s262
      %p276 = scmp.eq.s32.totalorder %s34, 1
      %p277 = por %p275, %p276
      %p279 = scmp.ne.s32.totalorder %s262, %s278
      %p280 = scmp.eq.s32.totalorder %s34, 0
      %p281 = por %p279, %p280
      %p282 = scmp.le.s32.totalorder 1, %s28
      %p283 = scmp.lt.s32.totalorder %s28, 3
      %p284 = pnand %p282, %p283
      %p285 = pneg %p284
      // Predicated region
      $region9: #{tpu_custom_call.1} parent=5 // pred_check
        _
      $region10: #{tpu_custom_call.1} parent=5 // pred_check_branch
        %287 = sbr.rel (%p284) target = $region12
      $region11: #{tpu_custom_call.1} parent=5 // pred_region
        %s288 = ssub.s32 %s28, 1
        // Predicated region
        $region13: #{tpu_custom_call.1} parent=11 // pred_check
          %p289 = pneg %p75
        $region14: #{tpu_custom_call.1} parent=11 // pred_check_branch
          %291 = sbr.rel (%p289) target = $region16
        $region15: #{tpu_custom_call.1} parent=11 // pred_region
          %s293 = ssub.s32 4096, 4096
          %294 = vsyncadd [#allocation6], %s293
          %s295 = sshll.u32 [#allocation5], 4
          %s296 = int_to_ptr.vmem [resolvable:$true] %s295
          %301 = dma.hbm_to_vmem [thread:$0]  %s1, 4096, %s296, [#allocation6], 256, 256, 16
        $region16: #{tpu_custom_call.1} parent=11 // pred_fallthru
          _
        // Predicated region
        $region17: #{tpu_custom_call.1} parent=11 // pred_check
          %p302 = pneg %p96
        $region18: #{tpu_custom_call.1} parent=11 // pred_check_branch
          %304 = sbr.rel (%p302) target = $region20
        $region19: #{tpu_custom_call.1} parent=11 // pred_region
          _
        $region20: #{tpu_custom_call.1} parent=11 // pred_fallthru
          _
        // Predicated region
        $region21: #{tpu_custom_call.1} parent=11 // pred_check
          %p305 = pneg %p117
        $region22: #{tpu_custom_call.1} parent=11 // pred_check_branch
          %307 = sbr.rel (%p305) target = $region24
        $region23: #{tpu_custom_call.1} parent=11 // pred_region
          %s309 = ssub.s32 4096, 4096
          %310 = vsyncadd [#allocation6], %s309
          %s311 = sshll.u32 [#allocation7], 4
          %s312 = int_to_ptr.vmem [resolvable:$true] %s311
          %317 = dma.hbm_to_vmem [thread:$0]  %s3, 4096, %s312, [#allocation6], 256, 256, 16
        $region24: #{tpu_custom_call.1} parent=11 // pred_fallthru
          _
        // Predicated region
        $region25: #{tpu_custom_call.1} parent=11 // pred_check
          %p318 = pneg %p138
        $region26: #{tpu_custom_call.1} parent=11 // pred_check_branch
          %320 = sbr.rel (%p318) target = $region28
        $region27: #{tpu_custom_call.1} parent=11 // pred_region
          _
        $region28: #{tpu_custom_call.1} parent=11 // pred_fallthru
          _
        // Predicated region
        $region29: #{tpu_custom_call.1} parent=11 // pred_check
          %p321 = pneg %p159
        $region30: #{tpu_custom_call.1} parent=11 // pred_check_branch
          %323 = sbr.rel (%p321) target = $region32
        $region31: #{tpu_custom_call.1} parent=11 // pred_region
          %s325 = ssub.s32 16384, 16384
          %326 = vsyncadd [#allocation9], %s325
          %s327 = sshll.u32 [#allocation8], 4
          %s328 = int_to_ptr.vmem [resolvable:$true] %s327
          %333 = dma.hbm_to_vmem [thread:$0]  %s5, 16384, %s328, [#allocation9], 256, 256, 16
        $region32: #{tpu_custom_call.1} parent=11 // pred_fallthru
          _
        // Predicated region
        $region33: #{tpu_custom_call.1} parent=11 // pred_check
          %p334 = pneg %p180
        $region34: #{tpu_custom_call.1} parent=11 // pred_check_branch
          %336 = sbr.rel (%p334) target = $region36
        $region35: #{tpu_custom_call.1} parent=11 // pred_region
          _
        $region36: #{tpu_custom_call.1} parent=11 // pred_fallthru
          _
        // Predicated region
        $region37: #{tpu_custom_call.1} parent=11 // pred_check
          %p337 = pneg %p201
        $region38: #{tpu_custom_call.1} parent=11 // pred_check_branch
          %339 = sbr.rel (%p337) target = $region40
        $region39: #{tpu_custom_call.1} parent=11 // pred_region
          %s341 = ssub.s32 28672, 28672
          %342 = vsyncadd [#allocation9], %s341
          %s343 = sshll.u32 [#allocation10], 4
          %s344 = int_to_ptr.vmem [resolvable:$true] %s343
          %349 = dma.hbm_to_vmem [thread:$0]  %s7, 28672, %s344, [#allocation9], 448, 448, 28
        $region40: #{tpu_custom_call.1} parent=11 // pred_fallthru
          _
        // Predicated region
        $region41: #{tpu_custom_call.1} parent=11 // pred_check
          %p350 = pneg %p222
        $region42: #{tpu_custom_call.1} parent=11 // pred_check_branch
          %352 = sbr.rel (%p350) target = $region44
        $region43: #{tpu_custom_call.1} parent=11 // pred_region
          _
        $region44: #{tpu_custom_call.1} parent=11 // pred_fallthru
          _
      $region12: #{tpu_custom_call.1} parent=5 // pred_fallthru
        _
      %p353 = scmp.lt.s32.totalorder %s28, 2
      // Predicated region
      $region45: #{tpu_custom_call.1} parent=5 // pred_check
        %p354 = pneg %p353
      $region46: #{tpu_custom_call.1} parent=5 // pred_check_branch
        %356 = sbr.rel (%p354) target = $region48
      $region47: #{tpu_custom_call.1} parent=5 // pred_region
        // Predicated region
        $region49: #{tpu_custom_call.1} parent=47 // pred_check
          %p357 = pneg %p48
        $region50: #{tpu_custom_call.1} parent=47 // pred_check_branch
          %359 = sbr.rel (%p357) target = $region52
        $region51: #{tpu_custom_call.1} parent=47 // pred_region
          %s360 = sand.u32 %s38, 1
          %s361 = scalar_lea.sflag [#allocation3], %s360
          %s362 = sand.u32 %s38, 1
          %s363 = smul.addr %s362, 128
          %s364 = scalar_lea.vmem [#allocation2], %s363
          %s365 = smul.u32 16, %s28
          %s367 = ssub.s32 2048, 2048
          %368 = vsyncadd %s361, %s367
          %s369 = smul.addr %s365, 128
          %s370 = scalar_lea.hbm %s0, %s369
          %s371 = sshll.u32 %s364, 4
          %s372 = int_to_ptr.vmem [resolvable:$true] %s371
          %377 = dma.hbm_to_vmem [thread:$0]  %s370, 2048, %s372, %s361, 128, 128, 8
        $region52: #{tpu_custom_call.1} parent=47 // pred_fallthru
          _
      $region48: #{tpu_custom_call.1} parent=5 // pred_fallthru
        _
      %p378 = scmp.le.s32.totalorder 1, %s28
      %p379 = scmp.lt.s32.totalorder %s28, 3
      %p380 = pnand %p378, %p379
      %p381 = pneg %p380
      // Predicated region
      $region53: #{tpu_custom_call.1} parent=5 // pred_check
        _
      $region54: #{tpu_custom_call.1} parent=5 // pred_check_branch
        %383 = sbr.rel (%p380) target = $region56
      $region55: #{tpu_custom_call.1} parent=5 // pred_region
        %s384 = ssub.s32 %s28, 1
        %s385 = sand.u32 %s41, 1
        %s386 = scalar_lea.sflag [#allocation3], %s385
        %s387 = sand.u32 %s41, 1
        %s388 = smul.addr %s387, 128
        %s389 = scalar_lea.vmem [#allocation2], %s388
        // Predicated region
        $region57: #{tpu_custom_call.1} parent=55 // pred_check
          %p390 = pneg %p54
        $region58: #{tpu_custom_call.1} parent=55 // pred_check_branch
          %392 = sbr.rel (%p390) target = $region60
        $region59: #{tpu_custom_call.1} parent=55 // pred_region
          %393 = dma.done %s386, 2048
        $region60: #{tpu_custom_call.1} parent=55 // pred_fallthru
          _
        // Predicated region
        $region61: #{tpu_custom_call.1} parent=55 // pred_check
          %p394 = pneg %p75
        $region62: #{tpu_custom_call.1} parent=55 // pred_check_branch
          %396 = sbr.rel (%p394) target = $region64
        $region63: #{tpu_custom_call.1} parent=55 // pred_region
          %397 = dma.done [#allocation6], 4096
        $region64: #{tpu_custom_call.1} parent=55 // pred_fallthru
          _
        // Predicated region
        $region65: #{tpu_custom_call.1} parent=55 // pred_check
          %p398 = pneg %p117
        $region66: #{tpu_custom_call.1} parent=55 // pred_check_branch
          %400 = sbr.rel (%p398) target = $region68
        $region67: #{tpu_custom_call.1} parent=55 // pred_region
          %401 = dma.done [#allocation6], 4096
        $region68: #{tpu_custom_call.1} parent=55 // pred_fallthru
          _
        // Predicated region
        $region69: #{tpu_custom_call.1} parent=55 // pred_check
          %p402 = pneg %p159
        $region70: #{tpu_custom_call.1} parent=55 // pred_check_branch
          %404 = sbr.rel (%p402) target = $region72
        $region71: #{tpu_custom_call.1} parent=55 // pred_region
          %405 = dma.done [#allocation9], 16384
        $region72: #{tpu_custom_call.1} parent=55 // pred_fallthru
          _
        // Predicated region
        $region73: #{tpu_custom_call.1} parent=55 // pred_check
          %p406 = pneg %p201
        $region74: #{tpu_custom_call.1} parent=55 // pred_check_branch
          %408 = sbr.rel (%p406) target = $region76
        $region75: #{tpu_custom_call.1} parent=55 // pred_region
          %409 = dma.done [#allocation9], 28672
        $region76: #{tpu_custom_call.1} parent=55 // pred_fallthru
          _
        %s410 = sand.u32 %s41, 1
        %s411 = scalar_lea.sflag [#allocation3], %s410
        %s412 = sand.u32 %s41, 1
        %s413 = smul.addr %s412, 128
        %s414 = scalar_lea.vmem [#allocation2], %s413
        %p415 = pneg %p54
        %p416 = pneg %p51
        %p417 = pneg %p75
        %p418 = pneg %p72
        %p419 = pneg %p96
        %p420 = pneg %p93
        %p421 = pneg %p117
        %p422 = pneg %p114
        %p423 = pneg %p138
        %p424 = pneg %p135
        %p425 = pneg %p159
        %p426 = pneg %p156
        %p427 = pneg %p180
        %p428 = pneg %p177
        %p429 = pneg %p201
        %p430 = pneg %p198
        %p431 = pneg %p222
        %p432 = pneg %p219
        %p433 = pneg %p248
        %p434 = pneg %p245
        %s435 = sand.u32 %s235, 1
        %s436 = scalar_lea.sflag [#allocation4], %s435
        %s437 = sand.u32 %s235, 1
        %s438 = smul.addr %s437, 256
        %s439 = scalar_lea.vmem [#allocation11], %s438
        %p440 = pneg %p274
        %p441 = pneg %p271
        %s442 = sand.u32 %s261, 1
        %s443 = scalar_lea.sflag [#allocation13], %s442
        %s444 = sand.u32 %s261, 1
        %s445 = smul.addr %s444, 448
        %s446 = scalar_lea.vmem [#allocation12], %s445
        %s447 = smul.u32 16, %s33
        %s448 = smul.u32 16, %s33
        %s449 = smul.u32 16, %s33
        %v451 = vld [vmem:[%s389] sm:$0xff]
        %v452 = vld [vmem:[%s389 + $0x8] sm:$0xff]
        %v453 = vld [vmem:[%s389 + $0x10] sm:$0xff]
        %v454 = vld [vmem:[%s389 + $0x18] sm:$0xff]
        %v455 = vld [vmem:[%s389 + $0x20] sm:$0xff]
        %v456 = vld [vmem:[%s389 + $0x28] sm:$0xff]
        %v457 = vld [vmem:[%s389 + $0x30] sm:$0xff]
        %v458 = vld [vmem:[%s389 + $0x38] sm:$0xff]
        %v459 = vld [vmem:[%s389 + $0x40] sm:$0xff]
        %v460 = vld [vmem:[%s389 + $0x48] sm:$0xff]
        %v461 = vld [vmem:[%s389 + $0x50] sm:$0xff]
        %v462 = vld [vmem:[%s389 + $0x58] sm:$0xff]
        %v463 = vld [vmem:[%s389 + $0x60] sm:$0xff]
        %v464 = vld [vmem:[%s389 + $0x68] sm:$0xff]
        %v465 = vld [vmem:[%s389 + $0x70] sm:$0xff]
        %v466 = vld [vmem:[%s389 + $0x78] sm:$0xff]
        %v467 = vpack.c.bf16 %v452, %v451
        %v468 = vpack.c.bf16 %v454, %v453
        %v469 = vpack.c.bf16 %v456, %v455
        %v470 = vpack.c.bf16 %v458, %v457
        %v471 = vpack.c.bf16 %v460, %v459
        %v472 = vpack.c.bf16 %v462, %v461
        %v473 = vpack.c.bf16 %v464, %v463
        %v474 = vpack.c.bf16 %v466, %v465
        %v475 = vld [vmem:[#allocation5] sm:$0xff]
        %v476 = vld [vmem:[#allocation5 + $0x8] sm:$0xff]
        %v477 = vld [vmem:[#allocation5 + $0x10] sm:$0xff]
        %v478 = vld [vmem:[#allocation5 + $0x18] sm:$0xff]
        %v479 = vld [vmem:[#allocation5 + $0x20] sm:$0xff]
        %v480 = vld [vmem:[#allocation5 + $0x28] sm:$0xff]
        %v481 = vld [vmem:[#allocation5 + $0x30] sm:$0xff]
        %v482 = vld [vmem:[#allocation5 + $0x38] sm:$0xff]
        %v483 = vld [vmem:[#allocation5 + $0x40] sm:$0xff]
        %v484 = vld [vmem:[#allocation5 + $0x48] sm:$0xff]
        %v485 = vld [vmem:[#allocation5 + $0x50] sm:$0xff]
        %v486 = vld [vmem:[#allocation5 + $0x58] sm:$0xff]
        %v487 = vld [vmem:[#allocation5 + $0x60] sm:$0xff]
        %v488 = vld [vmem:[#allocation5 + $0x68] sm:$0xff]
        %v489 = vld [vmem:[#allocation5 + $0x70] sm:$0xff]
        %v490 = vld [vmem:[#allocation5 + $0x78] sm:$0xff]
        %v491 = vld [vmem:[#allocation5 + $0x80] sm:$0xff]
        %v492 = vld [vmem:[#allocation5 + $0x88] sm:$0xff]
        %v493 = vld [vmem:[#allocation5 + $0x90] sm:$0xff]
        %v494 = vld [vmem:[#allocation5 + $0x98] sm:$0xff]
        %v495 = vld [vmem:[#allocation5 + $0xa0] sm:$0xff]
        %v496 = vld [vmem:[#allocation5 + $0xa8] sm:$0xff]
        %v497 = vld [vmem:[#allocation5 + $0xb0] sm:$0xff]
        %v498 = vld [vmem:[#allocation5 + $0xb8] sm:$0xff]
        %v499 = vld [vmem:[#allocation5 + $0xc0] sm:$0xff]
        %v500 = vld [vmem:[#allocation5 + $0xc8] sm:$0xff]
        %v501 = vld [vmem:[#allocation5 + $0xd0] sm:$0xff]
        %v502 = vld [vmem:[#allocation5 + $0xd8] sm:$0xff]
        %v503 = vld [vmem:[#allocation5 + $0xe0] sm:$0xff]
        %v504 = vld [vmem:[#allocation5 + $0xe8] sm:$0xff]
        %v505 = vld [vmem:[#allocation5 + $0xf0] sm:$0xff]
        %v506 = vld [vmem:[#allocation5 + $0xf8] sm:$0xff]
        %v507 = vld [vmem:[%s2] sm:$0xf]
        %v509 = vlaneseq
        %v510 = vshrl.u32 %v509, 7
        %v511 = vsub.s32 0, %v510
        %v512 = vrot.slane %v507, %v511
        %v513 = vlaneseq
        %v514 = vshrl.u32 %v513, 7
        %v515 = vsub.s32 1, %v514
        %v516 = vrot.slane %v507, %v515
        %v517 = vlaneseq
        %v518 = vshrl.u32 %v517, 7
        %v519 = vsub.s32 2, %v518
        %v520 = vrot.slane %v507, %v519
        %v521 = vlaneseq
        %v522 = vshrl.u32 %v521, 7
        %v523 = vsub.s32 3, %v522
        %v524 = vrot.slane %v507, %v523
        %v561 = vunpack.c.l.b16 %v475
        %v562 = vunpack.c.h.b16 %v475
        %v563 = vunpack.c.l.b16 %v476
        %v564 = vunpack.c.h.b16 %v476
        %v565 = vunpack.c.l.b16 %v477
        %v566 = vunpack.c.h.b16 %v477
        %v567 = vunpack.c.l.b16 %v478
        %v568 = vunpack.c.h.b16 %v478
        %v569 = vunpack.c.l.b16 %v479
        %v570 = vunpack.c.h.b16 %v479
        %v571 = vunpack.c.l.b16 %v480
        %v572 = vunpack.c.h.b16 %v480
        %v573 = vunpack.c.l.b16 %v481
        %v574 = vunpack.c.h.b16 %v481
        %v575 = vunpack.c.l.b16 %v482
        %v576 = vunpack.c.h.b16 %v482
        %v577 = vunpack.c.l.b16 %v483
        %v578 = vunpack.c.h.b16 %v483
        %v579 = vunpack.c.l.b16 %v484
        %v580 = vunpack.c.h.b16 %v484
        %v581 = vunpack.c.l.b16 %v485
        %v582 = vunpack.c.h.b16 %v485
        %v583 = vunpack.c.l.b16 %v486
        %v584 = vunpack.c.h.b16 %v486
        %v585 = vunpack.c.l.b16 %v487
        %v586 = vunpack.c.h.b16 %v487
        %v587 = vunpack.c.l.b16 %v488
        %v588 = vunpack.c.h.b16 %v488
        %v589 = vunpack.c.l.b16 %v489
        %v590 = vunpack.c.h.b16 %v489
        %v591 = vunpack.c.l.b16 %v490
        %v592 = vunpack.c.h.b16 %v490
        %v593 = vunpack.c.l.b16 %v491
        %v594 = vunpack.c.h.b16 %v491
        %v595 = vunpack.c.l.b16 %v492
        %v596 = vunpack.c.h.b16 %v492
        %v597 = vunpack.c.l.b16 %v493
        %v598 = vunpack.c.h.b16 %v493
        %v599 = vunpack.c.l.b16 %v494
        %v600 = vunpack.c.h.b16 %v494
        %v601 = vunpack.c.l.b16 %v495
        %v602 = vunpack.c.h.b16 %v495
        %v603 = vunpack.c.l.b16 %v496
        %v604 = vunpack.c.h.b16 %v496
        %v605 = vunpack.c.l.b16 %v497
        %v606 = vunpack.c.h.b16 %v497
        %v607 = vunpack.c.l.b16 %v498
        %v608 = vunpack.c.h.b16 %v498
        %v609 = vunpack.c.l.b16 %v499
        %v610 = vunpack.c.h.b16 %v499
        %v611 = vunpack.c.l.b16 %v500
        %v612 = vunpack.c.h.b16 %v500
        %v613 = vunpack.c.l.b16 %v501
        %v614 = vunpack.c.h.b16 %v501
        %v615 = vunpack.c.l.b16 %v502
        %v616 = vunpack.c.h.b16 %v502
        %v617 = vunpack.c.l.b16 %v503
        %v618 = vunpack.c.h.b16 %v503
        %v619 = vunpack.c.l.b16 %v504
        %v620 = vunpack.c.h.b16 %v504
        %v621 = vunpack.c.l.b16 %v505
        %v622 = vunpack.c.h.b16 %v505
        %v623 = vunpack.c.l.b16 %v506
        %v624 = vunpack.c.h.b16 %v506
        %v625 = vpack.c.b16 %v565, %v561
        %v626 = vpack.c.b16 %v566, %v562
        %v627 = vpack.c.b16 %v567, %v563
        %v628 = vpack.c.b16 %v568, %v564
        %v629 = vpack.c.b16 %v573, %v569
        %v630 = vpack.c.b16 %v574, %v570
        %v631 = vpack.c.b16 %v575, %v571
        %v632 = vpack.c.b16 %v576, %v572
        %v633 = vpack.c.b16 %v581, %v577
        %v634 = vpack.c.b16 %v582, %v578
        %v635 = vpack.c.b16 %v583, %v579
        %v636 = vpack.c.b16 %v584, %v580
        %v637 = vpack.c.b16 %v589, %v585
        %v638 = vpack.c.b16 %v590, %v586
        %v639 = vpack.c.b16 %v591, %v587
        %v640 = vpack.c.b16 %v592, %v588
        %v641 = vpack.c.b16 %v597, %v593
        %v642 = vpack.c.b16 %v598, %v594
        %v643 = vpack.c.b16 %v599, %v595
        %v644 = vpack.c.b16 %v600, %v596
        %v645 = vpack.c.b16 %v605, %v601
        %v646 = vpack.c.b16 %v606, %v602
        %v647 = vpack.c.b16 %v607, %v603
        %v648 = vpack.c.b16 %v608, %v604
        %v649 = vpack.c.b16 %v613, %v609
        %v650 = vpack.c.b16 %v614, %v610
        %v651 = vpack.c.b16 %v615, %v611
        %v652 = vpack.c.b16 %v616, %v612
        %v653 = vpack.c.b16 %v621, %v617
        %v654 = vpack.c.b16 %v622, %v618
        %v655 = vpack.c.b16 %v623, %v619
        %v656 = vpack.c.b16 %v624, %v620
        %689 = vmatprep.subr.bf16.mxu0 %v626
        %690 = vmatpush1.bf16.msra.mxu0 %v625
        %691 = vmatprep.subr.bf16.mxu0 %v630
        %692 = vmatpush1.bf16.msra.mxu0 %v629
        %693 = vmatprep.subr.bf16.mxu0 %v634
        %694 = vmatpush1.bf16.msra.mxu0 %v633
        %695 = vmatprep.subr.bf16.mxu0 %v638
        %696 = vmatpush1.bf16.msra.mxu0 %v637
        %697 = vmatprep.subr.bf16.mxu0 %v642
        %698 = vmatpush1.bf16.msra.mxu0 %v641
        %699 = vmatprep.subr.bf16.mxu0 %v646
        %700 = vmatpush1.bf16.msra.mxu0 %v645
        %701 = vmatprep.subr.bf16.mxu0 %v650
        %702 = vmatpush1.bf16.msra.mxu0 %v649
        %703 = vmatprep.subr.bf16.mxu0 %v654
        %704 = vmatpush1.bf16.msra.mxu0 %v653
        %705 = vmatprep.subr.bf16.mxu0 0
        %706 = vmatpush1.bf16.msra.mxu0 0
        %707 = vmatprep.subr.bf16.mxu0 0
        %708 = vmatpush1.bf16.msra.mxu0 0
        %709 = vmatprep.subr.bf16.mxu0 0
        %710 = vmatpush1.bf16.msra.mxu0 0
        %711 = vmatprep.subr.bf16.mxu0 0
        %712 = vmatpush1.bf16.msra.mxu0 0
        %713 = vmatprep.subr.bf16.mxu0 0
        %714 = vmatpush1.bf16.msra.mxu0 0
        %715 = vmatprep.subr.bf16.mxu0 0
        %716 = vmatpush1.bf16.msra.mxu0 0
        %717 = vmatprep.subr.bf16.mxu0 0
        %718 = vmatpush1.bf16.msra.mxu0 0
        %719 = vmatprep.subr.bf16.mxu0 0
        %720 = vmatpush1.bf16.msra.mxu0 0
        %721 = vmatprep.mubr.bf16.mxu0 0
        %722 = vmatmul.mubr.bf16.gmra.mrb[0].mxu0 %v467
        %v723 = vpop.f32.mrb[0].mxu0
        %v724 = vadd.f32 %v512, %v723
        %v725 = vpop.f32.mrb[0].mxu0
        %v726 = vadd.f32 %v516, %v725
        %v727 = vpop.f32.mrb[0].mxu0
        %v728 = vadd.f32 %v512, %v727
        %v729 = vpop.f32.mrb[0].mxu0
        %v730 = vadd.f32 %v516, %v729
        %731 = vmatprep.mubr.bf16.mxu0 0
        %732 = vmatmul.mubr.bf16.gmra.mrb[0].mxu0 %v468
        %v733 = vpop.f32.mrb[0].mxu0
        %v734 = vadd.f32 %v512, %v733
        %v735 = vpop.f32.mrb[0].mxu0
        %v736 = vadd.f32 %v516, %v735
        %v737 = vpop.f32.mrb[0].mxu0
        %v738 = vadd.f32 %v512, %v737
        %v739 = vpop.f32.mrb[0].mxu0
        %v740 = vadd.f32 %v516, %v739
        %741 = vmatprep.mubr.bf16.mxu0 0
        %742 = vmatmul.mubr.bf16.gmra.mrb[0].mxu0 %v469
        %v743 = vpop.f32.mrb[0].mxu0
        %v744 = vadd.f32 %v512, %v743
        %v745 = vpop.f32.mrb[0].mxu0
        %v746 = vadd.f32 %v516, %v745
        %v747 = vpop.f32.mrb[0].mxu0
        %v748 = vadd.f32 %v512, %v747
        %v749 = vpop.f32.mrb[0].mxu0
        %v750 = vadd.f32 %v516, %v749
        %751 = vmatprep.mubr.bf16.mxu0 0
        %752 = vmatmul.mubr.bf16.gmra.mrb[0].mxu0 %v470
        %v753 = vpop.f32.mrb[0].mxu0
        %v754 = vadd.f32 %v512, %v753
        %v755 = vpop.f32.mrb[0].mxu0
        %v756 = vadd.f32 %v516, %v755
        %v757 = vpop.f32.mrb[0].mxu0
        %v758 = vadd.f32 %v512, %v757
        %v759 = vpop.f32.mrb[0].mxu0
        %v760 = vadd.f32 %v516, %v759
        %761 = vmatprep.mubr.bf16.mxu0 0
        %762 = vmatmul.mubr.bf16.gmra.mrb[0].mxu0 %v471
        %v763 = vpop.f32.mrb[0].mxu0
        %v764 = vadd.f32 %v512, %v763
        %v765 = vpop.f32.mrb[0].mxu0
        %v766 = vadd.f32 %v516, %v765
        %v767 = vpop.f32.mrb[0].mxu0
        %v768 = vadd.f32 %v512, %v767
        %v769 = vpop.f32.mrb[0].mxu0
        %v770 = vadd.f32 %v516, %v769
        %771 = vmatprep.mubr.bf16.mxu0 0
        %772 = vmatmul.mubr.bf16.gmra.mrb[0].mxu0 %v472
        %v773 = vpop.f32.mrb[0].mxu0
        %v774 = vadd.f32 %v512, %v773
        %v775 = vpop.f32.mrb[0].mxu0
        %v776 = vadd.f32 %v516, %v775
        %v777 = vpop.f32.mrb[0].mxu0
        %v778 = vadd.f32 %v512, %v777
        %v779 = vpop.f32.mrb[0].mxu0
        %v780 = vadd.f32 %v516, %v779
        %781 = vmatprep.mubr.bf16.mxu0 0
        %782 = vmatmul.mubr.bf16.gmra.mrb[0].mxu0 %v473
        %v783 = vpop.f32.mrb[0].mxu0
        %v784 = vadd.f32 %v512, %v783
        %v785 = vpop.f32.mrb[0].mxu0
        %v786 = vadd.f32 %v516, %v785
        %v787 = vpop.f32.mrb[0].mxu0
        %v788 = vadd.f32 %v512, %v787
        %v789 = vpop.f32.mrb[0].mxu0
        %v790 = vadd.f32 %v516, %v789
        %791 = vmatprep.mubr.bf16.mxu0 0
        %792 = vmatmul.mubr.bf16.gmra.mrb[0].mxu0 %v474
        %v793 = vpop.f32.mrb[0].mxu0
        %v794 = vadd.f32 %v512, %v793
        %v795 = vpop.f32.mrb[0].mxu0
        %v796 = vadd.f32 %v516, %v795
        %v797 = vpop.f32.mrb[0].mxu0
        %v798 = vadd.f32 %v512, %v797
        %v799 = vpop.f32.mrb[0].mxu0
        %v800 = vadd.f32 %v516, %v799
        %801 = vdwg.mxu0
        %802 = vmatprep.subr.bf16.mxu0 %v628
        %803 = vmatpush1.bf16.msra.mxu0 %v627
        %804 = vmatprep.subr.bf16.mxu0 %v632
        %805 = vmatpush1.bf16.msra.mxu0 %v631
        %806 = vmatprep.subr.bf16.mxu0 %v636
        %807 = vmatpush1.bf16.msra.mxu0 %v635
        %808 = vmatprep.subr.bf16.mxu0 %v640
        %809 = vmatpush1.bf16.msra.mxu0 %v639
        %810 = vmatprep.subr.bf16.mxu0 %v644
        %811 = vmatpush1.bf16.msra.mxu0 %v643
        %812 = vmatprep.subr.bf16.mxu0 %v648
        %813 = vmatpush1.bf16.msra.mxu0 %v647
        %814 = vmatprep.subr.bf16.mxu0 %v652
        %815 = vmatpush1.bf16.msra.mxu0 %v651
        %816 = vmatprep.subr.bf16.mxu0 %v656
        %817 = vmatpush1.bf16.msra.mxu0 %v655
        %818 = vmatprep.subr.bf16.mxu0 0
        %819 = vmatpush1.bf16.msra.mxu0 0
        %820 = vmatprep.subr.bf16.mxu0 0
        %821 = vmatpush1.bf16.msra.mxu0 0
        %822 = vmatprep.subr.bf16.mxu0 0
        %823 = vmatpush1.bf16.msra.mxu0 0
        %824 = vmatprep.subr.bf16.mxu0 0
        %825 = vmatpush1.bf16.msra.mxu0 0
        %826 = vmatprep.subr.bf16.mxu0 0
        %827 = vmatpush1.bf16.msra.mxu0 0
        %828 = vmatprep.subr.bf16.mxu0 0
        %829 = vmatpush1.bf16.msra.mxu0 0
        %830 = vmatprep.subr.bf16.mxu0 0
        %831 = vmatpush1.bf16.msra.mxu0 0
        %832 = vmatprep.subr.bf16.mxu0 0
        %833 = vmatpush1.bf16.msra.mxu0 0
        %834 = vmatprep.mubr.bf16.mxu0 0
        %835 = vmatmul.mubr.bf16.gmra.mrb[0].mxu0 %v467
        %v836 = vpop.f32.mrb[0].mxu0
        %v837 = vadd.f32 %v520, %v836
        %v838 = vpop.f32.mrb[0].mxu0
        %v839 = vadd.f32 %v524, %v838
        %v840 = vpop.f32.mrb[0].mxu0
        %v841 = vadd.f32 %v520, %v840
        %v842 = vpop.f32.mrb[0].mxu0
        %v843 = vadd.f32 %v524, %v842
        %844 = vmatprep.mubr.bf16.mxu0 0
        %845 = vmatmul.mubr.bf16.gmra.mrb[0].mxu0 %v468
        %v846 = vpop.f32.mrb[0].mxu0
        %v847 = vadd.f32 %v520, %v846
        %v848 = vpop.f32.mrb[0].mxu0
        %v849 = vadd.f32 %v524, %v848
        %v850 = vpop.f32.mrb[0].mxu0
        %v851 = vadd.f32 %v520, %v850
        %v852 = vpop.f32.mrb[0].mxu0
        %v853 = vadd.f32 %v524, %v852
        %854 = vmatprep.mubr.bf16.mxu0 0
        %855 = vmatmul.mubr.bf16.gmra.mrb[0].mxu0 %v469
        %v856 = vpop.f32.mrb[0].mxu0
        %v857 = vadd.f32 %v520, %v856
        %v858 = vpop.f32.mrb[0].mxu0
        %v859 = vadd.f32 %v524, %v858
        %v860 = vpop.f32.mrb[0].mxu0
        %v861 = vadd.f32 %v520, %v860
        %v862 = vpop.f32.mrb[0].mxu0
        %v863 = vadd.f32 %v524, %v862
        %864 = vmatprep.mubr.bf16.mxu0 0
        %865 = vmatmul.mubr.bf16.gmra.mrb[0].mxu0 %v470
        %v866 = vpop.f32.mrb[0].mxu0
        %v867 = vadd.f32 %v520, %v866
        %v868 = vpop.f32.mrb[0].mxu0
        %v869 = vadd.f32 %v524, %v868
        %v870 = vpop.f32.mrb[0].mxu0
        %v871 = vadd.f32 %v520, %v870
        %v872 = vpop.f32.mrb[0].mxu0
        %v873 = vadd.f32 %v524, %v872
        %874 = vmatprep.mubr.bf16.mxu0 0
        %875 = vmatmul.mubr.bf16.gmra.mrb[0].mxu0 %v471
        %v876 = vpop.f32.mrb[0].mxu0
        %v877 = vadd.f32 %v520, %v876
        %v878 = vpop.f32.mrb[0].mxu0
        %v879 = vadd.f32 %v524, %v878
        %v880 = vpop.f32.mrb[0].mxu0
        %v881 = vadd.f32 %v520, %v880
        %v882 = vpop.f32.mrb[0].mxu0
        %v883 = vadd.f32 %v524, %v882
        %884 = vmatprep.mubr.bf16.mxu0 0
        %885 = vmatmul.mubr.bf16.gmra.mrb[0].mxu0 %v472
        %v886 = vpop.f32.mrb[0].mxu0
        %v887 = vadd.f32 %v520, %v886
        %v888 = vpop.f32.mrb[0].mxu0
        %v889 = vadd.f32 %v524, %v888
        %v890 = vpop.f32.mrb[0].mxu0
        %v891 = vadd.f32 %v520, %v890
        %v892 = vpop.f32.mrb[0].mxu0
        %v893 = vadd.f32 %v524, %v892
        %894 = vmatprep.mubr.bf16.mxu0 0
        %895 = vmatmul.mubr.bf16.gmra.mrb[0].mxu0 %v473
        %v896 = vpop.f32.mrb[0].mxu0
        %v897 = vadd.f32 %v520, %v896
        %v898 = vpop.f32.mrb[0].mxu0
        %v899 = vadd.f32 %v524, %v898
        %v900 = vpop.f32.mrb[0].mxu0
        %v901 = vadd.f32 %v520, %v900
        %v902 = vpop.f32.mrb[0].mxu0
        %v903 = vadd.f32 %v524, %v902
        %904 = vmatprep.mubr.bf16.mxu0 0
        %905 = vmatmul.mubr.bf16.gmra.mrb[0].mxu0 %v474
        %v906 = vpop.f32.mrb[0].mxu0
        %v907 = vadd.f32 %v520, %v906
        %v908 = vpop.f32.mrb[0].mxu0
        %v909 = vadd.f32 %v524, %v908
        %v910 = vpop.f32.mrb[0].mxu0
        %v911 = vadd.f32 %v520, %v910
        %v912 = vpop.f32.mrb[0].mxu0
        %v913 = vadd.f32 %v524, %v912
        %914 = vdwg.mxu0
        %v915 = vpack.c.bf16 %v728, %v724
        %v916 = vpack.c.bf16 %v730, %v726
        %v917 = vpack.c.bf16 %v738, %v734
        %v918 = vpack.c.bf16 %v740, %v736
        %v919 = vpack.c.bf16 %v748, %v744
        %v920 = vpack.c.bf16 %v750, %v746
        %v921 = vpack.c.bf16 %v758, %v754
        %v922 = vpack.c.bf16 %v760, %v756
        %v923 = vpack.c.bf16 %v768, %v764
        %v924 = vpack.c.bf16 %v770, %v766
        %v925 = vpack.c.bf16 %v778, %v774
        %v926 = vpack.c.bf16 %v780, %v776
        %v927 = vpack.c.bf16 %v788, %v784
        %v928 = vpack.c.bf16 %v790, %v786
        %v929 = vpack.c.bf16 %v798, %v794
        %v930 = vpack.c.bf16 %v800, %v796
        %v947 = vunpack.c.l.b16 %v915
        %v948 = vunpack.c.l.b16 %v916
        %v949 = vunpack.c.h.b16 %v915
        %v950 = vunpack.c.h.b16 %v916
        %v951 = vunpack.c.l.b16 %v917
        %v952 = vunpack.c.l.b16 %v918
        %v953 = vunpack.c.h.b16 %v917
        %v954 = vunpack.c.h.b16 %v918
        %v955 = vunpack.c.l.b16 %v919
        %v956 = vunpack.c.l.b16 %v920
        %v957 = vunpack.c.h.b16 %v919
        %v958 = vunpack.c.h.b16 %v920
        %v959 = vunpack.c.l.b16 %v921
        %v960 = vunpack.c.l.b16 %v922
        %v961 = vunpack.c.h.b16 %v921
        %v962 = vunpack.c.h.b16 %v922
        %v963 = vunpack.c.l.b16 %v923
        %v964 = vunpack.c.l.b16 %v924
        %v965 = vunpack.c.h.b16 %v923
        %v966 = vunpack.c.h.b16 %v924
        %v967 = vunpack.c.l.b16 %v925
        %v968 = vunpack.c.l.b16 %v926
        %v969 = vunpack.c.h.b16 %v925
        %v970 = vunpack.c.h.b16 %v926
        %v971 = vunpack.c.l.b16 %v927
        %v972 = vunpack.c.l.b16 %v928
        %v973 = vunpack.c.h.b16 %v927
        %v974 = vunpack.c.h.b16 %v928
        %v975 = vunpack.c.l.b16 %v929
        %v976 = vunpack.c.l.b16 %v930
        %v977 = vunpack.c.h.b16 %v929
        %v978 = vunpack.c.h.b16 %v930
        %v979 = vpack.c.b16 %v948, %v947
        %v980 = vpack.c.b16 %v950, %v949
        %v981 = vpack.c.b16 %v952, %v951
        %v982 = vpack.c.b16 %v954, %v953
        %v983 = vpack.c.b16 %v956, %v955
        %v984 = vpack.c.b16 %v958, %v957
        %v985 = vpack.c.b16 %v960, %v959
        %v986 = vpack.c.b16 %v962, %v961
        %v987 = vpack.c.b16 %v964, %v963
        %v988 = vpack.c.b16 %v966, %v965
        %v989 = vpack.c.b16 %v968, %v967
        %v990 = vpack.c.b16 %v970, %v969
        %v991 = vpack.c.b16 %v972, %v971
        %v992 = vpack.c.b16 %v974, %v973
        %v993 = vpack.c.b16 %v976, %v975
        %v994 = vpack.c.b16 %v978, %v977
        %1011 = vst [vmem:[%s439] sm:$0xff] %v979
        %1012 = vst [vmem:[%s439 + $0x10] sm:$0xff] %v980
        %1013 = vst [vmem:[%s439 + $0x20] sm:$0xff] %v981
        %1014 = vst [vmem:[%s439 + $0x30] sm:$0xff] %v982
        %1015 = vst [vmem:[%s439 + $0x40] sm:$0xff] %v983
        %1016 = vst [vmem:[%s439 + $0x50] sm:$0xff] %v984
        %1017 = vst [vmem:[%s439 + $0x60] sm:$0xff] %v985
        %1018 = vst [vmem:[%s439 + $0x70] sm:$0xff] %v986
        %1019 = vst [vmem:[%s439 + $0x80] sm:$0xff] %v987
        %1020 = vst [vmem:[%s439 + $0x90] sm:$0xff] %v988
        %1021 = vst [vmem:[%s439 + $0xa0] sm:$0xff] %v989
        %1022 = vst [vmem:[%s439 + $0xb0] sm:$0xff] %v990
        %1023 = vst [vmem:[%s439 + $0xc0] sm:$0xff] %v991
        %1024 = vst [vmem:[%s439 + $0xd0] sm:$0xff] %v992
        %1025 = vst [vmem:[%s439 + $0xe0] sm:$0xff] %v993
        %1026 = vst [vmem:[%s439 + $0xf0] sm:$0xff] %v994
        %v1027 = vmax.f32 %v837, 0.0
        %v1028 = vmax.f32 %v839, 0.0
        %v1029 = vmax.f32 %v841, 0.0
        %v1030 = vmax.f32 %v843, 0.0
        %v1031 = vmax.f32 %v847, 0.0
        %v1032 = vmax.f32 %v849, 0.0
        %v1033 = vmax.f32 %v851, 0.0
        %v1034 = vmax.f32 %v853, 0.0
        %v1035 = vmax.f32 %v857, 0.0
        %v1036 = vmax.f32 %v859, 0.0
        %v1037 = vmax.f32 %v861, 0.0
        %v1038 = vmax.f32 %v863, 0.0
        %v1039 = vmax.f32 %v867, 0.0
        %v1040 = vmax.f32 %v869, 0.0
        %v1041 = vmax.f32 %v871, 0.0
        %v1042 = vmax.f32 %v873, 0.0
        %v1043 = vmax.f32 %v877, 0.0
        %v1044 = vmax.f32 %v879, 0.0
        %v1045 = vmax.f32 %v881, 0.0
        %v1046 = vmax.f32 %v883, 0.0
        %v1047 = vmax.f32 %v887, 0.0
        %v1048 = vmax.f32 %v889, 0.0
        %v1049 = vmax.f32 %v891, 0.0
        %v1050 = vmax.f32 %v893, 0.0
        %v1051 = vmax.f32 %v897, 0.0
        %v1052 = vmax.f32 %v899, 0.0
        %v1053 = vmax.f32 %v901, 0.0
        %v1054 = vmax.f32 %v903, 0.0
        %v1055 = vmax.f32 %v907, 0.0
        %v1056 = vmax.f32 %v909, 0.0
        %v1057 = vmax.f32 %v911, 0.0
        %v1058 = vmax.f32 %v913, 0.0
        %vm1059 = vcmp.ne.f32.partialorder %v837, %v837
        %vm1060 = vcmp.ne.f32.partialorder %v839, %v839
        %vm1061 = vcmp.ne.f32.partialorder %v841, %v841
        %vm1062 = vcmp.ne.f32.partialorder %v843, %v843
        %vm1063 = vcmp.ne.f32.partialorder %v847, %v847
        %vm1064 = vcmp.ne.f32.partialorder %v849, %v849
        %vm1065 = vcmp.ne.f32.partialorder %v851, %v851
        %vm1066 = vcmp.ne.f32.partialorder %v853, %v853
        %vm1067 = vcmp.ne.f32.partialorder %v857, %v857
        %vm1068 = vcmp.ne.f32.partialorder %v859, %v859
        %vm1069 = vcmp.ne.f32.partialorder %v861, %v861
        %vm1070 = vcmp.ne.f32.partialorder %v863, %v863
        %vm1071 = vcmp.ne.f32.partialorder %v867, %v867
        %vm1072 = vcmp.ne.f32.partialorder %v869, %v869
        %vm1073 = vcmp.ne.f32.partialorder %v871, %v871
        %vm1074 = vcmp.ne.f32.partialorder %v873, %v873
        %vm1075 = vcmp.ne.f32.partialorder %v877, %v877
        %vm1076 = vcmp.ne.f32.partialorder %v879, %v879
        %vm1077 = vcmp.ne.f32.partialorder %v881, %v881
        %vm1078 = vcmp.ne.f32.partialorder %v883, %v883
        %vm1079 = vcmp.ne.f32.partialorder %v887, %v887
        %vm1080 = vcmp.ne.f32.partialorder %v889, %v889
        %vm1081 = vcmp.ne.f32.partialorder %v891, %v891
        %vm1082 = vcmp.ne.f32.partialorder %v893, %v893
        %vm1083 = vcmp.ne.f32.partialorder %v897, %v897
        %vm1084 = vcmp.ne.f32.partialorder %v899, %v899
        %vm1085 = vcmp.ne.f32.partialorder %v901, %v901
        %vm1086 = vcmp.ne.f32.partialorder %v903, %v903
        %vm1087 = vcmp.ne.f32.partialorder %v907, %v907
        %vm1088 = vcmp.ne.f32.partialorder %v909, %v909
        %vm1089 = vcmp.ne.f32.partialorder %v911, %v911
        %vm1090 = vcmp.ne.f32.partialorder %v913, %v913
        %v1091 = vadd.f32 %v837, 0.0
        %v1092 = vadd.f32 %v839, 0.0
        %v1093 = vadd.f32 %v841, 0.0
        %v1094 = vadd.f32 %v843, 0.0
        %v1095 = vadd.f32 %v847, 0.0
        %v1096 = vadd.f32 %v849, 0.0
        %v1097 = vadd.f32 %v851, 0.0
        %v1098 = vadd.f32 %v853, 0.0
        %v1099 = vadd.f32 %v857, 0.0
        %v1100 = vadd.f32 %v859, 0.0
        %v1101 = vadd.f32 %v861, 0.0
        %v1102 = vadd.f32 %v863, 0.0
        %v1103 = vadd.f32 %v867, 0.0
        %v1104 = vadd.f32 %v869, 0.0
        %v1105 = vadd.f32 %v871, 0.0
        %v1106 = vadd.f32 %v873, 0.0
        %v1107 = vadd.f32 %v877, 0.0
        %v1108 = vadd.f32 %v879, 0.0
        %v1109 = vadd.f32 %v881, 0.0
        %v1110 = vadd.f32 %v883, 0.0
        %v1111 = vadd.f32 %v887, 0.0
        %v1112 = vadd.f32 %v889, 0.0
        %v1113 = vadd.f32 %v891, 0.0
        %v1114 = vadd.f32 %v893, 0.0
        %v1115 = vadd.f32 %v897, 0.0
        %v1116 = vadd.f32 %v899, 0.0
        %v1117 = vadd.f32 %v901, 0.0
        %v1118 = vadd.f32 %v903, 0.0
        %v1119 = vadd.f32 %v907, 0.0
        %v1120 = vadd.f32 %v909, 0.0
        %v1121 = vadd.f32 %v911, 0.0
        %v1122 = vadd.f32 %v913, 0.0
        %v1123 = vand.u32 2147483647, %v837
        %v1124 = vand.u32 2147483647, %v839
        %v1125 = vand.u32 2147483647, %v841
        %v1126 = vand.u32 2147483647, %v843
        %v1127 = vand.u32 2147483647, %v847
        %v1128 = vand.u32 2147483647, %v849
        %v1129 = vand.u32 2147483647, %v851
        %v1130 = vand.u32 2147483647, %v853
        %v1131 = vand.u32 2147483647, %v857
        %v1132 = vand.u32 2147483647, %v859
        %v1133 = vand.u32 2147483647, %v861
        %v1134 = vand.u32 2147483647, %v863
        %v1135 = vand.u32 2147483647, %v867
        %v1136 = vand.u32 2147483647, %v869
        %v1137 = vand.u32 2147483647, %v871
        %v1138 = vand.u32 2147483647, %v873
        %v1139 = vand.u32 2147483647, %v877
        %v1140 = vand.u32 2147483647, %v879
        %v1141 = vand.u32 2147483647, %v881
        %v1142 = vand.u32 2147483647, %v883
        %v1143 = vand.u32 2147483647, %v887
        %v1144 = vand.u32 2147483647, %v889
        %v1145 = vand.u32 2147483647, %v891
        %v1146 = vand.u32 2147483647, %v893
        %v1147 = vand.u32 2147483647, %v897
        %v1148 = vand.u32 2147483647, %v899
        %v1149 = vand.u32 2147483647, %v901
        %v1150 = vand.u32 2147483647, %v903
        %v1151 = vand.u32 2147483647, %v907
        %v1152 = vand.u32 2147483647, %v909
        %v1153 = vand.u32 2147483647, %v911
        %v1154 = vand.u32 2147483647, %v913
        %v1155 = vsub.f32 0.0, %v1123
        %v1156 = vsub.f32 0.0, %v1124
        %v1157 = vsub.f32 0.0, %v1125
        %v1158 = vsub.f32 0.0, %v1126
        %v1159 = vsub.f32 0.0, %v1127
        %v1160 = vsub.f32 0.0, %v1128
        %v1161 = vsub.f32 0.0, %v1129
        %v1162 = vsub.f32 0.0, %v1130
        %v1163 = vsub.f32 0.0, %v1131
        %v1164 = vsub.f32 0.0, %v1132
        %v1165 = vsub.f32 0.0, %v1133
        %v1166 = vsub.f32 0.0, %v1134
        %v1167 = vsub.f32 0.0, %v1135
        %v1168 = vsub.f32 0.0, %v1136
        %v1169 = vsub.f32 0.0, %v1137
        %v1170 = vsub.f32 0.0, %v1138
        %v1171 = vsub.f32 0.0, %v1139
        %v1172 = vsub.f32 0.0, %v1140
        %v1173 = vsub.f32 0.0, %v1141
        %v1174 = vsub.f32 0.0, %v1142
        %v1175 = vsub.f32 0.0, %v1143
        %v1176 = vsub.f32 0.0, %v1144
        %v1177 = vsub.f32 0.0, %v1145
        %v1178 = vsub.f32 0.0, %v1146
        %v1179 = vsub.f32 0.0, %v1147
        %v1180 = vsub.f32 0.0, %v1148
        %v1181 = vsub.f32 0.0, %v1149
        %v1182 = vsub.f32 0.0, %v1150
        %v1183 = vsub.f32 0.0, %v1151
        %v1184 = vsub.f32 0.0, %v1152
        %v1185 = vsub.f32 0.0, %v1153
        %v1186 = vsub.f32 0.0, %v1154
        %v1187 = vmul.f32 %v1155, 1.442695
        %v1188 = vpow.pop %v1187
        %v1189 = vmul.f32 %v1156, 1.442695
        %v1190 = vpow.pop %v1189
        %v1191 = vmul.f32 %v1157, 1.442695
        %v1192 = vpow.pop %v1191
        %v1193 = vmul.f32 %v1158, 1.442695
        %v1194 = vpow.pop %v1193
        %v1195 = vmul.f32 %v1159, 1.442695
        %v1196 = vpow.pop %v1195
        %v1197 = vmul.f32 %v1160, 1.442695
        %v1198 = vpow.pop %v1197
        %v1199 = vmul.f32 %v1161, 1.442695
        %v1200 = vpow.pop %v1199
        %v1201 = vmul.f32 %v1162, 1.442695
        %v1202 = vpow.pop %v1201
        %v1203 = vmul.f32 %v1163, 1.442695
        %v1204 = vpow.pop %v1203
        %v1205 = vmul.f32 %v1164, 1.442695
        %v1206 = vpow.pop %v1205
        %v1207 = vmul.f32 %v1165, 1.442695
        %v1208 = vpow.pop %v1207
        %v1209 = vmul.f32 %v1166, 1.442695
        %v1210 = vpow.pop %v1209
        %v1211 = vmul.f32 %v1167, 1.442695
        %v1212 = vpow.pop %v1211
        %v1213 = vmul.f32 %v1168, 1.442695
        %v1214 = vpow.pop %v1213
        %v1215 = vmul.f32 %v1169, 1.442695
        %v1216 = vpow.pop %v1215
        %v1217 = vmul.f32 %v1170, 1.442695
        %v1218 = vpow.pop %v1217
        %v1219 = vmul.f32 %v1171, 1.442695
        %v1220 = vpow.pop %v1219
        %v1221 = vmul.f32 %v1172, 1.442695
        %v1222 = vpow.pop %v1221
        %v1223 = vmul.f32 %v1173, 1.442695
        %v1224 = vpow.pop %v1223
        %v1225 = vmul.f32 %v1174, 1.442695
        %v1226 = vpow.pop %v1225
        %v1227 = vmul.f32 %v1175, 1.442695
        %v1228 = vpow.pop %v1227
        %v1229 = vmul.f32 %v1176, 1.442695
        %v1230 = vpow.pop %v1229
        %v1231 = vmul.f32 %v1177, 1.442695
        %v1232 = vpow.pop %v1231
        %v1233 = vmul.f32 %v1178, 1.442695
        %v1234 = vpow.pop %v1233
        %v1235 = vmul.f32 %v1179, 1.442695
        %v1236 = vpow.pop %v1235
        %v1237 = vmul.f32 %v1180, 1.442695
        %v1238 = vpow.pop %v1237
        %v1239 = vmul.f32 %v1181, 1.442695
        %v1240 = vpow.pop %v1239
        %v1241 = vmul.f32 %v1182, 1.442695
        %v1242 = vpow.pop %v1241
        %v1243 = vmul.f32 %v1183, 1.442695
        %v1244 = vpow.pop %v1243
        %v1245 = vmul.f32 %v1184, 1.442695
        %v1246 = vpow.pop %v1245
        %v1247 = vmul.f32 %v1185, 1.442695
        %v1248 = vpow.pop %v1247
        %v1249 = vmul.f32 %v1186, 1.442695
        %v1250 = vpow.pop %v1249
        %v1251 = vadd.f32 %v1188, 1.0
        %v1252 = vlog2.pop %v1251
        %v1253 = vmul.f32 %v1252, 0.6931472
        %v1254 = vmul.f32 -0.5, %v1188
        %v1255 = vadd.f32 %v1254, 1.0
        %v1256 = vmul.f32 %v1255, %v1188
        %v1257 = vand.u32 2147483647, %v1188
        %vm1258 = vcmp.lt.f32.partialorder %v1257, 0.0004427343
        %v1259 = vsel %vm1258, %v1256, %v1253
        %v1260 = vadd.f32 %v1190, 1.0
        %v1261 = vlog2.pop %v1260
        %v1262 = vmul.f32 %v1261, 0.6931472
        %v1263 = vmul.f32 -0.5, %v1190
        %v1264 = vadd.f32 %v1263, 1.0
        %v1265 = vmul.f32 %v1264, %v1190
        %v1266 = vand.u32 2147483647, %v1190
        %vm1267 = vcmp.lt.f32.partialorder %v1266, 0.0004427343
        %v1268 = vsel %vm1267, %v1265, %v1262
        %v1269 = vadd.f32 %v1192, 1.0
        %v1270 = vlog2.pop %v1269
        %v1271 = vmul.f32 %v1270, 0.6931472
        %v1272 = vmul.f32 -0.5, %v1192
        %v1273 = vadd.f32 %v1272, 1.0
        %v1274 = vmul.f32 %v1273, %v1192
        %v1275 = vand.u32 2147483647, %v1192
        %vm1276 = vcmp.lt.f32.partialorder %v1275, 0.0004427343
        %v1277 = vsel %vm1276, %v1274, %v1271
        %v1278 = vadd.f32 %v1194, 1.0
        %v1279 = vlog2.pop %v1278
        %v1280 = vmul.f32 %v1279, 0.6931472
        %v1281 = vmul.f32 -0.5, %v1194
        %v1282 = vadd.f32 %v1281, 1.0
        %v1283 = vmul.f32 %v1282, %v1194
        %v1284 = vand.u32 2147483647, %v1194
        %vm1285 = vcmp.lt.f32.partialorder %v1284, 0.0004427343
        %v1286 = vsel %vm1285, %v1283, %v1280
        %v1287 = vadd.f32 %v1196, 1.0
        %v1288 = vlog2.pop %v1287
        %v1289 = vmul.f32 %v1288, 0.6931472
        %v1290 = vmul.f32 -0.5, %v1196
        %v1291 = vadd.f32 %v1290, 1.0
        %v1292 = vmul.f32 %v1291, %v1196
        %v1293 = vand.u32 2147483647, %v1196
        %vm1294 = vcmp.lt.f32.partialorder %v1293, 0.0004427343
        %v1295 = vsel %vm1294, %v1292, %v1289
        %v1296 = vadd.f32 %v1198, 1.0
        %v1297 = vlog2.pop %v1296
        %v1298 = vmul.f32 %v1297, 0.6931472
        %v1299 = vmul.f32 -0.5, %v1198
        %v1300 = vadd.f32 %v1299, 1.0
        %v1301 = vmul.f32 %v1300, %v1198
        %v1302 = vand.u32 2147483647, %v1198
        %vm1303 = vcmp.lt.f32.partialorder %v1302, 0.0004427343
        %v1304 = vsel %vm1303, %v1301, %v1298
        %v1305 = vadd.f32 %v1200, 1.0
        %v1306 = vlog2.pop %v1305
        %v1307 = vmul.f32 %v1306, 0.6931472
        %v1308 = vmul.f32 -0.5, %v1200
        %v1309 = vadd.f32 %v1308, 1.0
        %v1310 = vmul.f32 %v1309, %v1200
        %v1311 = vand.u32 2147483647, %v1200
        %vm1312 = vcmp.lt.f32.partialorder %v1311, 0.0004427343
        %v1313 = vsel %vm1312, %v1310, %v1307
        %v1314 = vadd.f32 %v1202, 1.0
        %v1315 = vlog2.pop %v1314
        %v1316 = vmul.f32 %v1315, 0.6931472
        %v1317 = vmul.f32 -0.5, %v1202
        %v1318 = vadd.f32 %v1317, 1.0
        %v1319 = vmul.f32 %v1318, %v1202
        %v1320 = vand.u32 2147483647, %v1202
        %vm1321 = vcmp.lt.f32.partialorder %v1320, 0.0004427343
        %v1322 = vsel %vm1321, %v1319, %v1316
        %v1323 = vadd.f32 %v1204, 1.0
        %v1324 = vlog2.pop %v1323
        %v1325 = vmul.f32 %v1324, 0.6931472
        %v1326 = vmul.f32 -0.5, %v1204
        %v1327 = vadd.f32 %v1326, 1.0
        %v1328 = vmul.f32 %v1327, %v1204
        %v1329 = vand.u32 2147483647, %v1204
        %vm1330 = vcmp.lt.f32.partialorder %v1329, 0.0004427343
        %v1331 = vsel %vm1330, %v1328, %v1325
        %v1332 = vadd.f32 %v1206, 1.0
        %v1333 = vlog2.pop %v1332
        %v1334 = vmul.f32 %v1333, 0.6931472
        %v1335 = vmul.f32 -0.5, %v1206
        %v1336 = vadd.f32 %v1335, 1.0
        %v1337 = vmul.f32 %v1336, %v1206
        %v1338 = vand.u32 2147483647, %v1206
        %vm1339 = vcmp.lt.f32.partialorder %v1338, 0.0004427343
        %v1340 = vsel %vm1339, %v1337, %v1334
        %v1341 = vadd.f32 %v1208, 1.0
        %v1342 = vlog2.pop %v1341
        %v1343 = vmul.f32 %v1342, 0.6931472
        %v1344 = vmul.f32 -0.5, %v1208
        %v1345 = vadd.f32 %v1344, 1.0
        %v1346 = vmul.f32 %v1345, %v1208
        %v1347 = vand.u32 2147483647, %v1208
        %vm1348 = vcmp.lt.f32.partialorder %v1347, 0.0004427343
        %v1349 = vsel %vm1348, %v1346, %v1343
        %v1350 = vadd.f32 %v1210, 1.0
        %v1351 = vlog2.pop %v1350
        %v1352 = vmul.f32 %v1351, 0.6931472
        %v1353 = vmul.f32 -0.5, %v1210
        %v1354 = vadd.f32 %v1353, 1.0
        %v1355 = vmul.f32 %v1354, %v1210
        %v1356 = vand.u32 2147483647, %v1210
        %vm1357 = vcmp.lt.f32.partialorder %v1356, 0.0004427343
        %v1358 = vsel %vm1357, %v1355, %v1352
        %v1359 = vadd.f32 %v1212, 1.0
        %v1360 = vlog2.pop %v1359
        %v1361 = vmul.f32 %v1360, 0.6931472
        %v1362 = vmul.f32 -0.5, %v1212
        %v1363 = vadd.f32 %v1362, 1.0
        %v1364 = vmul.f32 %v1363, %v1212
        %v1365 = vand.u32 2147483647, %v1212
        %vm1366 = vcmp.lt.f32.partialorder %v1365, 0.0004427343
        %v1367 = vsel %vm1366, %v1364, %v1361
        %v1368 = vadd.f32 %v1214, 1.0
        %v1369 = vlog2.pop %v1368
        %v1370 = vmul.f32 %v1369, 0.6931472
        %v1371 = vmul.f32 -0.5, %v1214
        %v1372 = vadd.f32 %v1371, 1.0
        %v1373 = vmul.f32 %v1372, %v1214
        %v1374 = vand.u32 2147483647, %v1214
        %vm1375 = vcmp.lt.f32.partialorder %v1374, 0.0004427343
        %v1376 = vsel %vm1375, %v1373, %v1370
        %v1377 = vadd.f32 %v1216, 1.0
        %v1378 = vlog2.pop %v1377
        %v1379 = vmul.f32 %v1378, 0.6931472
        %v1380 = vmul.f32 -0.5, %v1216
        %v1381 = vadd.f32 %v1380, 1.0
        %v1382 = vmul.f32 %v1381, %v1216
        %v1383 = vand.u32 2147483647, %v1216
        %vm1384 = vcmp.lt.f32.partialorder %v1383, 0.0004427343
        %v1385 = vsel %vm1384, %v1382, %v1379
        %v1386 = vadd.f32 %v1218, 1.0
        %v1387 = vlog2.pop %v1386
        %v1388 = vmul.f32 %v1387, 0.6931472
        %v1389 = vmul.f32 -0.5, %v1218
        %v1390 = vadd.f32 %v1389, 1.0
        %v1391 = vmul.f32 %v1390, %v1218
        %v1392 = vand.u32 2147483647, %v1218
        %vm1393 = vcmp.lt.f32.partialorder %v1392, 0.0004427343
        %v1394 = vsel %vm1393, %v1391, %v1388
        %v1395 = vadd.f32 %v1220, 1.0
        %v1396 = vlog2.pop %v1395
        %v1397 = vmul.f32 %v1396, 0.6931472
        %v1398 = vmul.f32 -0.5, %v1220
        %v1399 = vadd.f32 %v1398, 1.0
        %v1400 = vmul.f32 %v1399, %v1220
        %v1401 = vand.u32 2147483647, %v1220
        %vm1402 = vcmp.lt.f32.partialorder %v1401, 0.0004427343
        %v1403 = vsel %vm1402, %v1400, %v1397
        %v1404 = vadd.f32 %v1222, 1.0
        %v1405 = vlog2.pop %v1404
        %v1406 = vmul.f32 %v1405, 0.6931472
        %v1407 = vmul.f32 -0.5, %v1222
        %v1408 = vadd.f32 %v1407, 1.0
        %v1409 = vmul.f32 %v1408, %v1222
        %v1410 = vand.u32 2147483647, %v1222
        %vm1411 = vcmp.lt.f32.partialorder %v1410, 0.0004427343
        %v1412 = vsel %vm1411, %v1409, %v1406
        %v1413 = vadd.f32 %v1224, 1.0
        %v1414 = vlog2.pop %v1413
        %v1415 = vmul.f32 %v1414, 0.6931472
        %v1416 = vmul.f32 -0.5, %v1224
        %v1417 = vadd.f32 %v1416, 1.0
        %v1418 = vmul.f32 %v1417, %v1224
        %v1419 = vand.u32 2147483647, %v1224
        %vm1420 = vcmp.lt.f32.partialorder %v1419, 0.0004427343
        %v1421 = vsel %vm1420, %v1418, %v1415
        %v1422 = vadd.f32 %v1226, 1.0
        %v1423 = vlog2.pop %v1422
        %v1424 = vmul.f32 %v1423, 0.6931472
        %v1425 = vmul.f32 -0.5, %v1226
        %v1426 = vadd.f32 %v1425, 1.0
        %v1427 = vmul.f32 %v1426, %v1226
        %v1428 = vand.u32 2147483647, %v1226
        %vm1429 = vcmp.lt.f32.partialorder %v1428, 0.0004427343
        %v1430 = vsel %vm1429, %v1427, %v1424
        %v1431 = vadd.f32 %v1228, 1.0
        %v1432 = vlog2.pop %v1431
        %v1433 = vmul.f32 %v1432, 0.6931472
        %v1434 = vmul.f32 -0.5, %v1228
        %v1435 = vadd.f32 %v1434, 1.0
        %v1436 = vmul.f32 %v1435, %v1228
        %v1437 = vand.u32 2147483647, %v1228
        %vm1438 = vcmp.lt.f32.partialorder %v1437, 0.0004427343
        %v1439 = vsel %vm1438, %v1436, %v1433
        %v1440 = vadd.f32 %v1230, 1.0
        %v1441 = vlog2.pop %v1440
        %v1442 = vmul.f32 %v1441, 0.6931472
        %v1443 = vmul.f32 -0.5, %v1230
        %v1444 = vadd.f32 %v1443, 1.0
        %v1445 = vmul.f32 %v1444, %v1230
        %v1446 = vand.u32 2147483647, %v1230
        %vm1447 = vcmp.lt.f32.partialorder %v1446, 0.0004427343
        %v1448 = vsel %vm1447, %v1445, %v1442
        %v1449 = vadd.f32 %v1232, 1.0
        %v1450 = vlog2.pop %v1449
        %v1451 = vmul.f32 %v1450, 0.6931472
        %v1452 = vmul.f32 -0.5, %v1232
        %v1453 = vadd.f32 %v1452, 1.0
        %v1454 = vmul.f32 %v1453, %v1232
        %v1455 = vand.u32 2147483647, %v1232
        %vm1456 = vcmp.lt.f32.partialorder %v1455, 0.0004427343
        %v1457 = vsel %vm1456, %v1454, %v1451
        %v1458 = vadd.f32 %v1234, 1.0
        %v1459 = vlog2.pop %v1458
        %v1460 = vmul.f32 %v1459, 0.6931472
        %v1461 = vmul.f32 -0.5, %v1234
        %v1462 = vadd.f32 %v1461, 1.0
        %v1463 = vmul.f32 %v1462, %v1234
        %v1464 = vand.u32 2147483647, %v1234
        %vm1465 = vcmp.lt.f32.partialorder %v1464, 0.0004427343
        %v1466 = vsel %vm1465, %v1463, %v1460
        %v1467 = vadd.f32 %v1236, 1.0
        %v1468 = vlog2.pop %v1467
        %v1469 = vmul.f32 %v1468, 0.6931472
        %v1470 = vmul.f32 -0.5, %v1236
        %v1471 = vadd.f32 %v1470, 1.0
        %v1472 = vmul.f32 %v1471, %v1236
        %v1473 = vand.u32 2147483647, %v1236
        %vm1474 = vcmp.lt.f32.partialorder %v1473, 0.0004427343
        %v1475 = vsel %vm1474, %v1472, %v1469
        %v1476 = vadd.f32 %v1238, 1.0
        %v1477 = vlog2.pop %v1476
        %v1478 = vmul.f32 %v1477, 0.6931472
        %v1479 = vmul.f32 -0.5, %v1238
        %v1480 = vadd.f32 %v1479, 1.0
        %v1481 = vmul.f32 %v1480, %v1238
        %v1482 = vand.u32 2147483647, %v1238
        %vm1483 = vcmp.lt.f32.partialorder %v1482, 0.0004427343
        %v1484 = vsel %vm1483, %v1481, %v1478
        %v1485 = vadd.f32 %v1240, 1.0
        %v1486 = vlog2.pop %v1485
        %v1487 = vmul.f32 %v1486, 0.6931472
        %v1488 = vmul.f32 -0.5, %v1240
        %v1489 = vadd.f32 %v1488, 1.0
        %v1490 = vmul.f32 %v1489, %v1240
        %v1491 = vand.u32 2147483647, %v1240
        %vm1492 = vcmp.lt.f32.partialorder %v1491, 0.0004427343
        %v1493 = vsel %vm1492, %v1490, %v1487
        %v1494 = vadd.f32 %v1242, 1.0
        %v1495 = vlog2.pop %v1494
        %v1496 = vmul.f32 %v1495, 0.6931472
        %v1497 = vmul.f32 -0.5, %v1242
        %v1498 = vadd.f32 %v1497, 1.0
        %v1499 = vmul.f32 %v1498, %v1242
        %v1500 = vand.u32 2147483647, %v1242
        %vm1501 = vcmp.lt.f32.partialorder %v1500, 0.0004427343
        %v1502 = vsel %vm1501, %v1499, %v1496
        %v1503 = vadd.f32 %v1244, 1.0
        %v1504 = vlog2.pop %v1503
        %v1505 = vmul.f32 %v1504, 0.6931472
        %v1506 = vmul.f32 -0.5, %v1244
        %v1507 = vadd.f32 %v1506, 1.0
        %v1508 = vmul.f32 %v1507, %v1244
        %v1509 = vand.u32 2147483647, %v1244
        %vm1510 = vcmp.lt.f32.partialorder %v1509, 0.0004427343
        %v1511 = vsel %vm1510, %v1508, %v1505
        %v1512 = vadd.f32 %v1246, 1.0
        %v1513 = vlog2.pop %v1512
        %v1514 = vmul.f32 %v1513, 0.6931472
        %v1515 = vmul.f32 -0.5, %v1246
        %v1516 = vadd.f32 %v1515, 1.0
        %v1517 = vmul.f32 %v1516, %v1246
        %v1518 = vand.u32 2147483647, %v1246
        %vm1519 = vcmp.lt.f32.partialorder %v1518, 0.0004427343
        %v1520 = vsel %vm1519, %v1517, %v1514
        %v1521 = vadd.f32 %v1248, 1.0
        %v1522 = vlog2.pop %v1521
        %v1523 = vmul.f32 %v1522, 0.6931472
        %v1524 = vmul.f32 -0.5, %v1248
        %v1525 = vadd.f32 %v1524, 1.0
        %v1526 = vmul.f32 %v1525, %v1248
        %v1527 = vand.u32 2147483647, %v1248
        %vm1528 = vcmp.lt.f32.partialorder %v1527, 0.0004427343
        %v1529 = vsel %vm1528, %v1526, %v1523
        %v1530 = vadd.f32 %v1250, 1.0
        %v1531 = vlog2.pop %v1530
        %v1532 = vmul.f32 %v1531, 0.6931472
        %v1533 = vmul.f32 -0.5, %v1250
        %v1534 = vadd.f32 %v1533, 1.0
        %v1535 = vmul.f32 %v1534, %v1250
        %v1536 = vand.u32 2147483647, %v1250
        %vm1537 = vcmp.lt.f32.partialorder %v1536, 0.0004427343
        %v1538 = vsel %vm1537, %v1535, %v1532
        %v1539 = vadd.f32 %v1027, %v1259
        %v1540 = vadd.f32 %v1028, %v1268
        %v1541 = vadd.f32 %v1029, %v1277
        %v1542 = vadd.f32 %v1030, %v1286
        %v1543 = vadd.f32 %v1031, %v1295
        %v1544 = vadd.f32 %v1032, %v1304
        %v1545 = vadd.f32 %v1033, %v1313
        %v1546 = vadd.f32 %v1034, %v1322
        %v1547 = vadd.f32 %v1035, %v1331
        %v1548 = vadd.f32 %v1036, %v1340
        %v1549 = vadd.f32 %v1037, %v1349
        %v1550 = vadd.f32 %v1038, %v1358
        %v1551 = vadd.f32 %v1039, %v1367
        %v1552 = vadd.f32 %v1040, %v1376
        %v1553 = vadd.f32 %v1041, %v1385
        %v1554 = vadd.f32 %v1042, %v1394
        %v1555 = vadd.f32 %v1043, %v1403
        %v1556 = vadd.f32 %v1044, %v1412
        %v1557 = vadd.f32 %v1045, %v1421
        %v1558 = vadd.f32 %v1046, %v1430
        %v1559 = vadd.f32 %v1047, %v1439
        %v1560 = vadd.f32 %v1048, %v1448
        %v1561 = vadd.f32 %v1049, %v1457
        %v1562 = vadd.f32 %v1050, %v1466
        %v1563 = vadd.f32 %v1051, %v1475
        %v1564 = vadd.f32 %v1052, %v1484
        %v1565 = vadd.f32 %v1053, %v1493
        %v1566 = vadd.f32 %v1054, %v1502
        %v1567 = vadd.f32 %v1055, %v1511
        %v1568 = vadd.f32 %v1056, %v1520
        %v1569 = vadd.f32 %v1057, %v1529
        %v1570 = vadd.f32 %v1058, %v1538
        %v1571 = vsel %vm1059, %v1091, %v1539
        %v1572 = vsel %vm1060, %v1092, %v1540
        %v1573 = vsel %vm1061, %v1093, %v1541
        %v1574 = vsel %vm1062, %v1094, %v1542
        %v1575 = vsel %vm1063, %v1095, %v1543
        %v1576 = vsel %vm1064, %v1096, %v1544
        %v1577 = vsel %vm1065, %v1097, %v1545
        %v1578 = vsel %vm1066, %v1098, %v1546
        %v1579 = vsel %vm1067, %v1099, %v1547
        %v1580 = vsel %vm1068, %v1100, %v1548
        %v1581 = vsel %vm1069, %v1101, %v1549
        %v1582 = vsel %vm1070, %v1102, %v1550
        %v1583 = vsel %vm1071, %v1103, %v1551
        %v1584 = vsel %vm1072, %v1104, %v1552
        %v1585 = vsel %vm1073, %v1105, %v1553
        %v1586 = vsel %vm1074, %v1106, %v1554
        %v1587 = vsel %vm1075, %v1107, %v1555
        %v1588 = vsel %vm1076, %v1108, %v1556
        %v1589 = vsel %vm1077, %v1109, %v1557
        %v1590 = vsel %vm1078, %v1110, %v1558
        %v1591 = vsel %vm1079, %v1111, %v1559
        %v1592 = vsel %vm1080, %v1112, %v1560
        %v1593 = vsel %vm1081, %v1113, %v1561
        %v1594 = vsel %vm1082, %v1114, %v1562
        %v1595 = vsel %vm1083, %v1115, %v1563
        %v1596 = vsel %vm1084, %v1116, %v1564
        %v1597 = vsel %vm1085, %v1117, %v1565
        %v1598 = vsel %vm1086, %v1118, %v1566
        %v1599 = vsel %vm1087, %v1119, %v1567
        %v1600 = vsel %vm1088, %v1120, %v1568
        %v1601 = vsel %vm1089, %v1121, %v1569
        %v1602 = vsel %vm1090, %v1122, %v1570
        %v1603 = vpack.c.bf16 %v1573, %v1571
        %v1604 = vpack.c.bf16 %v1574, %v1572
        %v1605 = vpack.c.bf16 %v1577, %v1575
        %v1606 = vpack.c.bf16 %v1578, %v1576
        %v1607 = vpack.c.bf16 %v1581, %v1579
        %v1608 = vpack.c.bf16 %v1582, %v1580
        %v1609 = vpack.c.bf16 %v1585, %v1583
        %v1610 = vpack.c.bf16 %v1586, %v1584
        %v1611 = vpack.c.bf16 %v1589, %v1587
        %v1612 = vpack.c.bf16 %v1590, %v1588
        %v1613 = vpack.c.bf16 %v1593, %v1591
        %v1614 = vpack.c.bf16 %v1594, %v1592
        %v1615 = vpack.c.bf16 %v1597, %v1595
        %v1616 = vpack.c.bf16 %v1598, %v1596
        %v1617 = vpack.c.bf16 %v1601, %v1599
        %v1618 = vpack.c.bf16 %v1602, %v1600
        %v1635 = vunpack.c.l.b16 %v1603
        %v1636 = vunpack.c.l.b16 %v1604
        %v1637 = vunpack.c.h.b16 %v1603
        %v1638 = vunpack.c.h.b16 %v1604
        %v1639 = vunpack.c.l.b16 %v1605
        %v1640 = vunpack.c.l.b16 %v1606
        %v1641 = vunpack.c.h.b16 %v1605
        %v1642 = vunpack.c.h.b16 %v1606
        %v1643 = vunpack.c.l.b16 %v1607
        %v1644 = vunpack.c.l.b16 %v1608
        %v1645 = vunpack.c.h.b16 %v1607
        %v1646 = vunpack.c.h.b16 %v1608
        %v1647 = vunpack.c.l.b16 %v1609
        %v1648 = vunpack.c.l.b16 %v1610
        %v1649 = vunpack.c.h.b16 %v1609
        %v1650 = vunpack.c.h.b16 %v1610
        %v1651 = vunpack.c.l.b16 %v1611
        %v1652 = vunpack.c.l.b16 %v1612
        %v1653 = vunpack.c.h.b16 %v1611
        %v1654 = vunpack.c.h.b16 %v1612
        %v1655 = vunpack.c.l.b16 %v1613
        %v1656 = vunpack.c.l.b16 %v1614
        %v1657 = vunpack.c.h.b16 %v1613
        %v1658 = vunpack.c.h.b16 %v1614
        %v1659 = vunpack.c.l.b16 %v1615
        %v1660 = vunpack.c.l.b16 %v1616
        %v1661 = vunpack.c.h.b16 %v1615
        %v1662 = vunpack.c.h.b16 %v1616
        %v1663 = vunpack.c.l.b16 %v1617
        %v1664 = vunpack.c.l.b16 %v1618
        %v1665 = vunpack.c.h.b16 %v1617
        %v1666 = vunpack.c.h.b16 %v1618
        %v1667 = vpack.c.b16 %v1636, %v1635
        %v1668 = vpack.c.b16 %v1638, %v1637
        %v1669 = vpack.c.b16 %v1640, %v1639
        %v1670 = vpack.c.b16 %v1642, %v1641
        %v1671 = vpack.c.b16 %v1644, %v1643
        %v1672 = vpack.c.b16 %v1646, %v1645
        %v1673 = vpack.c.b16 %v1648, %v1647
        %v1674 = vpack.c.b16 %v1650, %v1649
        %v1675 = vpack.c.b16 %v1652, %v1651
        %v1676 = vpack.c.b16 %v1654, %v1653
        %v1677 = vpack.c.b16 %v1656, %v1655
        %v1678 = vpack.c.b16 %v1658, %v1657
        %v1679 = vpack.c.b16 %v1660, %v1659
        %v1680 = vpack.c.b16 %v1662, %v1661
        %v1681 = vpack.c.b16 %v1664, %v1663
        %v1682 = vpack.c.b16 %v1666, %v1665
        %1699 = vst [vmem:[%s439 + $0x8] sm:$0xff] %v1667
        %1700 = vst [vmem:[%s439 + $0x18] sm:$0xff] %v1668
        %1701 = vst [vmem:[%s439 + $0x28] sm:$0xff] %v1669
        %1702 = vst [vmem:[%s439 + $0x38] sm:$0xff] %v1670
        %1703 = vst [vmem:[%s439 + $0x48] sm:$0xff] %v1671
        %1704 = vst [vmem:[%s439 + $0x58] sm:$0xff] %v1672
        %1705 = vst [vmem:[%s439 + $0x68] sm:$0xff] %v1673
        %1706 = vst [vmem:[%s439 + $0x78] sm:$0xff] %v1674
        %1707 = vst [vmem:[%s439 + $0x88] sm:$0xff] %v1675
        %1708 = vst [vmem:[%s439 + $0x98] sm:$0xff] %v1676
        %1709 = vst [vmem:[%s439 + $0xa8] sm:$0xff] %v1677
        %1710 = vst [vmem:[%s439 + $0xb8] sm:$0xff] %v1678
        %1711 = vst [vmem:[%s439 + $0xc8] sm:$0xff] %v1679
        %1712 = vst [vmem:[%s439 + $0xd8] sm:$0xff] %v1680
        %1713 = vst [vmem:[%s439 + $0xe8] sm:$0xff] %v1681
        %1714 = vst [vmem:[%s439 + $0xf8] sm:$0xff] %v1682
        %v1715 = vld [vmem:[#allocation7] sm:$0xff]
        %v1716 = vld [vmem:[#allocation7 + $0x8] sm:$0xff]
        %v1717 = vld [vmem:[#allocation7 + $0x10] sm:$0xff]
        %v1718 = vld [vmem:[#allocation7 + $0x18] sm:$0xff]
        %v1719 = vld [vmem:[#allocation7 + $0x20] sm:$0xff]
        %v1720 = vld [vmem:[#allocation7 + $0x28] sm:$0xff]
        %v1721 = vld [vmem:[#allocation7 + $0x30] sm:$0xff]
        %v1722 = vld [vmem:[#allocation7 + $0x38] sm:$0xff]
        %v1723 = vld [vmem:[#allocation7 + $0x40] sm:$0xff]
        %v1724 = vld [vmem:[#allocation7 + $0x48] sm:$0xff]
        %v1725 = vld [vmem:[#allocation7 + $0x50] sm:$0xff]
        %v1726 = vld [vmem:[#allocation7 + $0x58] sm:$0xff]
        %v1727 = vld [vmem:[#allocation7 + $0x60] sm:$0xff]
        %v1728 = vld [vmem:[#allocation7 + $0x68] sm:$0xff]
        %v1729 = vld [vmem:[#allocation7 + $0x70] sm:$0xff]
        %v1730 = vld [vmem:[#allocation7 + $0x78] sm:$0xff]
        %v1731 = vld [vmem:[#allocation7 + $0x80] sm:$0xff]
        %v1732 = vld [vmem:[#allocation7 + $0x88] sm:$0xff]
        %v1733 = vld [vmem:[#allocation7 + $0x90] sm:$0xff]
        %v1734 = vld [vmem:[#allocation7 + $0x98] sm:$0xff]
        %v1735 = vld [vmem:[#allocation7 + $0xa0] sm:$0xff]
        %v1736 = vld [vmem:[#allocation7 + $0xa8] sm:$0xff]
        %v1737 = vld [vmem:[#allocation7 + $0xb0] sm:$0xff]
        %v1738 = vld [vmem:[#allocation7 + $0xb8] sm:$0xff]
        %v1739 = vld [vmem:[#allocation7 + $0xc0] sm:$0xff]
        %v1740 = vld [vmem:[#allocation7 + $0xc8] sm:$0xff]
        %v1741 = vld [vmem:[#allocation7 + $0xd0] sm:$0xff]
        %v1742 = vld [vmem:[#allocation7 + $0xd8] sm:$0xff]
        %v1743 = vld [vmem:[#allocation7 + $0xe0] sm:$0xff]
        %v1744 = vld [vmem:[#allocation7 + $0xe8] sm:$0xff]
        %v1745 = vld [vmem:[#allocation7 + $0xf0] sm:$0xff]
        %v1746 = vld [vmem:[#allocation7 + $0xf8] sm:$0xff]
        %v1747 = vld [vmem:[%s4] sm:$0xf]
        %v1749 = vlaneseq
        %v1750 = vshrl.u32 %v1749, 7
        %v1751 = vsub.s32 0, %v1750
        %v1752 = vrot.slane %v1747, %v1751
        %v1753 = vlaneseq
        %v1754 = vshrl.u32 %v1753, 7
        %v1755 = vsub.s32 1, %v1754
        %v1756 = vrot.slane %v1747, %v1755
        %v1757 = vlaneseq
        %v1758 = vshrl.u32 %v1757, 7
        %v1759 = vsub.s32 2, %v1758
        %v1760 = vrot.slane %v1747, %v1759
        %v1761 = vlaneseq
        %v1762 = vshrl.u32 %v1761, 7
        %v1763 = vsub.s32 3, %v1762
        %v1764 = vrot.slane %v1747, %v1763
        %v1801 = vunpack.c.l.b16 %v1715
        %v1802 = vunpack.c.h.b16 %v1715
        %v1803 = vunpack.c.l.b16 %v1716
        %v1804 = vunpack.c.h.b16 %v1716
        %v1805 = vunpack.c.l.b16 %v1717
        %v1806 = vunpack.c.h.b16 %v1717
        %v1807 = vunpack.c.l.b16 %v1718
        %v1808 = vunpack.c.h.b16 %v1718
        %v1809 = vunpack.c.l.b16 %v1719
        %v1810 = vunpack.c.h.b16 %v1719
        %v1811 = vunpack.c.l.b16 %v1720
        %v1812 = vunpack.c.h.b16 %v1720
        %v1813 = vunpack.c.l.b16 %v1721
        %v1814 = vunpack.c.h.b16 %v1721
        %v1815 = vunpack.c.l.b16 %v1722
        %v1816 = vunpack.c.h.b16 %v1722
        %v1817 = vunpack.c.l.b16 %v1723
        %v1818 = vunpack.c.h.b16 %v1723
        %v1819 = vunpack.c.l.b16 %v1724
        %v1820 = vunpack.c.h.b16 %v1724
        %v1821 = vunpack.c.l.b16 %v1725
        %v1822 = vunpack.c.h.b16 %v1725
        %v1823 = vunpack.c.l.b16 %v1726
        %v1824 = vunpack.c.h.b16 %v1726
        %v1825 = vunpack.c.l.b16 %v1727
        %v1826 = vunpack.c.h.b16 %v1727
        %v1827 = vunpack.c.l.b16 %v1728
        %v1828 = vunpack.c.h.b16 %v1728
        %v1829 = vunpack.c.l.b16 %v1729
        %v1830 = vunpack.c.h.b16 %v1729
        %v1831 = vunpack.c.l.b16 %v1730
        %v1832 = vunpack.c.h.b16 %v1730
        %v1833 = vunpack.c.l.b16 %v1731
        %v1834 = vunpack.c.h.b16 %v1731
        %v1835 = vunpack.c.l.b16 %v1732
        %v1836 = vunpack.c.h.b16 %v1732
        %v1837 = vunpack.c.l.b16 %v1733
        %v1838 = vunpack.c.h.b16 %v1733
        %v1839 = vunpack.c.l.b16 %v1734
        %v1840 = vunpack.c.h.b16 %v1734
        %v1841 = vunpack.c.l.b16 %v1735
        %v1842 = vunpack.c.h.b16 %v1735
        %v1843 = vunpack.c.l.b16 %v1736
        %v1844 = vunpack.c.h.b16 %v1736
        %v1845 = vunpack.c.l.b16 %v1737
        %v1846 = vunpack.c.h.b16 %v1737
        %v1847 = vunpack.c.l.b16 %v1738
        %v1848 = vunpack.c.h.b16 %v1738
        %v1849 = vunpack.c.l.b16 %v1739
        %v1850 = vunpack.c.h.b16 %v1739
        %v1851 = vunpack.c.l.b16 %v1740
        %v1852 = vunpack.c.h.b16 %v1740
        %v1853 = vunpack.c.l.b16 %v1741
        %v1854 = vunpack.c.h.b16 %v1741
        %v1855 = vunpack.c.l.b16 %v1742
        %v1856 = vunpack.c.h.b16 %v1742
        %v1857 = vunpack.c.l.b16 %v1743
        %v1858 = vunpack.c.h.b16 %v1743
        %v1859 = vunpack.c.l.b16 %v1744
        %v1860 = vunpack.c.h.b16 %v1744
        %v1861 = vunpack.c.l.b16 %v1745
        %v1862 = vunpack.c.h.b16 %v1745
        %v1863 = vunpack.c.l.b16 %v1746
        %v1864 = vunpack.c.h.b16 %v1746
        %v1865 = vpack.c.b16 %v1805, %v1801
        %v1866 = vpack.c.b16 %v1806, %v1802
        %v1867 = vpack.c.b16 %v1807, %v1803
        %v1868 = vpack.c.b16 %v1808, %v1804
        %v1869 = vpack.c.b16 %v1813, %v1809
        %v1870 = vpack.c.b16 %v1814, %v1810
        %v1871 = vpack.c.b16 %v1815, %v1811
        %v1872 = vpack.c.b16 %v1816, %v1812
        %v1873 = vpack.c.b16 %v1821, %v1817
        %v1874 = vpack.c.b16 %v1822, %v1818
        %v1875 = vpack.c.b16 %v1823, %v1819
        %v1876 = vpack.c.b16 %v1824, %v1820
        %v1877 = vpack.c.b16 %v1829, %v1825
        %v1878 = vpack.c.b16 %v1830, %v1826
        %v1879 = vpack.c.b16 %v1831, %v1827
        %v1880 = vpack.c.b16 %v1832, %v1828
        %v1881 = vpack.c.b16 %v1837, %v1833
        %v1882 = vpack.c.b16 %v1838, %v1834
        %v1883 = vpack.c.b16 %v1839, %v1835
        %v1884 = vpack.c.b16 %v1840, %v1836
        %v1885 = vpack.c.b16 %v1845, %v1841
        %v1886 = vpack.c.b16 %v1846, %v1842
        %v1887 = vpack.c.b16 %v1847, %v1843
        %v1888 = vpack.c.b16 %v1848, %v1844
        %v1889 = vpack.c.b16 %v1853, %v1849
        %v1890 = vpack.c.b16 %v1854, %v1850
        %v1891 = vpack.c.b16 %v1855, %v1851
        %v1892 = vpack.c.b16 %v1856, %v1852
        %v1893 = vpack.c.b16 %v1861, %v1857
        %v1894 = vpack.c.b16 %v1862, %v1858
        %v1895 = vpack.c.b16 %v1863, %v1859
        %v1896 = vpack.c.b16 %v1864, %v1860
        %1929 = vmatprep.subr.bf16.mxu0 %v1866
        %1930 = vmatpush1.bf16.msra.mxu0 %v1865
        %1931 = vmatprep.subr.bf16.mxu0 %v1870
        %1932 = vmatpush1.bf16.msra.mxu0 %v1869
        %1933 = vmatprep.subr.bf16.mxu0 %v1874
        %1934 = vmatpush1.bf16.msra.mxu0 %v1873
        %1935 = vmatprep.subr.bf16.mxu0 %v1878
        %1936 = vmatpush1.bf16.msra.mxu0 %v1877
        %1937 = vmatprep.subr.bf16.mxu0 %v1882
        %1938 = vmatpush1.bf16.msra.mxu0 %v1881
        %1939 = vmatprep.subr.bf16.mxu0 %v1886
        %1940 = vmatpush1.bf16.msra.mxu0 %v1885
        %1941 = vmatprep.subr.bf16.mxu0 %v1890
        %1942 = vmatpush1.bf16.msra.mxu0 %v1889
        %1943 = vmatprep.subr.bf16.mxu0 %v1894
        %1944 = vmatpush1.bf16.msra.mxu0 %v1893
        %1945 = vmatprep.subr.bf16.mxu0 0
        %1946 = vmatpush1.bf16.msra.mxu0 0
        %1947 = vmatprep.subr.bf16.mxu0 0
        %1948 = vmatpush1.bf16.msra.mxu0 0
        %1949 = vmatprep.subr.bf16.mxu0 0
        %1950 = vmatpush1.bf16.msra.mxu0 0
        %1951 = vmatprep.subr.bf16.mxu0 0
        %1952 = vmatpush1.bf16.msra.mxu0 0
        %1953 = vmatprep.subr.bf16.mxu0 0
        %1954 = vmatpush1.bf16.msra.mxu0 0
        %1955 = vmatprep.subr.bf16.mxu0 0
        %1956 = vmatpush1.bf16.msra.mxu0 0
        %1957 = vmatprep.subr.bf16.mxu0 0
        %1958 = vmatpush1.bf16.msra.mxu0 0
        %1959 = vmatprep.subr.bf16.mxu0 0
        %1960 = vmatpush1.bf16.msra.mxu0 0
        %1961 = vmatprep.mubr.bf16.mxu0 0
        %1962 = vmatmul.mubr.bf16.gmra.mrb[0].mxu0 %v467
        %v1963 = vpop.f32.mrb[0].mxu0
        %v1964 = vadd.f32 %v1752, %v1963
        %v1965 = vpop.f32.mrb[0].mxu0
        %v1966 = vadd.f32 %v1756, %v1965
        %v1967 = vpop.f32.mrb[0].mxu0
        %v1968 = vadd.f32 %v1752, %v1967
        %v1969 = vpop.f32.mrb[0].mxu0
        %v1970 = vadd.f32 %v1756, %v1969
        %1971 = vmatprep.mubr.bf16.mxu0 0
        %1972 = vmatmul.mubr.bf16.gmra.mrb[0].mxu0 %v468
        %v1973 = vpop.f32.mrb[0].mxu0
        %v1974 = vadd.f32 %v1752, %v1973
        %v1975 = vpop.f32.mrb[0].mxu0
        %v1976 = vadd.f32 %v1756, %v1975
        %v1977 = vpop.f32.mrb[0].mxu0
        %v1978 = vadd.f32 %v1752, %v1977
        %v1979 = vpop.f32.mrb[0].mxu0
        %v1980 = vadd.f32 %v1756, %v1979
        %1981 = vmatprep.mubr.bf16.mxu0 0
        %1982 = vmatmul.mubr.bf16.gmra.mrb[0].mxu0 %v469
        %v1983 = vpop.f32.mrb[0].mxu0
        %v1984 = vadd.f32 %v1752, %v1983
        %v1985 = vpop.f32.mrb[0].mxu0
        %v1986 = vadd.f32 %v1756, %v1985
        %v1987 = vpop.f32.mrb[0].mxu0
        %v1988 = vadd.f32 %v1752, %v1987
        %v1989 = vpop.f32.mrb[0].mxu0
        %v1990 = vadd.f32 %v1756, %v1989
        %1991 = vmatprep.mubr.bf16.mxu0 0
        %1992 = vmatmul.mubr.bf16.gmra.mrb[0].mxu0 %v470
        %v1993 = vpop.f32.mrb[0].mxu0
        %v1994 = vadd.f32 %v1752, %v1993
        %v1995 = vpop.f32.mrb[0].mxu0
        %v1996 = vadd.f32 %v1756, %v1995
        %v1997 = vpop.f32.mrb[0].mxu0
        %v1998 = vadd.f32 %v1752, %v1997
        %v1999 = vpop.f32.mrb[0].mxu0
        %v2000 = vadd.f32 %v1756, %v1999
        %2001 = vmatprep.mubr.bf16.mxu0 0
        %2002 = vmatmul.mubr.bf16.gmra.mrb[0].mxu0 %v471
        %v2003 = vpop.f32.mrb[0].mxu0
        %v2004 = vadd.f32 %v1752, %v2003
        %v2005 = vpop.f32.mrb[0].mxu0
        %v2006 = vadd.f32 %v1756, %v2005
        %v2007 = vpop.f32.mrb[0].mxu0
        %v2008 = vadd.f32 %v1752, %v2007
        %v2009 = vpop.f32.mrb[0].mxu0
        %v2010 = vadd.f32 %v1756, %v2009
        %2011 = vmatprep.mubr.bf16.mxu0 0
        %2012 = vmatmul.mubr.bf16.gmra.mrb[0].mxu0 %v472
        %v2013 = vpop.f32.mrb[0].mxu0
        %v2014 = vadd.f32 %v1752, %v2013
        %v2015 = vpop.f32.mrb[0].mxu0
        %v2016 = vadd.f32 %v1756, %v2015
        %v2017 = vpop.f32.mrb[0].mxu0
        %v2018 = vadd.f32 %v1752, %v2017
        %v2019 = vpop.f32.mrb[0].mxu0
        %v2020 = vadd.f32 %v1756, %v2019
        %2021 = vmatprep.mubr.bf16.mxu0 0
        %2022 = vmatmul.mubr.bf16.gmra.mrb[0].mxu0 %v473
        %v2023 = vpop.f32.mrb[0].mxu0
        %v2024 = vadd.f32 %v1752, %v2023
        %v2025 = vpop.f32.mrb[0].mxu0
        %v2026 = vadd.f32 %v1756, %v2025
        %v2027 = vpop.f32.mrb[0].mxu0
        %v2028 = vadd.f32 %v1752, %v2027
        %v2029 = vpop.f32.mrb[0].mxu0
        %v2030 = vadd.f32 %v1756, %v2029
        %2031 = vmatprep.mubr.bf16.mxu0 0
        %2032 = vmatmul.mubr.bf16.gmra.mrb[0].mxu0 %v474
        %v2033 = vpop.f32.mrb[0].mxu0
        %v2034 = vadd.f32 %v1752, %v2033
        %v2035 = vpop.f32.mrb[0].mxu0
        %v2036 = vadd.f32 %v1756, %v2035
        %v2037 = vpop.f32.mrb[0].mxu0
        %v2038 = vadd.f32 %v1752, %v2037
        %v2039 = vpop.f32.mrb[0].mxu0
        %v2040 = vadd.f32 %v1756, %v2039
        %2041 = vdwg.mxu0
        %2042 = vmatprep.subr.bf16.mxu0 %v1868
        %2043 = vmatpush1.bf16.msra.mxu0 %v1867
        %2044 = vmatprep.subr.bf16.mxu0 %v1872
        %2045 = vmatpush1.bf16.msra.mxu0 %v1871
        %2046 = vmatprep.subr.bf16.mxu0 %v1876
        %2047 = vmatpush1.bf16.msra.mxu0 %v1875
        %2048 = vmatprep.subr.bf16.mxu0 %v1880
        %2049 = vmatpush1.bf16.msra.mxu0 %v1879
        %2050 = vmatprep.subr.bf16.mxu0 %v1884
        %2051 = vmatpush1.bf16.msra.mxu0 %v1883
        %2052 = vmatprep.subr.bf16.mxu0 %v1888
        %2053 = vmatpush1.bf16.msra.mxu0 %v1887
        %2054 = vmatprep.subr.bf16.mxu0 %v1892
        %2055 = vmatpush1.bf16.msra.mxu0 %v1891
        %2056 = vmatprep.subr.bf16.mxu0 %v1896
        %2057 = vmatpush1.bf16.msra.mxu0 %v1895
        %2058 = vmatprep.subr.bf16.mxu0 0
        %2059 = vmatpush1.bf16.msra.mxu0 0
        %2060 = vmatprep.subr.bf16.mxu0 0
        %2061 = vmatpush1.bf16.msra.mxu0 0
        %2062 = vmatprep.subr.bf16.mxu0 0
        %2063 = vmatpush1.bf16.msra.mxu0 0
        %2064 = vmatprep.subr.bf16.mxu0 0
        %2065 = vmatpush1.bf16.msra.mxu0 0
        %2066 = vmatprep.subr.bf16.mxu0 0
        %2067 = vmatpush1.bf16.msra.mxu0 0
        %2068 = vmatprep.subr.bf16.mxu0 0
        %2069 = vmatpush1.bf16.msra.mxu0 0
        %2070 = vmatprep.subr.bf16.mxu0 0
        %2071 = vmatpush1.bf16.msra.mxu0 0
        %2072 = vmatprep.subr.bf16.mxu0 0
        %2073 = vmatpush1.bf16.msra.mxu0 0
        %2074 = vmatprep.mubr.bf16.mxu0 0
        %2075 = vmatmul.mubr.bf16.gmra.mrb[0].mxu0 %v467
        %v2076 = vpop.f32.mrb[0].mxu0
        %v2077 = vadd.f32 %v1760, %v2076
        %v2078 = vpop.f32.mrb[0].mxu0
        %v2079 = vadd.f32 %v1764, %v2078
        %v2080 = vpop.f32.mrb[0].mxu0
        %v2081 = vadd.f32 %v1760, %v2080
        %v2082 = vpop.f32.mrb[0].mxu0
        %v2083 = vadd.f32 %v1764, %v2082
        %2084 = vmatprep.mubr.bf16.mxu0 0
        %2085 = vmatmul.mubr.bf16.gmra.mrb[0].mxu0 %v468
        %v2086 = vpop.f32.mrb[0].mxu0
        %v2087 = vadd.f32 %v1760, %v2086
        %v2088 = vpop.f32.mrb[0].mxu0
        %v2089 = vadd.f32 %v1764, %v2088
        %v2090 = vpop.f32.mrb[0].mxu0
        %v2091 = vadd.f32 %v1760, %v2090
        %v2092 = vpop.f32.mrb[0].mxu0
        %v2093 = vadd.f32 %v1764, %v2092
        %2094 = vmatprep.mubr.bf16.mxu0 0
        %2095 = vmatmul.mubr.bf16.gmra.mrb[0].mxu0 %v469
        %v2096 = vpop.f32.mrb[0].mxu0
        %v2097 = vadd.f32 %v1760, %v2096
        %v2098 = vpop.f32.mrb[0].mxu0
        %v2099 = vadd.f32 %v1764, %v2098
        %v2100 = vpop.f32.mrb[0].mxu0
        %v2101 = vadd.f32 %v1760, %v2100
        %v2102 = vpop.f32.mrb[0].mxu0
        %v2103 = vadd.f32 %v1764, %v2102
        %2104 = vmatprep.mubr.bf16.mxu0 0
        %2105 = vmatmul.mubr.bf16.gmra.mrb[0].mxu0 %v470
        %v2106 = vpop.f32.mrb[0].mxu0
        %v2107 = vadd.f32 %v1760, %v2106
        %v2108 = vpop.f32.mrb[0].mxu0
        %v2109 = vadd.f32 %v1764, %v2108
        %v2110 = vpop.f32.mrb[0].mxu0
        %v2111 = vadd.f32 %v1760, %v2110
        %v2112 = vpop.f32.mrb[0].mxu0
        %v2113 = vadd.f32 %v1764, %v2112
        %2114 = vmatprep.mubr.bf16.mxu0 0
        %2115 = vmatmul.mubr.bf16.gmra.mrb[0].mxu0 %v471
        %v2116 = vpop.f32.mrb[0].mxu0
        %v2117 = vadd.f32 %v1760, %v2116
        %v2118 = vpop.f32.mrb[0].mxu0
        %v2119 = vadd.f32 %v1764, %v2118
        %v2120 = vpop.f32.mrb[0].mxu0
        %v2121 = vadd.f32 %v1760, %v2120
        %v2122 = vpop.f32.mrb[0].mxu0
        %v2123 = vadd.f32 %v1764, %v2122
        %2124 = vmatprep.mubr.bf16.mxu0 0
        %2125 = vmatmul.mubr.bf16.gmra.mrb[0].mxu0 %v472
        %v2126 = vpop.f32.mrb[0].mxu0
        %v2127 = vadd.f32 %v1760, %v2126
        %v2128 = vpop.f32.mrb[0].mxu0
        %v2129 = vadd.f32 %v1764, %v2128
        %v2130 = vpop.f32.mrb[0].mxu0
        %v2131 = vadd.f32 %v1760, %v2130
        %v2132 = vpop.f32.mrb[0].mxu0
        %v2133 = vadd.f32 %v1764, %v2132
        %2134 = vmatprep.mubr.bf16.mxu0 0
        %2135 = vmatmul.mubr.bf16.gmra.mrb[0].mxu0 %v473
        %v2136 = vpop.f32.mrb[0].mxu0
        %v2137 = vadd.f32 %v1760, %v2136
        %v2138 = vpop.f32.mrb[0].mxu0
        %v2139 = vadd.f32 %v1764, %v2138
        %v2140 = vpop.f32.mrb[0].mxu0
        %v2141 = vadd.f32 %v1760, %v2140
        %v2142 = vpop.f32.mrb[0].mxu0
        %v2143 = vadd.f32 %v1764, %v2142
        %2144 = vmatprep.mubr.bf16.mxu0 0
        %2145 = vmatmul.mubr.bf16.gmra.mrb[0].mxu0 %v474
        %v2146 = vpop.f32.mrb[0].mxu0
        %v2147 = vadd.f32 %v1760, %v2146
        %v2148 = vpop.f32.mrb[0].mxu0
        %v2149 = vadd.f32 %v1764, %v2148
        %v2150 = vpop.f32.mrb[0].mxu0
        %v2151 = vadd.f32 %v1760, %v2150
        %v2152 = vpop.f32.mrb[0].mxu0
        %v2153 = vadd.f32 %v1764, %v2152
        %2154 = vdwg.mxu0
        %v2155 = vmax.f32 %v1964, 0.0
        %v2156 = vmax.f32 %v1966, 0.0
        %v2157 = vmax.f32 %v2077, 0.0
        %v2158 = vmax.f32 %v2079, 0.0
        %v2159 = vmax.f32 %v1968, 0.0
        %v2160 = vmax.f32 %v1970, 0.0
        %v2161 = vmax.f32 %v2081, 0.0
        %v2162 = vmax.f32 %v2083, 0.0
        %v2163 = vmax.f32 %v1974, 0.0
        %v2164 = vmax.f32 %v1976, 0.0
        %v2165 = vmax.f32 %v2087, 0.0
        %v2166 = vmax.f32 %v2089, 0.0
        %v2167 = vmax.f32 %v1978, 0.0
        %v2168 = vmax.f32 %v1980, 0.0
        %v2169 = vmax.f32 %v2091, 0.0
        %v2170 = vmax.f32 %v2093, 0.0
        %v2171 = vmax.f32 %v1984, 0.0
        %v2172 = vmax.f32 %v1986, 0.0
        %v2173 = vmax.f32 %v2097, 0.0
        %v2174 = vmax.f32 %v2099, 0.0
        %v2175 = vmax.f32 %v1988, 0.0
        %v2176 = vmax.f32 %v1990, 0.0
        %v2177 = vmax.f32 %v2101, 0.0
        %v2178 = vmax.f32 %v2103, 0.0
        %v2179 = vmax.f32 %v1994, 0.0
        %v2180 = vmax.f32 %v1996, 0.0
        %v2181 = vmax.f32 %v2107, 0.0
        %v2182 = vmax.f32 %v2109, 0.0
        %v2183 = vmax.f32 %v1998, 0.0
        %v2184 = vmax.f32 %v2000, 0.0
        %v2185 = vmax.f32 %v2111, 0.0
        %v2186 = vmax.f32 %v2113, 0.0
        %v2187 = vmax.f32 %v2004, 0.0
        %v2188 = vmax.f32 %v2006, 0.0
        %v2189 = vmax.f32 %v2117, 0.0
        %v2190 = vmax.f32 %v2119, 0.0
        %v2191 = vmax.f32 %v2008, 0.0
        %v2192 = vmax.f32 %v2010, 0.0
        %v2193 = vmax.f32 %v2121, 0.0
        %v2194 = vmax.f32 %v2123, 0.0
        %v2195 = vmax.f32 %v2014, 0.0
        %v2196 = vmax.f32 %v2016, 0.0
        %v2197 = vmax.f32 %v2127, 0.0
        %v2198 = vmax.f32 %v2129, 0.0
        %v2199 = vmax.f32 %v2018, 0.0
        %v2200 = vmax.f32 %v2020, 0.0
        %v2201 = vmax.f32 %v2131, 0.0
        %v2202 = vmax.f32 %v2133, 0.0
        %v2203 = vmax.f32 %v2024, 0.0
        %v2204 = vmax.f32 %v2026, 0.0
        %v2205 = vmax.f32 %v2137, 0.0
        %v2206 = vmax.f32 %v2139, 0.0
        %v2207 = vmax.f32 %v2028, 0.0
        %v2208 = vmax.f32 %v2030, 0.0
        %v2209 = vmax.f32 %v2141, 0.0
        %v2210 = vmax.f32 %v2143, 0.0
        %v2211 = vmax.f32 %v2034, 0.0
        %v2212 = vmax.f32 %v2036, 0.0
        %v2213 = vmax.f32 %v2147, 0.0
        %v2214 = vmax.f32 %v2149, 0.0
        %v2215 = vmax.f32 %v2038, 0.0
        %v2216 = vmax.f32 %v2040, 0.0
        %v2217 = vmax.f32 %v2151, 0.0
        %v2218 = vmax.f32 %v2153, 0.0
        %v2219 = vpack.c.bf16 %v2159, %v2155
        %v2220 = vpack.c.bf16 %v2160, %v2156
        %v2221 = vpack.c.bf16 %v2161, %v2157
        %v2222 = vpack.c.bf16 %v2162, %v2158
        %v2223 = vpack.c.bf16 %v2167, %v2163
        %v2224 = vpack.c.bf16 %v2168, %v2164
        %v2225 = vpack.c.bf16 %v2169, %v2165
        %v2226 = vpack.c.bf16 %v2170, %v2166
        %v2227 = vpack.c.bf16 %v2175, %v2171
        %v2228 = vpack.c.bf16 %v2176, %v2172
        %v2229 = vpack.c.bf16 %v2177, %v2173
        %v2230 = vpack.c.bf16 %v2178, %v2174
        %v2231 = vpack.c.bf16 %v2183, %v2179
        %v2232 = vpack.c.bf16 %v2184, %v2180
        %v2233 = vpack.c.bf16 %v2185, %v2181
        %v2234 = vpack.c.bf16 %v2186, %v2182
        %v2235 = vpack.c.bf16 %v2191, %v2187
        %v2236 = vpack.c.bf16 %v2192, %v2188
        %v2237 = vpack.c.bf16 %v2193, %v2189
        %v2238 = vpack.c.bf16 %v2194, %v2190
        %v2239 = vpack.c.bf16 %v2199, %v2195
        %v2240 = vpack.c.bf16 %v2200, %v2196
        %v2241 = vpack.c.bf16 %v2201, %v2197
        %v2242 = vpack.c.bf16 %v2202, %v2198
        %v2243 = vpack.c.bf16 %v2207, %v2203
        %v2244 = vpack.c.bf16 %v2208, %v2204
        %v2245 = vpack.c.bf16 %v2209, %v2205
        %v2246 = vpack.c.bf16 %v2210, %v2206
        %v2247 = vpack.c.bf16 %v2215, %v2211
        %v2248 = vpack.c.bf16 %v2216, %v2212
        %v2249 = vpack.c.bf16 %v2217, %v2213
        %v2250 = vpack.c.bf16 %v2218, %v2214
        %v2251 = vld [vmem:[#allocation8] sm:$0xff]
        %v2252 = vld [vmem:[#allocation8 + $0x8] sm:$0xff]
        %v2253 = vld [vmem:[#allocation8 + $0x10] sm:$0xff]
        %v2254 = vld [vmem:[#allocation8 + $0x18] sm:$0xff]
        %v2255 = vld [vmem:[#allocation8 + $0x20] sm:$0xff]
        %v2256 = vld [vmem:[#allocation8 + $0x28] sm:$0xff]
        %v2257 = vld [vmem:[#allocation8 + $0x30] sm:$0xff]
        %v2258 = vld [vmem:[#allocation8 + $0x38] sm:$0xff]
        %v2259 = vld [vmem:[#allocation8 + $0x40] sm:$0xff]
        %v2260 = vld [vmem:[#allocation8 + $0x48] sm:$0xff]
        %v2261 = vld [vmem:[#allocation8 + $0x50] sm:$0xff]
        %v2262 = vld [vmem:[#allocation8 + $0x58] sm:$0xff]
        %v2263 = vld [vmem:[#allocation8 + $0x60] sm:$0xff]
        %v2264 = vld [vmem:[#allocation8 + $0x68] sm:$0xff]
        %v2265 = vld [vmem:[#allocation8 + $0x70] sm:$0xff]
        %v2266 = vld [vmem:[#allocation8 + $0x78] sm:$0xff]
        %v2267 = vld [vmem:[#allocation8 + $0x80] sm:$0xff]
        %v2268 = vld [vmem:[#allocation8 + $0x88] sm:$0xff]
        %v2269 = vld [vmem:[#allocation8 + $0x90] sm:$0xff]
        %v2270 = vld [vmem:[#allocation8 + $0x98] sm:$0xff]
        %v2271 = vld [vmem:[#allocation8 + $0xa0] sm:$0xff]
        %v2272 = vld [vmem:[#allocation8 + $0xa8] sm:$0xff]
        %v2273 = vld [vmem:[#allocation8 + $0xb0] sm:$0xff]
        %v2274 = vld [vmem:[#allocation8 + $0xb8] sm:$0xff]
        %v2275 = vld [vmem:[#allocation8 + $0xc0] sm:$0xff]
        %v2276 = vld [vmem:[#allocation8 + $0xc8] sm:$0xff]
        %v2277 = vld [vmem:[#allocation8 + $0xd0] sm:$0xff]
        %v2278 = vld [vmem:[#allocation8 + $0xd8] sm:$0xff]
        %v2279 = vld [vmem:[#allocation8 + $0xe0] sm:$0xff]
        %v2280 = vld [vmem:[#allocation8 + $0xe8] sm:$0xff]
        %v2281 = vld [vmem:[#allocation8 + $0xf0] sm:$0xff]
        %v2282 = vld [vmem:[#allocation8 + $0xf8] sm:$0xff]
        %v2283 = vld [vmem:[#allocation8 + $0x100] sm:$0xff]
        %v2284 = vld [vmem:[#allocation8 + $0x108] sm:$0xff]
        %v2285 = vld [vmem:[#allocation8 + $0x110] sm:$0xff]
        %v2286 = vld [vmem:[#allocation8 + $0x118] sm:$0xff]
        %v2287 = vld [vmem:[#allocation8 + $0x120] sm:$0xff]
        %v2288 = vld [vmem:[#allocation8 + $0x128] sm:$0xff]
        %v2289 = vld [vmem:[#allocation8 + $0x130] sm:$0xff]
        %v2290 = vld [vmem:[#allocation8 + $0x138] sm:$0xff]
        %v2291 = vld [vmem:[#allocation8 + $0x140] sm:$0xff]
        %v2292 = vld [vmem:[#allocation8 + $0x148] sm:$0xff]
        %v2293 = vld [vmem:[#allocation8 + $0x150] sm:$0xff]
        %v2294 = vld [vmem:[#allocation8 + $0x158] sm:$0xff]
        %v2295 = vld [vmem:[#allocation8 + $0x160] sm:$0xff]
        %v2296 = vld [vmem:[#allocation8 + $0x168] sm:$0xff]
        %v2297 = vld [vmem:[#allocation8 + $0x170] sm:$0xff]
        %v2298 = vld [vmem:[#allocation8 + $0x178] sm:$0xff]
        %v2299 = vld [vmem:[#allocation8 + $0x180] sm:$0xff]
        %v2300 = vld [vmem:[#allocation8 + $0x188] sm:$0xff]
        %v2301 = vld [vmem:[#allocation8 + $0x190] sm:$0xff]
        %v2302 = vld [vmem:[#allocation8 + $0x198] sm:$0xff]
        %v2303 = vld [vmem:[#allocation8 + $0x1a0] sm:$0xff]
        %v2304 = vld [vmem:[#allocation8 + $0x1a8] sm:$0xff]
        %v2305 = vld [vmem:[#allocation8 + $0x1b0] sm:$0xff]
        %v2306 = vld [vmem:[#allocation8 + $0x1b8] sm:$0xff]
        %v2307 = vld [vmem:[#allocation8 + $0x1c0] sm:$0xff]
        %v2308 = vld [vmem:[#allocation8 + $0x1c8] sm:$0xff]
        %v2309 = vld [vmem:[#allocation8 + $0x1d0] sm:$0xff]
        %v2310 = vld [vmem:[#allocation8 + $0x1d8] sm:$0xff]
        %v2311 = vld [vmem:[#allocation8 + $0x1e0] sm:$0xff]
        %v2312 = vld [vmem:[#allocation8 + $0x1e8] sm:$0xff]
        %v2313 = vld [vmem:[#allocation8 + $0x1f0] sm:$0xff]
        %v2314 = vld [vmem:[#allocation8 + $0x1f8] sm:$0xff]
        %v2315 = vld [vmem:[#allocation8 + $0x200] sm:$0xff]
        %v2316 = vld [vmem:[#allocation8 + $0x208] sm:$0xff]
        %v2317 = vld [vmem:[#allocation8 + $0x210] sm:$0xff]
        %v2318 = vld [vmem:[#allocation8 + $0x218] sm:$0xff]
        %v2319 = vld [vmem:[#allocation8 + $0x220] sm:$0xff]
        %v2320 = vld [vmem:[#allocation8 + $0x228] sm:$0xff]
        %v2321 = vld [vmem:[#allocation8 + $0x230] sm:$0xff]
        %v2322 = vld [vmem:[#allocation8 + $0x238] sm:$0xff]
        %v2323 = vld [vmem:[#allocation8 + $0x240] sm:$0xff]
        %v2324 = vld [vmem:[#allocation8 + $0x248] sm:$0xff]
        %v2325 = vld [vmem:[#allocation8 + $0x250] sm:$0xff]
        %v2326 = vld [vmem:[#allocation8 + $0x258] sm:$0xff]
        %v2327 = vld [vmem:[#allocation8 + $0x260] sm:$0xff]
        %v2328 = vld [vmem:[#allocation8 + $0x268] sm:$0xff]
        %v2329 = vld [vmem:[#allocation8 + $0x270] sm:$0xff]
        %v2330 = vld [vmem:[#allocation8 + $0x278] sm:$0xff]
        %v2331 = vld [vmem:[#allocation8 + $0x280] sm:$0xff]
        %v2332 = vld [vmem:[#allocation8 + $0x288] sm:$0xff]
        %v2333 = vld [vmem:[#allocation8 + $0x290] sm:$0xff]
        %v2334 = vld [vmem:[#allocation8 + $0x298] sm:$0xff]
        %v2335 = vld [vmem:[#allocation8 + $0x2a0] sm:$0xff]
        %v2336 = vld [vmem:[#allocation8 + $0x2a8] sm:$0xff]
        %v2337 = vld [vmem:[#allocation8 + $0x2b0] sm:$0xff]
        %v2338 = vld [vmem:[#allocation8 + $0x2b8] sm:$0xff]
        %v2339 = vld [vmem:[#allocation8 + $0x2c0] sm:$0xff]
        %v2340 = vld [vmem:[#allocation8 + $0x2c8] sm:$0xff]
        %v2341 = vld [vmem:[#allocation8 + $0x2d0] sm:$0xff]
        %v2342 = vld [vmem:[#allocation8 + $0x2d8] sm:$0xff]
        %v2343 = vld [vmem:[#allocation8 + $0x2e0] sm:$0xff]
        %v2344 = vld [vmem:[#allocation8 + $0x2e8] sm:$0xff]
        %v2345 = vld [vmem:[#allocation8 + $0x2f0] sm:$0xff]
        %v2346 = vld [vmem:[#allocation8 + $0x2f8] sm:$0xff]
        %v2347 = vld [vmem:[#allocation8 + $0x300] sm:$0xff]
        %v2348 = vld [vmem:[#allocation8 + $0x308] sm:$0xff]
        %v2349 = vld [vmem:[#allocation8 + $0x310] sm:$0xff]
        %v2350 = vld [vmem:[#allocation8 + $0x318] sm:$0xff]
        %v2351 = vld [vmem:[#allocation8 + $0x320] sm:$0xff]
        %v2352 = vld [vmem:[#allocation8 + $0x328] sm:$0xff]
        %v2353 = vld [vmem:[#allocation8 + $0x330] sm:$0xff]
        %v2354 = vld [vmem:[#allocation8 + $0x338] sm:$0xff]
        %v2355 = vld [vmem:[#allocation8 + $0x340] sm:$0xff]
        %v2356 = vld [vmem:[#allocation8 + $0x348] sm:$0xff]
        %v2357 = vld [vmem:[#allocation8 + $0x350] sm:$0xff]
        %v2358 = vld [vmem:[#allocation8 + $0x358] sm:$0xff]
        %v2359 = vld [vmem:[#allocation8 + $0x360] sm:$0xff]
        %v2360 = vld [vmem:[#allocation8 + $0x368] sm:$0xff]
        %v2361 = vld [vmem:[#allocation8 + $0x370] sm:$0xff]
        %v2362 = vld [vmem:[#allocation8 + $0x378] sm:$0xff]
        %v2363 = vld [vmem:[#allocation8 + $0x380] sm:$0xff]
        %v2364 = vld [vmem:[#allocation8 + $0x388] sm:$0xff]
        %v2365 = vld [vmem:[#allocation8 + $0x390] sm:$0xff]
        %v2366 = vld [vmem:[#allocation8 + $0x398] sm:$0xff]
        %v2367 = vld [vmem:[#allocation8 + $0x3a0] sm:$0xff]
        %v2368 = vld [vmem:[#allocation8 + $0x3a8] sm:$0xff]
        %v2369 = vld [vmem:[#allocation8 + $0x3b0] sm:$0xff]
        %v2370 = vld [vmem:[#allocation8 + $0x3b8] sm:$0xff]
        %v2371 = vld [vmem:[#allocation8 + $0x3c0] sm:$0xff]
        %v2372 = vld [vmem:[#allocation8 + $0x3c8] sm:$0xff]
        %v2373 = vld [vmem:[#allocation8 + $0x3d0] sm:$0xff]
        %v2374 = vld [vmem:[#allocation8 + $0x3d8] sm:$0xff]
        %v2375 = vld [vmem:[#allocation8 + $0x3e0] sm:$0xff]
        %v2376 = vld [vmem:[#allocation8 + $0x3e8] sm:$0xff]
        %v2377 = vld [vmem:[#allocation8 + $0x3f0] sm:$0xff]
        %v2378 = vld [vmem:[#allocation8 + $0x3f8] sm:$0xff]
        %v2379 = vld [vmem:[%s6] sm:$0xf]
        %v2381 = vlaneseq
        %v2382 = vshrl.u32 %v2381, 7
        %v2383 = vsub.s32 0, %v2382
        %v2384 = vrot.slane %v2379, %v2383
        %v2385 = vlaneseq
        %v2386 = vshrl.u32 %v2385, 7
        %v2387 = vsub.s32 1, %v2386
        %v2388 = vrot.slane %v2379, %v2387
        %v2389 = vlaneseq
        %v2390 = vshrl.u32 %v2389, 7
        %v2391 = vsub.s32 2, %v2390
        %v2392 = vrot.slane %v2379, %v2391
        %v2393 = vlaneseq
        %v2394 = vshrl.u32 %v2393, 7
        %v2395 = vsub.s32 3, %v2394
        %v2396 = vrot.slane %v2379, %v2395
        %v2529 = vunpack.c.l.b16 %v2251
        %v2530 = vunpack.c.h.b16 %v2251
        %v2531 = vunpack.c.l.b16 %v2252
        %v2532 = vunpack.c.h.b16 %v2252
        %v2533 = vunpack.c.l.b16 %v2253
        %v2534 = vunpack.c.h.b16 %v2253
        %v2535 = vunpack.c.l.b16 %v2254
        %v2536 = vunpack.c.h.b16 %v2254
        %v2537 = vunpack.c.l.b16 %v2255
        %v2538 = vunpack.c.h.b16 %v2255
        %v2539 = vunpack.c.l.b16 %v2256
        %v2540 = vunpack.c.h.b16 %v2256
        %v2541 = vunpack.c.l.b16 %v2257
        %v2542 = vunpack.c.h.b16 %v2257
        %v2543 = vunpack.c.l.b16 %v2258
        %v2544 = vunpack.c.h.b16 %v2258
        %v2545 = vunpack.c.l.b16 %v2259
        %v2546 = vunpack.c.h.b16 %v2259
        %v2547 = vunpack.c.l.b16 %v2260
        %v2548 = vunpack.c.h.b16 %v2260
        %v2549 = vunpack.c.l.b16 %v2261
        %v2550 = vunpack.c.h.b16 %v2261
        %v2551 = vunpack.c.l.b16 %v2262
        %v2552 = vunpack.c.h.b16 %v2262
        %v2553 = vunpack.c.l.b16 %v2263
        %v2554 = vunpack.c.h.b16 %v2263
        %v2555 = vunpack.c.l.b16 %v2264
        %v2556 = vunpack.c.h.b16 %v2264
        %v2557 = vunpack.c.l.b16 %v2265
        %v2558 = vunpack.c.h.b16 %v2265
        %v2559 = vunpack.c.l.b16 %v2266
        %v2560 = vunpack.c.h.b16 %v2266
        %v2561 = vunpack.c.l.b16 %v2267
        %v2562 = vunpack.c.h.b16 %v2267
        %v2563 = vunpack.c.l.b16 %v2268
        %v2564 = vunpack.c.h.b16 %v2268
        %v2565 = vunpack.c.l.b16 %v2269
        %v2566 = vunpack.c.h.b16 %v2269
        %v2567 = vunpack.c.l.b16 %v2270
        %v2568 = vunpack.c.h.b16 %v2270
        %v2569 = vunpack.c.l.b16 %v2271
        %v2570 = vunpack.c.h.b16 %v2271
        %v2571 = vunpack.c.l.b16 %v2272
        %v2572 = vunpack.c.h.b16 %v2272
        %v2573 = vunpack.c.l.b16 %v2273
        %v2574 = vunpack.c.h.b16 %v2273
        %v2575 = vunpack.c.l.b16 %v2274
        %v2576 = vunpack.c.h.b16 %v2274
        %v2577 = vunpack.c.l.b16 %v2275
        %v2578 = vunpack.c.h.b16 %v2275
        %v2579 = vunpack.c.l.b16 %v2276
        %v2580 = vunpack.c.h.b16 %v2276
        %v2581 = vunpack.c.l.b16 %v2277
        %v2582 = vunpack.c.h.b16 %v2277
        %v2583 = vunpack.c.l.b16 %v2278
        %v2584 = vunpack.c.h.b16 %v2278
        %v2585 = vunpack.c.l.b16 %v2279
        %v2586 = vunpack.c.h.b16 %v2279
        %v2587 = vunpack.c.l.b16 %v2280
        %v2588 = vunpack.c.h.b16 %v2280
        %v2589 = vunpack.c.l.b16 %v2281
        %v2590 = vunpack.c.h.b16 %v2281
        %v2591 = vunpack.c.l.b16 %v2282
        %v2592 = vunpack.c.h.b16 %v2282
        %v2593 = vunpack.c.l.b16 %v2283
        %v2594 = vunpack.c.h.b16 %v2283
        %v2595 = vunpack.c.l.b16 %v2284
        %v2596 = vunpack.c.h.b16 %v2284
        %v2597 = vunpack.c.l.b16 %v2285
        %v2598 = vunpack.c.h.b16 %v2285
        %v2599 = vunpack.c.l.b16 %v2286
        %v2600 = vunpack.c.h.b16 %v2286
        %v2601 = vunpack.c.l.b16 %v2287
        %v2602 = vunpack.c.h.b16 %v2287
        %v2603 = vunpack.c.l.b16 %v2288
        %v2604 = vunpack.c.h.b16 %v2288
        %v2605 = vunpack.c.l.b16 %v2289
        %v2606 = vunpack.c.h.b16 %v2289
        %v2607 = vunpack.c.l.b16 %v2290
        %v2608 = vunpack.c.h.b16 %v2290
        %v2609 = vunpack.c.l.b16 %v2291
        %v2610 = vunpack.c.h.b16 %v2291
        %v2611 = vunpack.c.l.b16 %v2292
        %v2612 = vunpack.c.h.b16 %v2292
        %v2613 = vunpack.c.l.b16 %v2293
        %v2614 = vunpack.c.h.b16 %v2293
        %v2615 = vunpack.c.l.b16 %v2294
        %v2616 = vunpack.c.h.b16 %v2294
        %v2617 = vunpack.c.l.b16 %v2295
        %v2618 = vunpack.c.h.b16 %v2295
        %v2619 = vunpack.c.l.b16 %v2296
        %v2620 = vunpack.c.h.b16 %v2296
        %v2621 = vunpack.c.l.b16 %v2297
        %v2622 = vunpack.c.h.b16 %v2297
        %v2623 = vunpack.c.l.b16 %v2298
        %v2624 = vunpack.c.h.b16 %v2298
        %v2625 = vunpack.c.l.b16 %v2299
        %v2626 = vunpack.c.h.b16 %v2299
        %v2627 = vunpack.c.l.b16 %v2300
        %v2628 = vunpack.c.h.b16 %v2300
        %v2629 = vunpack.c.l.b16 %v2301
        %v2630 = vunpack.c.h.b16 %v2301
        %v2631 = vunpack.c.l.b16 %v2302
        %v2632 = vunpack.c.h.b16 %v2302
        %v2633 = vunpack.c.l.b16 %v2303
        %v2634 = vunpack.c.h.b16 %v2303
        %v2635 = vunpack.c.l.b16 %v2304
        %v2636 = vunpack.c.h.b16 %v2304
        %v2637 = vunpack.c.l.b16 %v2305
        %v2638 = vunpack.c.h.b16 %v2305
        %v2639 = vunpack.c.l.b16 %v2306
        %v2640 = vunpack.c.h.b16 %v2306
        %v2641 = vunpack.c.l.b16 %v2307
        %v2642 = vunpack.c.h.b16 %v2307
        %v2643 = vunpack.c.l.b16 %v2308
        %v2644 = vunpack.c.h.b16 %v2308
        %v2645 = vunpack.c.l.b16 %v2309
        %v2646 = vunpack.c.h.b16 %v2309
        %v2647 = vunpack.c.l.b16 %v2310
        %v2648 = vunpack.c.h.b16 %v2310
        %v2649 = vunpack.c.l.b16 %v2311
        %v2650 = vunpack.c.h.b16 %v2311
        %v2651 = vunpack.c.l.b16 %v2312
        %v2652 = vunpack.c.h.b16 %v2312
        %v2653 = vunpack.c.l.b16 %v2313
        %v2654 = vunpack.c.h.b16 %v2313
        %v2655 = vunpack.c.l.b16 %v2314
        %v2656 = vunpack.c.h.b16 %v2314
        %v2657 = vunpack.c.l.b16 %v2315
        %v2658 = vunpack.c.h.b16 %v2315
        %v2659 = vunpack.c.l.b16 %v2316
        %v2660 = vunpack.c.h.b16 %v2316
        %v2661 = vunpack.c.l.b16 %v2317
        %v2662 = vunpack.c.h.b16 %v2317
        %v2663 = vunpack.c.l.b16 %v2318
        %v2664 = vunpack.c.h.b16 %v2318
        %v2665 = vunpack.c.l.b16 %v2319
        %v2666 = vunpack.c.h.b16 %v2319
        %v2667 = vunpack.c.l.b16 %v2320
        %v2668 = vunpack.c.h.b16 %v2320
        %v2669 = vunpack.c.l.b16 %v2321
        %v2670 = vunpack.c.h.b16 %v2321
        %v2671 = vunpack.c.l.b16 %v2322
        %v2672 = vunpack.c.h.b16 %v2322
        %v2673 = vunpack.c.l.b16 %v2323
        %v2674 = vunpack.c.h.b16 %v2323
        %v2675 = vunpack.c.l.b16 %v2324
        %v2676 = vunpack.c.h.b16 %v2324
        %v2677 = vunpack.c.l.b16 %v2325
        %v2678 = vunpack.c.h.b16 %v2325
        %v2679 = vunpack.c.l.b16 %v2326
        %v2680 = vunpack.c.h.b16 %v2326
        %v2681 = vunpack.c.l.b16 %v2327
        %v2682 = vunpack.c.h.b16 %v2327
        %v2683 = vunpack.c.l.b16 %v2328
        %v2684 = vunpack.c.h.b16 %v2328
        %v2685 = vunpack.c.l.b16 %v2329
        %v2686 = vunpack.c.h.b16 %v2329
        %v2687 = vunpack.c.l.b16 %v2330
        %v2688 = vunpack.c.h.b16 %v2330
        %v2689 = vunpack.c.l.b16 %v2331
        %v2690 = vunpack.c.h.b16 %v2331
        %v2691 = vunpack.c.l.b16 %v2332
        %v2692 = vunpack.c.h.b16 %v2332
        %v2693 = vunpack.c.l.b16 %v2333
        %v2694 = vunpack.c.h.b16 %v2333
        %v2695 = vunpack.c.l.b16 %v2334
        %v2696 = vunpack.c.h.b16 %v2334
        %v2697 = vunpack.c.l.b16 %v2335
        %v2698 = vunpack.c.h.b16 %v2335
        %v2699 = vunpack.c.l.b16 %v2336
        %v2700 = vunpack.c.h.b16 %v2336
        %v2701 = vunpack.c.l.b16 %v2337
        %v2702 = vunpack.c.h.b16 %v2337
        %v2703 = vunpack.c.l.b16 %v2338
        %v2704 = vunpack.c.h.b16 %v2338
        %v2705 = vunpack.c.l.b16 %v2339
        %v2706 = vunpack.c.h.b16 %v2339
        %v2707 = vunpack.c.l.b16 %v2340
        %v2708 = vunpack.c.h.b16 %v2340
        %v2709 = vunpack.c.l.b16 %v2341
        %v2710 = vunpack.c.h.b16 %v2341
        %v2711 = vunpack.c.l.b16 %v2342
        %v2712 = vunpack.c.h.b16 %v2342
        %v2713 = vunpack.c.l.b16 %v2343
        %v2714 = vunpack.c.h.b16 %v2343
        %v2715 = vunpack.c.l.b16 %v2344
        %v2716 = vunpack.c.h.b16 %v2344
        %v2717 = vunpack.c.l.b16 %v2345
        %v2718 = vunpack.c.h.b16 %v2345
        %v2719 = vunpack.c.l.b16 %v2346
        %v2720 = vunpack.c.h.b16 %v2346
        %v2721 = vunpack.c.l.b16 %v2347
        %v2722 = vunpack.c.h.b16 %v2347
        %v2723 = vunpack.c.l.b16 %v2348
        %v2724 = vunpack.c.h.b16 %v2348
        %v2725 = vunpack.c.l.b16 %v2349
        %v2726 = vunpack.c.h.b16 %v2349
        %v2727 = vunpack.c.l.b16 %v2350
        %v2728 = vunpack.c.h.b16 %v2350
        %v2729 = vunpack.c.l.b16 %v2351
        %v2730 = vunpack.c.h.b16 %v2351
        %v2731 = vunpack.c.l.b16 %v2352
        %v2732 = vunpack.c.h.b16 %v2352
        %v2733 = vunpack.c.l.b16 %v2353
        %v2734 = vunpack.c.h.b16 %v2353
        %v2735 = vunpack.c.l.b16 %v2354
        %v2736 = vunpack.c.h.b16 %v2354
        %v2737 = vunpack.c.l.b16 %v2355
        %v2738 = vunpack.c.h.b16 %v2355
        %v2739 = vunpack.c.l.b16 %v2356
        %v2740 = vunpack.c.h.b16 %v2356
        %v2741 = vunpack.c.l.b16 %v2357
        %v2742 = vunpack.c.h.b16 %v2357
        %v2743 = vunpack.c.l.b16 %v2358
        %v2744 = vunpack.c.h.b16 %v2358
        %v2745 = vunpack.c.l.b16 %v2359
        %v2746 = vunpack.c.h.b16 %v2359
        %v2747 = vunpack.c.l.b16 %v2360
        %v2748 = vunpack.c.h.b16 %v2360
        %v2749 = vunpack.c.l.b16 %v2361
        %v2750 = vunpack.c.h.b16 %v2361
        %v2751 = vunpack.c.l.b16 %v2362
        %v2752 = vunpack.c.h.b16 %v2362
        %v2753 = vunpack.c.l.b16 %v2363
        %v2754 = vunpack.c.h.b16 %v2363
        %v2755 = vunpack.c.l.b16 %v2364
        %v2756 = vunpack.c.h.b16 %v2364
        %v2757 = vunpack.c.l.b16 %v2365
        %v2758 = vunpack.c.h.b16 %v2365
        %v2759 = vunpack.c.l.b16 %v2366
        %v2760 = vunpack.c.h.b16 %v2366
        %v2761 = vunpack.c.l.b16 %v2367
        %v2762 = vunpack.c.h.b16 %v2367
        %v2763 = vunpack.c.l.b16 %v2368
        %v2764 = vunpack.c.h.b16 %v2368
        %v2765 = vunpack.c.l.b16 %v2369
        %v2766 = vunpack.c.h.b16 %v2369
        %v2767 = vunpack.c.l.b16 %v2370
        %v2768 = vunpack.c.h.b16 %v2370
        %v2769 = vunpack.c.l.b16 %v2371
        %v2770 = vunpack.c.h.b16 %v2371
        %v2771 = vunpack.c.l.b16 %v2372
        %v2772 = vunpack.c.h.b16 %v2372
        %v2773 = vunpack.c.l.b16 %v2373
        %v2774 = vunpack.c.h.b16 %v2373
        %v2775 = vunpack.c.l.b16 %v2374
        %v2776 = vunpack.c.h.b16 %v2374
        %v2777 = vunpack.c.l.b16 %v2375
        %v2778 = vunpack.c.h.b16 %v2375
        %v2779 = vunpack.c.l.b16 %v2376
        %v2780 = vunpack.c.h.b16 %v2376
        %v2781 = vunpack.c.l.b16 %v2377
        %v2782 = vunpack.c.h.b16 %v2377
        %v2783 = vunpack.c.l.b16 %v2378
        %v2784 = vunpack.c.h.b16 %v2378
        %v2785 = vpack.c.b16 %v2533, %v2529
        %v2786 = vpack.c.b16 %v2534, %v2530
        %v2787 = vpack.c.b16 %v2535, %v2531
        %v2788 = vpack.c.b16 %v2536, %v2532
        %v2789 = vpack.c.b16 %v2541, %v2537
        %v2790 = vpack.c.b16 %v2542, %v2538
        %v2791 = vpack.c.b16 %v2543, %v2539
        %v2792 = vpack.c.b16 %v2544, %v2540
        %v2793 = vpack.c.b16 %v2549, %v2545
        %v2794 = vpack.c.b16 %v2550, %v2546
        %v2795 = vpack.c.b16 %v2551, %v2547
        %v2796 = vpack.c.b16 %v2552, %v2548
        %v2797 = vpack.c.b16 %v2557, %v2553
        %v2798 = vpack.c.b16 %v2558, %v2554
        %v2799 = vpack.c.b16 %v2559, %v2555
        %v2800 = vpack.c.b16 %v2560, %v2556
        %v2801 = vpack.c.b16 %v2565, %v2561
        %v2802 = vpack.c.b16 %v2566, %v2562
        %v2803 = vpack.c.b16 %v2567, %v2563
        %v2804 = vpack.c.b16 %v2568, %v2564
        %v2805 = vpack.c.b16 %v2573, %v2569
        %v2806 = vpack.c.b16 %v2574, %v2570
        %v2807 = vpack.c.b16 %v2575, %v2571
        %v2808 = vpack.c.b16 %v2576, %v2572
        %v2809 = vpack.c.b16 %v2581, %v2577
        %v2810 = vpack.c.b16 %v2582, %v2578
        %v2811 = vpack.c.b16 %v2583, %v2579
        %v2812 = vpack.c.b16 %v2584, %v2580
        %v2813 = vpack.c.b16 %v2589, %v2585
        %v2814 = vpack.c.b16 %v2590, %v2586
        %v2815 = vpack.c.b16 %v2591, %v2587
        %v2816 = vpack.c.b16 %v2592, %v2588
        %v2817 = vpack.c.b16 %v2597, %v2593
        %v2818 = vpack.c.b16 %v2598, %v2594
        %v2819 = vpack.c.b16 %v2599, %v2595
        %v2820 = vpack.c.b16 %v2600, %v2596
        %v2821 = vpack.c.b16 %v2605, %v2601
        %v2822 = vpack.c.b16 %v2606, %v2602
        %v2823 = vpack.c.b16 %v2607, %v2603
        %v2824 = vpack.c.b16 %v2608, %v2604
        %v2825 = vpack.c.b16 %v2613, %v2609
        %v2826 = vpack.c.b16 %v2614, %v2610
        %v2827 = vpack.c.b16 %v2615, %v2611
        %v2828 = vpack.c.b16 %v2616, %v2612
        %v2829 = vpack.c.b16 %v2621, %v2617
        %v2830 = vpack.c.b16 %v2622, %v2618
        %v2831 = vpack.c.b16 %v2623, %v2619
        %v2832 = vpack.c.b16 %v2624, %v2620
        %v2833 = vpack.c.b16 %v2629, %v2625
        %v2834 = vpack.c.b16 %v2630, %v2626
        %v2835 = vpack.c.b16 %v2631, %v2627
        %v2836 = vpack.c.b16 %v2632, %v2628
        %v2837 = vpack.c.b16 %v2637, %v2633
        %v2838 = vpack.c.b16 %v2638, %v2634
        %v2839 = vpack.c.b16 %v2639, %v2635
        %v2840 = vpack.c.b16 %v2640, %v2636
        %v2841 = vpack.c.b16 %v2645, %v2641
        %v2842 = vpack.c.b16 %v2646, %v2642
        %v2843 = vpack.c.b16 %v2647, %v2643
        %v2844 = vpack.c.b16 %v2648, %v2644
        %v2845 = vpack.c.b16 %v2653, %v2649
        %v2846 = vpack.c.b16 %v2654, %v2650
        %v2847 = vpack.c.b16 %v2655, %v2651
        %v2848 = vpack.c.b16 %v2656, %v2652
        %v2849 = vpack.c.b16 %v2661, %v2657
        %v2850 = vpack.c.b16 %v2662, %v2658
        %v2851 = vpack.c.b16 %v2663, %v2659
        %v2852 = vpack.c.b16 %v2664, %v2660
        %v2853 = vpack.c.b16 %v2669, %v2665
        %v2854 = vpack.c.b16 %v2670, %v2666
        %v2855 = vpack.c.b16 %v2671, %v2667
        %v2856 = vpack.c.b16 %v2672, %v2668
        %v2857 = vpack.c.b16 %v2677, %v2673
        %v2858 = vpack.c.b16 %v2678, %v2674
        %v2859 = vpack.c.b16 %v2679, %v2675
        %v2860 = vpack.c.b16 %v2680, %v2676
        %v2861 = vpack.c.b16 %v2685, %v2681
        %v2862 = vpack.c.b16 %v2686, %v2682
        %v2863 = vpack.c.b16 %v2687, %v2683
        %v2864 = vpack.c.b16 %v2688, %v2684
        %v2865 = vpack.c.b16 %v2693, %v2689
        %v2866 = vpack.c.b16 %v2694, %v2690
        %v2867 = vpack.c.b16 %v2695, %v2691
        %v2868 = vpack.c.b16 %v2696, %v2692
        %v2869 = vpack.c.b16 %v2701, %v2697
        %v2870 = vpack.c.b16 %v2702, %v2698
        %v2871 = vpack.c.b16 %v2703, %v2699
        %v2872 = vpack.c.b16 %v2704, %v2700
        %v2873 = vpack.c.b16 %v2709, %v2705
        %v2874 = vpack.c.b16 %v2710, %v2706
        %v2875 = vpack.c.b16 %v2711, %v2707
        %v2876 = vpack.c.b16 %v2712, %v2708
        %v2877 = vpack.c.b16 %v2717, %v2713
        %v2878 = vpack.c.b16 %v2718, %v2714
        %v2879 = vpack.c.b16 %v2719, %v2715
        %v2880 = vpack.c.b16 %v2720, %v2716
        %v2881 = vpack.c.b16 %v2725, %v2721
        %v2882 = vpack.c.b16 %v2726, %v2722
        %v2883 = vpack.c.b16 %v2727, %v2723
        %v2884 = vpack.c.b16 %v2728, %v2724
        %v2885 = vpack.c.b16 %v2733, %v2729
        %v2886 = vpack.c.b16 %v2734, %v2730
        %v2887 = vpack.c.b16 %v2735, %v2731
        %v2888 = vpack.c.b16 %v2736, %v2732
        %v2889 = vpack.c.b16 %v2741, %v2737
        %v2890 = vpack.c.b16 %v2742, %v2738
        %v2891 = vpack.c.b16 %v2743, %v2739
        %v2892 = vpack.c.b16 %v2744, %v2740
        %v2893 = vpack.c.b16 %v2749, %v2745
        %v2894 = vpack.c.b16 %v2750, %v2746
        %v2895 = vpack.c.b16 %v2751, %v2747
        %v2896 = vpack.c.b16 %v2752, %v2748
        %v2897 = vpack.c.b16 %v2757, %v2753
        %v2898 = vpack.c.b16 %v2758, %v2754
        %v2899 = vpack.c.b16 %v2759, %v2755
        %v2900 = vpack.c.b16 %v2760, %v2756
        %v2901 = vpack.c.b16 %v2765, %v2761
        %v2902 = vpack.c.b16 %v2766, %v2762
        %v2903 = vpack.c.b16 %v2767, %v2763
        %v2904 = vpack.c.b16 %v2768, %v2764
        %v2905 = vpack.c.b16 %v2773, %v2769
        %v2906 = vpack.c.b16 %v2774, %v2770
        %v2907 = vpack.c.b16 %v2775, %v2771
        %v2908 = vpack.c.b16 %v2776, %v2772
        %v2909 = vpack.c.b16 %v2781, %v2777
        %v2910 = vpack.c.b16 %v2782, %v2778
        %v2911 = vpack.c.b16 %v2783, %v2779
        %v2912 = vpack.c.b16 %v2784, %v2780
        %3041 = vmatprep.subr.bf16.mxu0 %v2786
        %3042 = vmatpush1.bf16.msra.mxu0 %v2785
        %3043 = vmatprep.subr.bf16.mxu0 %v2790
        %3044 = vmatpush1.bf16.msra.mxu0 %v2789
        %3045 = vmatprep.subr.bf16.mxu0 %v2794
        %3046 = vmatpush1.bf16.msra.mxu0 %v2793
        %3047 = vmatprep.subr.bf16.mxu0 %v2798
        %3048 = vmatpush1.bf16.msra.mxu0 %v2797
        %3049 = vmatprep.subr.bf16.mxu0 %v2802
        %3050 = vmatpush1.bf16.msra.mxu0 %v2801
        %3051 = vmatprep.subr.bf16.mxu0 %v2806
        %3052 = vmatpush1.bf16.msra.mxu0 %v2805
        %3053 = vmatprep.subr.bf16.mxu0 %v2810
        %3054 = vmatpush1.bf16.msra.mxu0 %v2809
        %3055 = vmatprep.subr.bf16.mxu0 %v2814
        %3056 = vmatpush1.bf16.msra.mxu0 %v2813
        %3057 = vmatprep.subr.bf16.mxu0 %v2818
        %3058 = vmatpush1.bf16.msra.mxu0 %v2817
        %3059 = vmatprep.subr.bf16.mxu0 %v2822
        %3060 = vmatpush1.bf16.msra.mxu0 %v2821
        %3061 = vmatprep.subr.bf16.mxu0 %v2826
        %3062 = vmatpush1.bf16.msra.mxu0 %v2825
        %3063 = vmatprep.subr.bf16.mxu0 %v2830
        %3064 = vmatpush1.bf16.msra.mxu0 %v2829
        %3065 = vmatprep.subr.bf16.mxu0 %v2834
        %3066 = vmatpush1.bf16.msra.mxu0 %v2833
        %3067 = vmatprep.subr.bf16.mxu0 %v2838
        %3068 = vmatpush1.bf16.msra.mxu0 %v2837
        %3069 = vmatprep.subr.bf16.mxu0 %v2842
        %3070 = vmatpush1.bf16.msra.mxu0 %v2841
        %3071 = vmatprep.subr.bf16.mxu0 %v2846
        %3072 = vmatpush1.bf16.msra.mxu0 %v2845
        %3073 = vmatprep.mubr.bf16.mxu0 %v2220
        %3074 = vmatmul.mubr.bf16.gmra.mrb[0].mxu0 %v2219
        %v3075 = vpop.f32.mrb[0].mxu0
        %v3076 = vadd.f32 %v2384, %v3075
        %v3077 = vpop.f32.mrb[0].mxu0
        %v3078 = vadd.f32 %v2388, %v3077
        %v3079 = vpop.f32.mrb[0].mxu0
        %v3080 = vadd.f32 %v2384, %v3079
        %v3081 = vpop.f32.mrb[0].mxu0
        %v3082 = vadd.f32 %v2388, %v3081
        %3083 = vmatprep.mubr.bf16.mxu0 %v2224
        %3084 = vmatmul.mubr.bf16.gmra.mrb[0].mxu0 %v2223
        %v3085 = vpop.f32.mrb[0].mxu0
        %v3086 = vadd.f32 %v2384, %v3085
        %v3087 = vpop.f32.mrb[0].mxu0
        %v3088 = vadd.f32 %v2388, %v3087
        %v3089 = vpop.f32.mrb[0].mxu0
        %v3090 = vadd.f32 %v2384, %v3089
        %v3091 = vpop.f32.mrb[0].mxu0
        %v3092 = vadd.f32 %v2388, %v3091
        %3093 = vmatprep.mubr.bf16.mxu0 %v2228
        %3094 = vmatmul.mubr.bf16.gmra.mrb[0].mxu0 %v2227
        %v3095 = vpop.f32.mrb[0].mxu0
        %v3096 = vadd.f32 %v2384, %v3095
        %v3097 = vpop.f32.mrb[0].mxu0
        %v3098 = vadd.f32 %v2388, %v3097
        %v3099 = vpop.f32.mrb[0].mxu0
        %v3100 = vadd.f32 %v2384, %v3099
        %v3101 = vpop.f32.mrb[0].mxu0
        %v3102 = vadd.f32 %v2388, %v3101
        %3103 = vmatprep.mubr.bf16.mxu0 %v2232
        %3104 = vmatmul.mubr.bf16.gmra.mrb[0].mxu0 %v2231
        %v3105 = vpop.f32.mrb[0].mxu0
        %v3106 = vadd.f32 %v2384, %v3105
        %v3107 = vpop.f32.mrb[0].mxu0
        %v3108 = vadd.f32 %v2388, %v3107
        %v3109 = vpop.f32.mrb[0].mxu0
        %v3110 = vadd.f32 %v2384, %v3109
        %v3111 = vpop.f32.mrb[0].mxu0
        %v3112 = vadd.f32 %v2388, %v3111
        %3113 = vmatprep.mubr.bf16.mxu0 %v2236
        %3114 = vmatmul.mubr.bf16.gmra.mrb[0].mxu0 %v2235
        %v3115 = vpop.f32.mrb[0].mxu0
        %v3116 = vadd.f32 %v2384, %v3115
        %v3117 = vpop.f32.mrb[0].mxu0
        %v3118 = vadd.f32 %v2388, %v3117
        %v3119 = vpop.f32.mrb[0].mxu0
        %v3120 = vadd.f32 %v2384, %v3119
        %v3121 = vpop.f32.mrb[0].mxu0
        %v3122 = vadd.f32 %v2388, %v3121
        %3123 = vmatprep.mubr.bf16.mxu0 %v2240
        %3124 = vmatmul.mubr.bf16.gmra.mrb[0].mxu0 %v2239
        %v3125 = vpop.f32.mrb[0].mxu0
        %v3126 = vadd.f32 %v2384, %v3125
        %v3127 = vpop.f32.mrb[0].mxu0
        %v3128 = vadd.f32 %v2388, %v3127
        %v3129 = vpop.f32.mrb[0].mxu0
        %v3130 = vadd.f32 %v2384, %v3129
        %v3131 = vpop.f32.mrb[0].mxu0
        %v3132 = vadd.f32 %v2388, %v3131
        %3133 = vmatprep.mubr.bf16.mxu0 %v2244
        %3134 = vmatmul.mubr.bf16.gmra.mrb[0].mxu0 %v2243
        %v3135 = vpop.f32.mrb[0].mxu0
        %v3136 = vadd.f32 %v2384, %v3135
        %v3137 = vpop.f32.mrb[0].mxu0
        %v3138 = vadd.f32 %v2388, %v3137
        %v3139 = vpop.f32.mrb[0].mxu0
        %v3140 = vadd.f32 %v2384, %v3139
        %v3141 = vpop.f32.mrb[0].mxu0
        %v3142 = vadd.f32 %v2388, %v3141
        %3143 = vmatprep.mubr.bf16.mxu0 %v2248
        %3144 = vmatmul.mubr.bf16.gmra.mrb[0].mxu0 %v2247
        %v3145 = vpop.f32.mrb[0].mxu0
        %v3146 = vadd.f32 %v2384, %v3145
        %v3147 = vpop.f32.mrb[0].mxu0
        %v3148 = vadd.f32 %v2388, %v3147
        %v3149 = vpop.f32.mrb[0].mxu0
        %v3150 = vadd.f32 %v2384, %v3149
        %v3151 = vpop.f32.mrb[0].mxu0
        %v3152 = vadd.f32 %v2388, %v3151
        %3153 = vdwg.mxu0
        %3154 = vmatprep.subr.bf16.mxu0 %v2850
        %3155 = vmatpush1.bf16.msra.mxu0 %v2849
        %3156 = vmatprep.subr.bf16.mxu0 %v2854
        %3157 = vmatpush1.bf16.msra.mxu0 %v2853
        %3158 = vmatprep.subr.bf16.mxu0 %v2858
        %3159 = vmatpush1.bf16.msra.mxu0 %v2857
        %3160 = vmatprep.subr.bf16.mxu0 %v2862
        %3161 = vmatpush1.bf16.msra.mxu0 %v2861
        %3162 = vmatprep.subr.bf16.mxu0 %v2866
        %3163 = vmatpush1.bf16.msra.mxu0 %v2865
        %3164 = vmatprep.subr.bf16.mxu0 %v2870
        %3165 = vmatpush1.bf16.msra.mxu0 %v2869
        %3166 = vmatprep.subr.bf16.mxu0 %v2874
        %3167 = vmatpush1.bf16.msra.mxu0 %v2873
        %3168 = vmatprep.subr.bf16.mxu0 %v2878
        %3169 = vmatpush1.bf16.msra.mxu0 %v2877
        %3170 = vmatprep.subr.bf16.mxu0 %v2882
        %3171 = vmatpush1.bf16.msra.mxu0 %v2881
        %3172 = vmatprep.subr.bf16.mxu0 %v2886
        %3173 = vmatpush1.bf16.msra.mxu0 %v2885
        %3174 = vmatprep.subr.bf16.mxu0 %v2890
        %3175 = vmatpush1.bf16.msra.mxu0 %v2889
        %3176 = vmatprep.subr.bf16.mxu0 %v2894
        %3177 = vmatpush1.bf16.msra.mxu0 %v2893
        %3178 = vmatprep.subr.bf16.mxu0 %v2898
        %3179 = vmatpush1.bf16.msra.mxu0 %v2897
        %3180 = vmatprep.subr.bf16.mxu0 %v2902
        %3181 = vmatpush1.bf16.msra.mxu0 %v2901
        %3182 = vmatprep.subr.bf16.mxu0 %v2906
        %3183 = vmatpush1.bf16.msra.mxu0 %v2905
        %3184 = vmatprep.subr.bf16.mxu0 %v2910
        %3185 = vmatpush1.bf16.msra.mxu0 %v2909
        %3186 = vmatprep.mubr.bf16.mxu0 %v2222
        %3187 = vmatmul.mubr.bf16.gmra.mrb[0].mxu0 %v2221
        %v3188 = vpop.f32.mrb[0].mxu0
        %v3189 = vadd.f32 %v3076, %v3188
        %v3190 = vpop.f32.mrb[0].mxu0
        %v3191 = vadd.f32 %v3078, %v3190
        %v3192 = vpop.f32.mrb[0].mxu0
        %v3193 = vadd.f32 %v3080, %v3192
        %v3194 = vpop.f32.mrb[0].mxu0
        %v3195 = vadd.f32 %v3082, %v3194
        %3196 = vmatprep.mubr.bf16.mxu0 %v2226
        %3197 = vmatmul.mubr.bf16.gmra.mrb[0].mxu0 %v2225
        %v3198 = vpop.f32.mrb[0].mxu0
        %v3199 = vadd.f32 %v3086, %v3198
        %v3200 = vpop.f32.mrb[0].mxu0
        %v3201 = vadd.f32 %v3088, %v3200
        %v3202 = vpop.f32.mrb[0].mxu0
        %v3203 = vadd.f32 %v3090, %v3202
        %v3204 = vpop.f32.mrb[0].mxu0
        %v3205 = vadd.f32 %v3092, %v3204
        %3206 = vmatprep.mubr.bf16.mxu0 %v2230
        %3207 = vmatmul.mubr.bf16.gmra.mrb[0].mxu0 %v2229
        %v3208 = vpop.f32.mrb[0].mxu0
        %v3209 = vadd.f32 %v3096, %v3208
        %v3210 = vpop.f32.mrb[0].mxu0
        %v3211 = vadd.f32 %v3098, %v3210
        %v3212 = vpop.f32.mrb[0].mxu0
        %v3213 = vadd.f32 %v3100, %v3212
        %v3214 = vpop.f32.mrb[0].mxu0
        %v3215 = vadd.f32 %v3102, %v3214
        %3216 = vmatprep.mubr.bf16.mxu0 %v2234
        %3217 = vmatmul.mubr.bf16.gmra.mrb[0].mxu0 %v2233
        %v3218 = vpop.f32.mrb[0].mxu0
        %v3219 = vadd.f32 %v3106, %v3218
        %v3220 = vpop.f32.mrb[0].mxu0
        %v3221 = vadd.f32 %v3108, %v3220
        %v3222 = vpop.f32.mrb[0].mxu0
        %v3223 = vadd.f32 %v3110, %v3222
        %v3224 = vpop.f32.mrb[0].mxu0
        %v3225 = vadd.f32 %v3112, %v3224
        %3226 = vmatprep.mubr.bf16.mxu0 %v2238
        %3227 = vmatmul.mubr.bf16.gmra.mrb[0].mxu0 %v2237
        %v3228 = vpop.f32.mrb[0].mxu0
        %v3229 = vadd.f32 %v3116, %v3228
        %v3230 = vpop.f32.mrb[0].mxu0
        %v3231 = vadd.f32 %v3118, %v3230
        %v3232 = vpop.f32.mrb[0].mxu0
        %v3233 = vadd.f32 %v3120, %v3232
        %v3234 = vpop.f32.mrb[0].mxu0
        %v3235 = vadd.f32 %v3122, %v3234
        %3236 = vmatprep.mubr.bf16.mxu0 %v2242
        %3237 = vmatmul.mubr.bf16.gmra.mrb[0].mxu0 %v2241
        %v3238 = vpop.f32.mrb[0].mxu0
        %v3239 = vadd.f32 %v3126, %v3238
        %v3240 = vpop.f32.mrb[0].mxu0
        %v3241 = vadd.f32 %v3128, %v3240
        %v3242 = vpop.f32.mrb[0].mxu0
        %v3243 = vadd.f32 %v3130, %v3242
        %v3244 = vpop.f32.mrb[0].mxu0
        %v3245 = vadd.f32 %v3132, %v3244
        %3246 = vmatprep.mubr.bf16.mxu0 %v2246
        %3247 = vmatmul.mubr.bf16.gmra.mrb[0].mxu0 %v2245
        %v3248 = vpop.f32.mrb[0].mxu0
        %v3249 = vadd.f32 %v3136, %v3248
        %v3250 = vpop.f32.mrb[0].mxu0
        %v3251 = vadd.f32 %v3138, %v3250
        %v3252 = vpop.f32.mrb[0].mxu0
        %v3253 = vadd.f32 %v3140, %v3252
        %v3254 = vpop.f32.mrb[0].mxu0
        %v3255 = vadd.f32 %v3142, %v3254
        %3256 = vmatprep.mubr.bf16.mxu0 %v2250
        %3257 = vmatmul.mubr.bf16.gmra.mrb[0].mxu0 %v2249
        %v3258 = vpop.f32.mrb[0].mxu0
        %v3259 = vadd.f32 %v3146, %v3258
        %v3260 = vpop.f32.mrb[0].mxu0
        %v3261 = vadd.f32 %v3148, %v3260
        %v3262 = vpop.f32.mrb[0].mxu0
        %v3263 = vadd.f32 %v3150, %v3262
        %v3264 = vpop.f32.mrb[0].mxu0
        %v3265 = vadd.f32 %v3152, %v3264
        %3266 = vdwg.mxu0
        %3267 = vmatprep.subr.bf16.mxu0 %v2788
        %3268 = vmatpush1.bf16.msra.mxu0 %v2787
        %3269 = vmatprep.subr.bf16.mxu0 %v2792
        %3270 = vmatpush1.bf16.msra.mxu0 %v2791
        %3271 = vmatprep.subr.bf16.mxu0 %v2796
        %3272 = vmatpush1.bf16.msra.mxu0 %v2795
        %3273 = vmatprep.subr.bf16.mxu0 %v2800
        %3274 = vmatpush1.bf16.msra.mxu0 %v2799
        %3275 = vmatprep.subr.bf16.mxu0 %v2804
        %3276 = vmatpush1.bf16.msra.mxu0 %v2803
        %3277 = vmatprep.subr.bf16.mxu0 %v2808
        %3278 = vmatpush1.bf16.msra.mxu0 %v2807
        %3279 = vmatprep.subr.bf16.mxu0 %v2812
        %3280 = vmatpush1.bf16.msra.mxu0 %v2811
        %3281 = vmatprep.subr.bf16.mxu0 %v2816
        %3282 = vmatpush1.bf16.msra.mxu0 %v2815
        %3283 = vmatprep.subr.bf16.mxu0 %v2820
        %3284 = vmatpush1.bf16.msra.mxu0 %v2819
        %3285 = vmatprep.subr.bf16.mxu0 %v2824
        %3286 = vmatpush1.bf16.msra.mxu0 %v2823
        %3287 = vmatprep.subr.bf16.mxu0 %v2828
        %3288 = vmatpush1.bf16.msra.mxu0 %v2827
        %3289 = vmatprep.subr.bf16.mxu0 %v2832
        %3290 = vmatpush1.bf16.msra.mxu0 %v2831
        %3291 = vmatprep.subr.bf16.mxu0 %v2836
        %3292 = vmatpush1.bf16.msra.mxu0 %v2835
        %3293 = vmatprep.subr.bf16.mxu0 %v2840
        %3294 = vmatpush1.bf16.msra.mxu0 %v2839
        %3295 = vmatprep.subr.bf16.mxu0 %v2844
        %3296 = vmatpush1.bf16.msra.mxu0 %v2843
        %3297 = vmatprep.subr.bf16.mxu0 %v2848
        %3298 = vmatpush1.bf16.msra.mxu0 %v2847
        %3299 = vmatprep.mubr.bf16.mxu0 %v2220
        %3300 = vmatmul.mubr.bf16.gmra.mrb[0].mxu0 %v2219
        %v3301 = vpop.f32.mrb[0].mxu0
        %v3302 = vadd.f32 %v2392, %v3301
        %v3303 = vpop.f32.mrb[0].mxu0
        %v3304 = vadd.f32 %v2396, %v3303
        %v3305 = vpop.f32.mrb[0].mxu0
        %v3306 = vadd.f32 %v2392, %v3305
        %v3307 = vpop.f32.mrb[0].mxu0
        %v3308 = vadd.f32 %v2396, %v3307
        %3309 = vmatprep.mubr.bf16.mxu0 %v2224
        %3310 = vmatmul.mubr.bf16.gmra.mrb[0].mxu0 %v2223
        %v3311 = vpop.f32.mrb[0].mxu0
        %v3312 = vadd.f32 %v2392, %v3311
        %v3313 = vpop.f32.mrb[0].mxu0
        %v3314 = vadd.f32 %v2396, %v3313
        %v3315 = vpop.f32.mrb[0].mxu0
        %v3316 = vadd.f32 %v2392, %v3315
        %v3317 = vpop.f32.mrb[0].mxu0
        %v3318 = vadd.f32 %v2396, %v3317
        %3319 = vmatprep.mubr.bf16.mxu0 %v2228
        %3320 = vmatmul.mubr.bf16.gmra.mrb[0].mxu0 %v2227
        %v3321 = vpop.f32.mrb[0].mxu0
        %v3322 = vadd.f32 %v2392, %v3321
        %v3323 = vpop.f32.mrb[0].mxu0
        %v3324 = vadd.f32 %v2396, %v3323
        %v3325 = vpop.f32.mrb[0].mxu0
        %v3326 = vadd.f32 %v2392, %v3325
        %v3327 = vpop.f32.mrb[0].mxu0
        %v3328 = vadd.f32 %v2396, %v3327
        %3329 = vmatprep.mubr.bf16.mxu0 %v2232
        %3330 = vmatmul.mubr.bf16.gmra.mrb[0].mxu0 %v2231
        %v3331 = vpop.f32.mrb[0].mxu0
        %v3332 = vadd.f32 %v2392, %v3331
        %v3333 = vpop.f32.mrb[0].mxu0
        %v3334 = vadd.f32 %v2396, %v3333
        %v3335 = vpop.f32.mrb[0].mxu0
        %v3336 = vadd.f32 %v2392, %v3335
        %v3337 = vpop.f32.mrb[0].mxu0
        %v3338 = vadd.f32 %v2396, %v3337
        %3339 = vmatprep.mubr.bf16.mxu0 %v2236
        %3340 = vmatmul.mubr.bf16.gmra.mrb[0].mxu0 %v2235
        %v3341 = vpop.f32.mrb[0].mxu0
        %v3342 = vadd.f32 %v2392, %v3341
        %v3343 = vpop.f32.mrb[0].mxu0
        %v3344 = vadd.f32 %v2396, %v3343
        %v3345 = vpop.f32.mrb[0].mxu0
        %v3346 = vadd.f32 %v2392, %v3345
        %v3347 = vpop.f32.mrb[0].mxu0
        %v3348 = vadd.f32 %v2396, %v3347
        %3349 = vmatprep.mubr.bf16.mxu0 %v2240
        %3350 = vmatmul.mubr.bf16.gmra.mrb[0].mxu0 %v2239
        %v3351 = vpop.f32.mrb[0].mxu0
        %v3352 = vadd.f32 %v2392, %v3351
        %v3353 = vpop.f32.mrb[0].mxu0
        %v3354 = vadd.f32 %v2396, %v3353
        %v3355 = vpop.f32.mrb[0].mxu0
        %v3356 = vadd.f32 %v2392, %v3355
        %v3357 = vpop.f32.mrb[0].mxu0
        %v3358 = vadd.f32 %v2396, %v3357
        %3359 = vmatprep.mubr.bf16.mxu0 %v2244
        %3360 = vmatmul.mubr.bf16.gmra.mrb[0].mxu0 %v2243
        %v3361 = vpop.f32.mrb[0].mxu0
        %v3362 = vadd.f32 %v2392, %v3361
        %v3363 = vpop.f32.mrb[0].mxu0
        %v3364 = vadd.f32 %v2396, %v3363
        %v3365 = vpop.f32.mrb[0].mxu0
        %v3366 = vadd.f32 %v2392, %v3365
        %v3367 = vpop.f32.mrb[0].mxu0
        %v3368 = vadd.f32 %v2396, %v3367
        %3369 = vmatprep.mubr.bf16.mxu0 %v2248
        %3370 = vmatmul.mubr.bf16.gmra.mrb[0].mxu0 %v2247
        %v3371 = vpop.f32.mrb[0].mxu0
        %v3372 = vadd.f32 %v2392, %v3371
        %v3373 = vpop.f32.mrb[0].mxu0
        %v3374 = vadd.f32 %v2396, %v3373
        %v3375 = vpop.f32.mrb[0].mxu0
        %v3376 = vadd.f32 %v2392, %v3375
        %v3377 = vpop.f32.mrb[0].mxu0
        %v3378 = vadd.f32 %v2396, %v3377
        %3379 = vdwg.mxu0
        %3380 = vmatprep.subr.bf16.mxu0 %v2852
        %3381 = vmatpush1.bf16.msra.mxu0 %v2851
        %3382 = vmatprep.subr.bf16.mxu0 %v2856
        %3383 = vmatpush1.bf16.msra.mxu0 %v2855
        %3384 = vmatprep.subr.bf16.mxu0 %v2860
        %3385 = vmatpush1.bf16.msra.mxu0 %v2859
        %3386 = vmatprep.subr.bf16.mxu0 %v2864
        %3387 = vmatpush1.bf16.msra.mxu0 %v2863
        %3388 = vmatprep.subr.bf16.mxu0 %v2868
        %3389 = vmatpush1.bf16.msra.mxu0 %v2867
        %3390 = vmatprep.subr.bf16.mxu0 %v2872
        %3391 = vmatpush1.bf16.msra.mxu0 %v2871
        %3392 = vmatprep.subr.bf16.mxu0 %v2876
        %3393 = vmatpush1.bf16.msra.mxu0 %v2875
        %3394 = vmatprep.subr.bf16.mxu0 %v2880
        %3395 = vmatpush1.bf16.msra.mxu0 %v2879
        %3396 = vmatprep.subr.bf16.mxu0 %v2884
        %3397 = vmatpush1.bf16.msra.mxu0 %v2883
        %3398 = vmatprep.subr.bf16.mxu0 %v2888
        %3399 = vmatpush1.bf16.msra.mxu0 %v2887
        %3400 = vmatprep.subr.bf16.mxu0 %v2892
        %3401 = vmatpush1.bf16.msra.mxu0 %v2891
        %3402 = vmatprep.subr.bf16.mxu0 %v2896
        %3403 = vmatpush1.bf16.msra.mxu0 %v2895
        %3404 = vmatprep.subr.bf16.mxu0 %v2900
        %3405 = vmatpush1.bf16.msra.mxu0 %v2899
        %3406 = vmatprep.subr.bf16.mxu0 %v2904
        %3407 = vmatpush1.bf16.msra.mxu0 %v2903
        %3408 = vmatprep.subr.bf16.mxu0 %v2908
        %3409 = vmatpush1.bf16.msra.mxu0 %v2907
        %3410 = vmatprep.subr.bf16.mxu0 %v2912
        %3411 = vmatpush1.bf16.msra.mxu0 %v2911
        %3412 = vmatprep.mubr.bf16.mxu0 %v2222
        %3413 = vmatmul.mubr.bf16.gmra.mrb[0].mxu0 %v2221
        %v3414 = vpop.f32.mrb[0].mxu0
        %v3415 = vadd.f32 %v3302, %v3414
        %v3416 = vpop.f32.mrb[0].mxu0
        %v3417 = vadd.f32 %v3304, %v3416
        %v3418 = vpop.f32.mrb[0].mxu0
        %v3419 = vadd.f32 %v3306, %v3418
        %v3420 = vpop.f32.mrb[0].mxu0
        %v3421 = vadd.f32 %v3308, %v3420
        %3422 = vmatprep.mubr.bf16.mxu0 %v2226
        %3423 = vmatmul.mubr.bf16.gmra.mrb[0].mxu0 %v2225
        %v3424 = vpop.f32.mrb[0].mxu0
        %v3425 = vadd.f32 %v3312, %v3424
        %v3426 = vpop.f32.mrb[0].mxu0
        %v3427 = vadd.f32 %v3314, %v3426
        %v3428 = vpop.f32.mrb[0].mxu0
        %v3429 = vadd.f32 %v3316, %v3428
        %v3430 = vpop.f32.mrb[0].mxu0
        %v3431 = vadd.f32 %v3318, %v3430
        %3432 = vmatprep.mubr.bf16.mxu0 %v2230
        %3433 = vmatmul.mubr.bf16.gmra.mrb[0].mxu0 %v2229
        %v3434 = vpop.f32.mrb[0].mxu0
        %v3435 = vadd.f32 %v3322, %v3434
        %v3436 = vpop.f32.mrb[0].mxu0
        %v3437 = vadd.f32 %v3324, %v3436
        %v3438 = vpop.f32.mrb[0].mxu0
        %v3439 = vadd.f32 %v3326, %v3438
        %v3440 = vpop.f32.mrb[0].mxu0
        %v3441 = vadd.f32 %v3328, %v3440
        %3442 = vmatprep.mubr.bf16.mxu0 %v2234
        %3443 = vmatmul.mubr.bf16.gmra.mrb[0].mxu0 %v2233
        %v3444 = vpop.f32.mrb[0].mxu0
        %v3445 = vadd.f32 %v3332, %v3444
        %v3446 = vpop.f32.mrb[0].mxu0
        %v3447 = vadd.f32 %v3334, %v3446
        %v3448 = vpop.f32.mrb[0].mxu0
        %v3449 = vadd.f32 %v3336, %v3448
        %v3450 = vpop.f32.mrb[0].mxu0
        %v3451 = vadd.f32 %v3338, %v3450
        %3452 = vmatprep.mubr.bf16.mxu0 %v2238
        %3453 = vmatmul.mubr.bf16.gmra.mrb[0].mxu0 %v2237
        %v3454 = vpop.f32.mrb[0].mxu0
        %v3455 = vadd.f32 %v3342, %v3454
        %v3456 = vpop.f32.mrb[0].mxu0
        %v3457 = vadd.f32 %v3344, %v3456
        %v3458 = vpop.f32.mrb[0].mxu0
        %v3459 = vadd.f32 %v3346, %v3458
        %v3460 = vpop.f32.mrb[0].mxu0
        %v3461 = vadd.f32 %v3348, %v3460
        %3462 = vmatprep.mubr.bf16.mxu0 %v2242
        %3463 = vmatmul.mubr.bf16.gmra.mrb[0].mxu0 %v2241
        %v3464 = vpop.f32.mrb[0].mxu0
        %v3465 = vadd.f32 %v3352, %v3464
        %v3466 = vpop.f32.mrb[0].mxu0
        %v3467 = vadd.f32 %v3354, %v3466
        %v3468 = vpop.f32.mrb[0].mxu0
        %v3469 = vadd.f32 %v3356, %v3468
        %v3470 = vpop.f32.mrb[0].mxu0
        %v3471 = vadd.f32 %v3358, %v3470
        %3472 = vmatprep.mubr.bf16.mxu0 %v2246
        %3473 = vmatmul.mubr.bf16.gmra.mrb[0].mxu0 %v2245
        %v3474 = vpop.f32.mrb[0].mxu0
        %v3475 = vadd.f32 %v3362, %v3474
        %v3476 = vpop.f32.mrb[0].mxu0
        %v3477 = vadd.f32 %v3364, %v3476
        %v3478 = vpop.f32.mrb[0].mxu0
        %v3479 = vadd.f32 %v3366, %v3478
        %v3480 = vpop.f32.mrb[0].mxu0
        %v3481 = vadd.f32 %v3368, %v3480
        %3482 = vmatprep.mubr.bf16.mxu0 %v2250
        %3483 = vmatmul.mubr.bf16.gmra.mrb[0].mxu0 %v2249
        %v3484 = vpop.f32.mrb[0].mxu0
        %v3485 = vadd.f32 %v3372, %v3484
        %v3486 = vpop.f32.mrb[0].mxu0
        %v3487 = vadd.f32 %v3374, %v3486
        %v3488 = vpop.f32.mrb[0].mxu0
        %v3489 = vadd.f32 %v3376, %v3488
        %v3490 = vpop.f32.mrb[0].mxu0
        %v3491 = vadd.f32 %v3378, %v3490
        %3492 = vdwg.mxu0
        %v3493 = vmax.f32 %v3189, 0.0
        %v3494 = vmax.f32 %v3191, 0.0
        %v3495 = vmax.f32 %v3415, 0.0
        %v3496 = vmax.f32 %v3417, 0.0
        %v3497 = vmax.f32 %v3193, 0.0
        %v3498 = vmax.f32 %v3195, 0.0
        %v3499 = vmax.f32 %v3419, 0.0
        %v3500 = vmax.f32 %v3421, 0.0
        %v3501 = vmax.f32 %v3199, 0.0
        %v3502 = vmax.f32 %v3201, 0.0
        %v3503 = vmax.f32 %v3425, 0.0
        %v3504 = vmax.f32 %v3427, 0.0
        %v3505 = vmax.f32 %v3203, 0.0
        %v3506 = vmax.f32 %v3205, 0.0
        %v3507 = vmax.f32 %v3429, 0.0
        %v3508 = vmax.f32 %v3431, 0.0
        %v3509 = vmax.f32 %v3209, 0.0
        %v3510 = vmax.f32 %v3211, 0.0
        %v3511 = vmax.f32 %v3435, 0.0
        %v3512 = vmax.f32 %v3437, 0.0
        %v3513 = vmax.f32 %v3213, 0.0
        %v3514 = vmax.f32 %v3215, 0.0
        %v3515 = vmax.f32 %v3439, 0.0
        %v3516 = vmax.f32 %v3441, 0.0
        %v3517 = vmax.f32 %v3219, 0.0
        %v3518 = vmax.f32 %v3221, 0.0
        %v3519 = vmax.f32 %v3445, 0.0
        %v3520 = vmax.f32 %v3447, 0.0
        %v3521 = vmax.f32 %v3223, 0.0
        %v3522 = vmax.f32 %v3225, 0.0
        %v3523 = vmax.f32 %v3449, 0.0
        %v3524 = vmax.f32 %v3451, 0.0
        %v3525 = vmax.f32 %v3229, 0.0
        %v3526 = vmax.f32 %v3231, 0.0
        %v3527 = vmax.f32 %v3455, 0.0
        %v3528 = vmax.f32 %v3457, 0.0
        %v3529 = vmax.f32 %v3233, 0.0
        %v3530 = vmax.f32 %v3235, 0.0
        %v3531 = vmax.f32 %v3459, 0.0
        %v3532 = vmax.f32 %v3461, 0.0
        %v3533 = vmax.f32 %v3239, 0.0
        %v3534 = vmax.f32 %v3241, 0.0
        %v3535 = vmax.f32 %v3465, 0.0
        %v3536 = vmax.f32 %v3467, 0.0
        %v3537 = vmax.f32 %v3243, 0.0
        %v3538 = vmax.f32 %v3245, 0.0
        %v3539 = vmax.f32 %v3469, 0.0
        %v3540 = vmax.f32 %v3471, 0.0
        %v3541 = vmax.f32 %v3249, 0.0
        %v3542 = vmax.f32 %v3251, 0.0
        %v3543 = vmax.f32 %v3475, 0.0
        %v3544 = vmax.f32 %v3477, 0.0
        %v3545 = vmax.f32 %v3253, 0.0
        %v3546 = vmax.f32 %v3255, 0.0
        %v3547 = vmax.f32 %v3479, 0.0
        %v3548 = vmax.f32 %v3481, 0.0
        %v3549 = vmax.f32 %v3259, 0.0
        %v3550 = vmax.f32 %v3261, 0.0
        %v3551 = vmax.f32 %v3485, 0.0
        %v3552 = vmax.f32 %v3487, 0.0
        %v3553 = vmax.f32 %v3263, 0.0
        %v3554 = vmax.f32 %v3265, 0.0
        %v3555 = vmax.f32 %v3489, 0.0
        %v3556 = vmax.f32 %v3491, 0.0
        %v3557 = vpack.c.bf16 %v3497, %v3493
        %v3558 = vpack.c.bf16 %v3498, %v3494
        %v3559 = vpack.c.bf16 %v3499, %v3495
        %v3560 = vpack.c.bf16 %v3500, %v3496
        %v3561 = vpack.c.bf16 %v3505, %v3501
        %v3562 = vpack.c.bf16 %v3506, %v3502
        %v3563 = vpack.c.bf16 %v3507, %v3503
        %v3564 = vpack.c.bf16 %v3508, %v3504
        %v3565 = vpack.c.bf16 %v3513, %v3509
        %v3566 = vpack.c.bf16 %v3514, %v3510
        %v3567 = vpack.c.bf16 %v3515, %v3511
        %v3568 = vpack.c.bf16 %v3516, %v3512
        %v3569 = vpack.c.bf16 %v3521, %v3517
        %v3570 = vpack.c.bf16 %v3522, %v3518
        %v3571 = vpack.c.bf16 %v3523, %v3519
        %v3572 = vpack.c.bf16 %v3524, %v3520
        %v3573 = vpack.c.bf16 %v3529, %v3525
        %v3574 = vpack.c.bf16 %v3530, %v3526
        %v3575 = vpack.c.bf16 %v3531, %v3527
        %v3576 = vpack.c.bf16 %v3532, %v3528
        %v3577 = vpack.c.bf16 %v3537, %v3533
        %v3578 = vpack.c.bf16 %v3538, %v3534
        %v3579 = vpack.c.bf16 %v3539, %v3535
        %v3580 = vpack.c.bf16 %v3540, %v3536
        %v3581 = vpack.c.bf16 %v3545, %v3541
        %v3582 = vpack.c.bf16 %v3546, %v3542
        %v3583 = vpack.c.bf16 %v3547, %v3543
        %v3584 = vpack.c.bf16 %v3548, %v3544
        %v3585 = vpack.c.bf16 %v3553, %v3549
        %v3586 = vpack.c.bf16 %v3554, %v3550
        %v3587 = vpack.c.bf16 %v3555, %v3551
        %v3588 = vpack.c.bf16 %v3556, %v3552
        %v3589 = vld [vmem:[#allocation10] sm:$0xff]
        %v3590 = vld [vmem:[#allocation10 + $0x8] sm:$0xff]
        %v3591 = vld [vmem:[#allocation10 + $0x10] sm:$0xff]
        %v3592 = vld [vmem:[#allocation10 + $0x18] sm:$0xf]
        %v3593 = vld [vmem:[#allocation10 + $0x1c] sm:$0xff]
        %v3594 = vld [vmem:[#allocation10 + $0x24] sm:$0xff]
        %v3595 = vld [vmem:[#allocation10 + $0x2c] sm:$0xff]
        %v3596 = vld [vmem:[#allocation10 + $0x34] sm:$0xf]
        %v3597 = vld [vmem:[#allocation10 + $0x38] sm:$0xff]
        %v3598 = vld [vmem:[#allocation10 + $0x40] sm:$0xff]
        %v3599 = vld [vmem:[#allocation10 + $0x48] sm:$0xff]
        %v3600 = vld [vmem:[#allocation10 + $0x50] sm:$0xf]
        %v3601 = vld [vmem:[#allocation10 + $0x54] sm:$0xff]
        %v3602 = vld [vmem:[#allocation10 + $0x5c] sm:$0xff]
        %v3603 = vld [vmem:[#allocation10 + $0x64] sm:$0xff]
        %v3604 = vld [vmem:[#allocation10 + $0x6c] sm:$0xf]
        %v3605 = vld [vmem:[#allocation10 + $0x70] sm:$0xff]
        %v3606 = vld [vmem:[#allocation10 + $0x78] sm:$0xff]
        %v3607 = vld [vmem:[#allocation10 + $0x80] sm:$0xff]
        %v3608 = vld [vmem:[#allocation10 + $0x88] sm:$0xf]
        %v3609 = vld [vmem:[#allocation10 + $0x8c] sm:$0xff]
        %v3610 = vld [vmem:[#allocation10 + $0x94] sm:$0xff]
        %v3611 = vld [vmem:[#allocation10 + $0x9c] sm:$0xff]
        %v3612 = vld [vmem:[#allocation10 + $0xa4] sm:$0xf]
        %v3613 = vld [vmem:[#allocation10 + $0xa8] sm:$0xff]
        %v3614 = vld [vmem:[#allocation10 + $0xb0] sm:$0xff]
        %v3615 = vld [vmem:[#allocation10 + $0xb8] sm:$0xff]
        %v3616 = vld [vmem:[#allocation10 + $0xc0] sm:$0xf]
        %v3617 = vld [vmem:[#allocation10 + $0xc4] sm:$0xff]
        %v3618 = vld [vmem:[#allocation10 + $0xcc] sm:$0xff]
        %v3619 = vld [vmem:[#allocation10 + $0xd4] sm:$0xff]
        %v3620 = vld [vmem:[#allocation10 + $0xdc] sm:$0xf]
        %v3621 = vld [vmem:[#allocation10 + $0xe0] sm:$0xff]
        %v3622 = vld [vmem:[#allocation10 + $0xe8] sm:$0xff]
        %v3623 = vld [vmem:[#allocation10 + $0xf0] sm:$0xff]
        %v3624 = vld [vmem:[#allocation10 + $0xf8] sm:$0xf]
        %v3625 = vld [vmem:[#allocation10 + $0xfc] sm:$0xff]
        %v3626 = vld [vmem:[#allocation10 + $0x104] sm:$0xff]
        %v3627 = vld [vmem:[#allocation10 + $0x10c] sm:$0xff]
        %v3628 = vld [vmem:[#allocation10 + $0x114] sm:$0xf]
        %v3629 = vld [vmem:[#allocation10 + $0x118] sm:$0xff]
        %v3630 = vld [vmem:[#allocation10 + $0x120] sm:$0xff]
        %v3631 = vld [vmem:[#allocation10 + $0x128] sm:$0xff]
        %v3632 = vld [vmem:[#allocation10 + $0x130] sm:$0xf]
        %v3633 = vld [vmem:[#allocation10 + $0x134] sm:$0xff]
        %v3634 = vld [vmem:[#allocation10 + $0x13c] sm:$0xff]
        %v3635 = vld [vmem:[#allocation10 + $0x144] sm:$0xff]
        %v3636 = vld [vmem:[#allocation10 + $0x14c] sm:$0xf]
        %v3637 = vld [vmem:[#allocation10 + $0x150] sm:$0xff]
        %v3638 = vld [vmem:[#allocation10 + $0x158] sm:$0xff]
        %v3639 = vld [vmem:[#allocation10 + $0x160] sm:$0xff]
        %v3640 = vld [vmem:[#allocation10 + $0x168] sm:$0xf]
        %v3641 = vld [vmem:[#allocation10 + $0x16c] sm:$0xff]
        %v3642 = vld [vmem:[#allocation10 + $0x174] sm:$0xff]
        %v3643 = vld [vmem:[#allocation10 + $0x17c] sm:$0xff]
        %v3644 = vld [vmem:[#allocation10 + $0x184] sm:$0xf]
        %v3645 = vld [vmem:[#allocation10 + $0x188] sm:$0xff]
        %v3646 = vld [vmem:[#allocation10 + $0x190] sm:$0xff]
        %v3647 = vld [vmem:[#allocation10 + $0x198] sm:$0xff]
        %v3648 = vld [vmem:[#allocation10 + $0x1a0] sm:$0xf]
        %v3649 = vld [vmem:[#allocation10 + $0x1a4] sm:$0xff]
        %v3650 = vld [vmem:[#allocation10 + $0x1ac] sm:$0xff]
        %v3651 = vld [vmem:[#allocation10 + $0x1b4] sm:$0xff]
        %v3652 = vld [vmem:[#allocation10 + $0x1bc] sm:$0xf]
        %v3653 = vld [vmem:[#allocation10 + $0x1c0] sm:$0xff]
        %v3654 = vld [vmem:[#allocation10 + $0x1c8] sm:$0xff]
        %v3655 = vld [vmem:[#allocation10 + $0x1d0] sm:$0xff]
        %v3656 = vld [vmem:[#allocation10 + $0x1d8] sm:$0xf]
        %v3657 = vld [vmem:[#allocation10 + $0x1dc] sm:$0xff]
        %v3658 = vld [vmem:[#allocation10 + $0x1e4] sm:$0xff]
        %v3659 = vld [vmem:[#allocation10 + $0x1ec] sm:$0xff]
        %v3660 = vld [vmem:[#allocation10 + $0x1f4] sm:$0xf]
        %v3661 = vld [vmem:[#allocation10 + $0x1f8] sm:$0xff]
        %v3662 = vld [vmem:[#allocation10 + $0x200] sm:$0xff]
        %v3663 = vld [vmem:[#allocation10 + $0x208] sm:$0xff]
        %v3664 = vld [vmem:[#allocation10 + $0x210] sm:$0xf]
        %v3665 = vld [vmem:[#allocation10 + $0x214] sm:$0xff]
        %v3666 = vld [vmem:[#allocation10 + $0x21c] sm:$0xff]
        %v3667 = vld [vmem:[#allocation10 + $0x224] sm:$0xff]
        %v3668 = vld [vmem:[#allocation10 + $0x22c] sm:$0xf]
        %v3669 = vld [vmem:[#allocation10 + $0x230] sm:$0xff]
        %v3670 = vld [vmem:[#allocation10 + $0x238] sm:$0xff]
        %v3671 = vld [vmem:[#allocation10 + $0x240] sm:$0xff]
        %v3672 = vld [vmem:[#allocation10 + $0x248] sm:$0xf]
        %v3673 = vld [vmem:[#allocation10 + $0x24c] sm:$0xff]
        %v3674 = vld [vmem:[#allocation10 + $0x254] sm:$0xff]
        %v3675 = vld [vmem:[#allocation10 + $0x25c] sm:$0xff]
        %v3676 = vld [vmem:[#allocation10 + $0x264] sm:$0xf]
        %v3677 = vld [vmem:[#allocation10 + $0x268] sm:$0xff]
        %v3678 = vld [vmem:[#allocation10 + $0x270] sm:$0xff]
        %v3679 = vld [vmem:[#allocation10 + $0x278] sm:$0xff]
        %v3680 = vld [vmem:[#allocation10 + $0x280] sm:$0xf]
        %v3681 = vld [vmem:[#allocation10 + $0x284] sm:$0xff]
        %v3682 = vld [vmem:[#allocation10 + $0x28c] sm:$0xff]
        %v3683 = vld [vmem:[#allocation10 + $0x294] sm:$0xff]
        %v3684 = vld [vmem:[#allocation10 + $0x29c] sm:$0xf]
        %v3685 = vld [vmem:[#allocation10 + $0x2a0] sm:$0xff]
        %v3686 = vld [vmem:[#allocation10 + $0x2a8] sm:$0xff]
        %v3687 = vld [vmem:[#allocation10 + $0x2b0] sm:$0xff]
        %v3688 = vld [vmem:[#allocation10 + $0x2b8] sm:$0xf]
        %v3689 = vld [vmem:[#allocation10 + $0x2bc] sm:$0xff]
        %v3690 = vld [vmem:[#allocation10 + $0x2c4] sm:$0xff]
        %v3691 = vld [vmem:[#allocation10 + $0x2cc] sm:$0xff]
        %v3692 = vld [vmem:[#allocation10 + $0x2d4] sm:$0xf]
        %v3693 = vld [vmem:[#allocation10 + $0x2d8] sm:$0xff]
        %v3694 = vld [vmem:[#allocation10 + $0x2e0] sm:$0xff]
        %v3695 = vld [vmem:[#allocation10 + $0x2e8] sm:$0xff]
        %v3696 = vld [vmem:[#allocation10 + $0x2f0] sm:$0xf]
        %v3697 = vld [vmem:[#allocation10 + $0x2f4] sm:$0xff]
        %v3698 = vld [vmem:[#allocation10 + $0x2fc] sm:$0xff]
        %v3699 = vld [vmem:[#allocation10 + $0x304] sm:$0xff]
        %v3700 = vld [vmem:[#allocation10 + $0x30c] sm:$0xf]
        %v3701 = vld [vmem:[#allocation10 + $0x310] sm:$0xff]
        %v3702 = vld [vmem:[#allocation10 + $0x318] sm:$0xff]
        %v3703 = vld [vmem:[#allocation10 + $0x320] sm:$0xff]
        %v3704 = vld [vmem:[#allocation10 + $0x328] sm:$0xf]
        %v3705 = vld [vmem:[#allocation10 + $0x32c] sm:$0xff]
        %v3706 = vld [vmem:[#allocation10 + $0x334] sm:$0xff]
        %v3707 = vld [vmem:[#allocation10 + $0x33c] sm:$0xff]
        %v3708 = vld [vmem:[#allocation10 + $0x344] sm:$0xf]
        %v3709 = vld [vmem:[#allocation10 + $0x348] sm:$0xff]
        %v3710 = vld [vmem:[#allocation10 + $0x350] sm:$0xff]
        %v3711 = vld [vmem:[#allocation10 + $0x358] sm:$0xff]
        %v3712 = vld [vmem:[#allocation10 + $0x360] sm:$0xf]
        %v3713 = vld [vmem:[#allocation10 + $0x364] sm:$0xff]
        %v3714 = vld [vmem:[#allocation10 + $0x36c] sm:$0xff]
        %v3715 = vld [vmem:[#allocation10 + $0x374] sm:$0xff]
        %v3716 = vld [vmem:[#allocation10 + $0x37c] sm:$0xf]
        %v3717 = vld [vmem:[#allocation10 + $0x380] sm:$0xff]
        %v3718 = vld [vmem:[#allocation10 + $0x388] sm:$0xff]
        %v3719 = vld [vmem:[#allocation10 + $0x390] sm:$0xff]
        %v3720 = vld [vmem:[#allocation10 + $0x398] sm:$0xf]
        %v3721 = vld [vmem:[#allocation10 + $0x39c] sm:$0xff]
        %v3722 = vld [vmem:[#allocation10 + $0x3a4] sm:$0xff]
        %v3723 = vld [vmem:[#allocation10 + $0x3ac] sm:$0xff]
        %v3724 = vld [vmem:[#allocation10 + $0x3b4] sm:$0xf]
        %v3725 = vld [vmem:[#allocation10 + $0x3b8] sm:$0xff]
        %v3726 = vld [vmem:[#allocation10 + $0x3c0] sm:$0xff]
        %v3727 = vld [vmem:[#allocation10 + $0x3c8] sm:$0xff]
        %v3728 = vld [vmem:[#allocation10 + $0x3d0] sm:$0xf]
        %v3729 = vld [vmem:[#allocation10 + $0x3d4] sm:$0xff]
        %v3730 = vld [vmem:[#allocation10 + $0x3dc] sm:$0xff]
        %v3731 = vld [vmem:[#allocation10 + $0x3e4] sm:$0xff]
        %v3732 = vld [vmem:[#allocation10 + $0x3ec] sm:$0xf]
        %v3733 = vld [vmem:[#allocation10 + $0x3f0] sm:$0xff]
        %v3734 = vld [vmem:[#allocation10 + $0x3f8] sm:$0xff]
        %v3735 = vld [vmem:[#allocation10 + $0x400] sm:$0xff]
        %v3736 = vld [vmem:[#allocation10 + $0x408] sm:$0xf]
        %v3737 = vld [vmem:[#allocation10 + $0x40c] sm:$0xff]
        %v3738 = vld [vmem:[#allocation10 + $0x414] sm:$0xff]
        %v3739 = vld [vmem:[#allocation10 + $0x41c] sm:$0xff]
        %v3740 = vld [vmem:[#allocation10 + $0x424] sm:$0xf]
        %v3741 = vld [vmem:[#allocation10 + $0x428] sm:$0xff]
        %v3742 = vld [vmem:[#allocation10 + $0x430] sm:$0xff]
        %v3743 = vld [vmem:[#allocation10 + $0x438] sm:$0xff]
        %v3744 = vld [vmem:[#allocation10 + $0x440] sm:$0xf]
        %v3745 = vld [vmem:[#allocation10 + $0x444] sm:$0xff]
        %v3746 = vld [vmem:[#allocation10 + $0x44c] sm:$0xff]
        %v3747 = vld [vmem:[#allocation10 + $0x454] sm:$0xff]
        %v3748 = vld [vmem:[#allocation10 + $0x45c] sm:$0xf]
        %v3749 = vld [vmem:[#allocation10 + $0x460] sm:$0xff]
        %v3750 = vld [vmem:[#allocation10 + $0x468] sm:$0xff]
        %v3751 = vld [vmem:[#allocation10 + $0x470] sm:$0xff]
        %v3752 = vld [vmem:[#allocation10 + $0x478] sm:$0xf]
        %v3753 = vld [vmem:[#allocation10 + $0x47c] sm:$0xff]
        %v3754 = vld [vmem:[#allocation10 + $0x484] sm:$0xff]
        %v3755 = vld [vmem:[#allocation10 + $0x48c] sm:$0xff]
        %v3756 = vld [vmem:[#allocation10 + $0x494] sm:$0xf]
        %v3757 = vld [vmem:[#allocation10 + $0x498] sm:$0xff]
        %v3758 = vld [vmem:[#allocation10 + $0x4a0] sm:$0xff]
        %v3759 = vld [vmem:[#allocation10 + $0x4a8] sm:$0xff]
        %v3760 = vld [vmem:[#allocation10 + $0x4b0] sm:$0xf]
        %v3761 = vld [vmem:[#allocation10 + $0x4b4] sm:$0xff]
        %v3762 = vld [vmem:[#allocation10 + $0x4bc] sm:$0xff]
        %v3763 = vld [vmem:[#allocation10 + $0x4c4] sm:$0xff]
        %v3764 = vld [vmem:[#allocation10 + $0x4cc] sm:$0xf]
        %v3765 = vld [vmem:[#allocation10 + $0x4d0] sm:$0xff]
        %v3766 = vld [vmem:[#allocation10 + $0x4d8] sm:$0xff]
        %v3767 = vld [vmem:[#allocation10 + $0x4e0] sm:$0xff]
        %v3768 = vld [vmem:[#allocation10 + $0x4e8] sm:$0xf]
        %v3769 = vld [vmem:[#allocation10 + $0x4ec] sm:$0xff]
        %v3770 = vld [vmem:[#allocation10 + $0x4f4] sm:$0xff]
        %v3771 = vld [vmem:[#allocation10 + $0x4fc] sm:$0xff]
        %v3772 = vld [vmem:[#allocation10 + $0x504] sm:$0xf]
        %v3773 = vld [vmem:[#allocation10 + $0x508] sm:$0xff]
        %v3774 = vld [vmem:[#allocation10 + $0x510] sm:$0xff]
        %v3775 = vld [vmem:[#allocation10 + $0x518] sm:$0xff]
        %v3776 = vld [vmem:[#allocation10 + $0x520] sm:$0xf]
        %v3777 = vld [vmem:[#allocation10 + $0x524] sm:$0xff]
        %v3778 = vld [vmem:[#allocation10 + $0x52c] sm:$0xff]
        %v3779 = vld [vmem:[#allocation10 + $0x534] sm:$0xff]
        %v3780 = vld [vmem:[#allocation10 + $0x53c] sm:$0xf]
        %v3781 = vld [vmem:[#allocation10 + $0x540] sm:$0xff]
        %v3782 = vld [vmem:[#allocation10 + $0x548] sm:$0xff]
        %v3783 = vld [vmem:[#allocation10 + $0x550] sm:$0xff]
        %v3784 = vld [vmem:[#allocation10 + $0x558] sm:$0xf]
        %v3785 = vld [vmem:[#allocation10 + $0x55c] sm:$0xff]
        %v3786 = vld [vmem:[#allocation10 + $0x564] sm:$0xff]
        %v3787 = vld [vmem:[#allocation10 + $0x56c] sm:$0xff]
        %v3788 = vld [vmem:[#allocation10 + $0x574] sm:$0xf]
        %v3789 = vld [vmem:[#allocation10 + $0x578] sm:$0xff]
        %v3790 = vld [vmem:[#allocation10 + $0x580] sm:$0xff]
        %v3791 = vld [vmem:[#allocation10 + $0x588] sm:$0xff]
        %v3792 = vld [vmem:[#allocation10 + $0x590] sm:$0xf]
        %v3793 = vld [vmem:[#allocation10 + $0x594] sm:$0xff]
        %v3794 = vld [vmem:[#allocation10 + $0x59c] sm:$0xff]
        %v3795 = vld [vmem:[#allocation10 + $0x5a4] sm:$0xff]
        %v3796 = vld [vmem:[#allocation10 + $0x5ac] sm:$0xf]
        %v3797 = vld [vmem:[#allocation10 + $0x5b0] sm:$0xff]
        %v3798 = vld [vmem:[#allocation10 + $0x5b8] sm:$0xff]
        %v3799 = vld [vmem:[#allocation10 + $0x5c0] sm:$0xff]
        %v3800 = vld [vmem:[#allocation10 + $0x5c8] sm:$0xf]
        %v3801 = vld [vmem:[#allocation10 + $0x5cc] sm:$0xff]
        %v3802 = vld [vmem:[#allocation10 + $0x5d4] sm:$0xff]
        %v3803 = vld [vmem:[#allocation10 + $0x5dc] sm:$0xff]
        %v3804 = vld [vmem:[#allocation10 + $0x5e4] sm:$0xf]
        %v3805 = vld [vmem:[#allocation10 + $0x5e8] sm:$0xff]
        %v3806 = vld [vmem:[#allocation10 + $0x5f0] sm:$0xff]
        %v3807 = vld [vmem:[#allocation10 + $0x5f8] sm:$0xff]
        %v3808 = vld [vmem:[#allocation10 + $0x600] sm:$0xf]
        %v3809 = vld [vmem:[#allocation10 + $0x604] sm:$0xff]
        %v3810 = vld [vmem:[#allocation10 + $0x60c] sm:$0xff]
        %v3811 = vld [vmem:[#allocation10 + $0x614] sm:$0xff]
        %v3812 = vld [vmem:[#allocation10 + $0x61c] sm:$0xf]
        %v3813 = vld [vmem:[#allocation10 + $0x620] sm:$0xff]
        %v3814 = vld [vmem:[#allocation10 + $0x628] sm:$0xff]
        %v3815 = vld [vmem:[#allocation10 + $0x630] sm:$0xff]
        %v3816 = vld [vmem:[#allocation10 + $0x638] sm:$0xf]
        %v3817 = vld [vmem:[#allocation10 + $0x63c] sm:$0xff]
        %v3818 = vld [vmem:[#allocation10 + $0x644] sm:$0xff]
        %v3819 = vld [vmem:[#allocation10 + $0x64c] sm:$0xff]
        %v3820 = vld [vmem:[#allocation10 + $0x654] sm:$0xf]
        %v3821 = vld [vmem:[#allocation10 + $0x658] sm:$0xff]
        %v3822 = vld [vmem:[#allocation10 + $0x660] sm:$0xff]
        %v3823 = vld [vmem:[#allocation10 + $0x668] sm:$0xff]
        %v3824 = vld [vmem:[#allocation10 + $0x670] sm:$0xf]
        %v3825 = vld [vmem:[#allocation10 + $0x674] sm:$0xff]
        %v3826 = vld [vmem:[#allocation10 + $0x67c] sm:$0xff]
        %v3827 = vld [vmem:[#allocation10 + $0x684] sm:$0xff]
        %v3828 = vld [vmem:[#allocation10 + $0x68c] sm:$0xf]
        %v3829 = vld [vmem:[#allocation10 + $0x690] sm:$0xff]
        %v3830 = vld [vmem:[#allocation10 + $0x698] sm:$0xff]
        %v3831 = vld [vmem:[#allocation10 + $0x6a0] sm:$0xff]
        %v3832 = vld [vmem:[#allocation10 + $0x6a8] sm:$0xf]
        %v3833 = vld [vmem:[#allocation10 + $0x6ac] sm:$0xff]
        %v3834 = vld [vmem:[#allocation10 + $0x6b4] sm:$0xff]
        %v3835 = vld [vmem:[#allocation10 + $0x6bc] sm:$0xff]
        %v3836 = vld [vmem:[#allocation10 + $0x6c4] sm:$0xf]
        %v3837 = vld [vmem:[#allocation10 + $0x6c8] sm:$0xff]
        %v3838 = vld [vmem:[#allocation10 + $0x6d0] sm:$0xff]
        %v3839 = vld [vmem:[#allocation10 + $0x6d8] sm:$0xff]
        %v3840 = vld [vmem:[#allocation10 + $0x6e0] sm:$0xf]
        %v3841 = vld [vmem:[#allocation10 + $0x6e4] sm:$0xff]
        %v3842 = vld [vmem:[#allocation10 + $0x6ec] sm:$0xff]
        %v3843 = vld [vmem:[#allocation10 + $0x6f4] sm:$0xff]
        %v3844 = vld [vmem:[#allocation10 + $0x6fc] sm:$0xf]
        %v3845 = vld [vmem:[%s8] sm:$0xff]
        %v3847 = vlaneseq
        %v3848 = vshrl.u32 %v3847, 7
        %v3849 = vsub.s32 0, %v3848
        %v3850 = vrot.slane %v3845, %v3849
        %v3851 = vlaneseq
        %v3852 = vshrl.u32 %v3851, 7
        %v3853 = vsub.s32 1, %v3852
        %v3854 = vrot.slane %v3845, %v3853
        %v3855 = vlaneseq
        %v3856 = vshrl.u32 %v3855, 7
        %v3857 = vsub.s32 2, %v3856
        %v3858 = vrot.slane %v3845, %v3857
        %v3859 = vlaneseq
        %v3860 = vshrl.u32 %v3859, 7
        %v3861 = vsub.s32 3, %v3860
        %v3862 = vrot.slane %v3845, %v3861
        %v3863 = vlaneseq
        %v3864 = vshrl.u32 %v3863, 7
        %v3865 = vsub.s32 4, %v3864
        %v3866 = vrot.slane %v3845, %v3865
        %v3867 = vlaneseq
        %v3868 = vshrl.u32 %v3867, 7
        %v3869 = vsub.s32 5, %v3868
        %v3870 = vrot.slane %v3845, %v3869
        %v3871 = vlaneseq
        %v3872 = vshrl.u32 %v3871, 7
        %v3873 = vsub.s32 6, %v3872
        %v3874 = vrot.slane %v3845, %v3873
        %v4138 = vunpack.c.l.b16 %v3589
        %v4139 = vunpack.c.h.b16 %v3589
        %v4140 = vunpack.c.l.b16 %v3590
        %v4141 = vunpack.c.h.b16 %v3590
        %v4142 = vunpack.c.l.b16 %v3591
        %v4143 = vunpack.c.h.b16 %v3591
        %v4144 = vunpack.c.l.b16 %v3592
        %v4145 = vunpack.c.l.b16 %v3593
        %v4146 = vunpack.c.h.b16 %v3593
        %v4147 = vunpack.c.l.b16 %v3594
        %v4148 = vunpack.c.h.b16 %v3594
        %v4149 = vunpack.c.l.b16 %v3595
        %v4150 = vunpack.c.h.b16 %v3595
        %v4151 = vunpack.c.l.b16 %v3596
        %v4152 = vunpack.c.l.b16 %v3597
        %v4153 = vunpack.c.h.b16 %v3597
        %v4154 = vunpack.c.l.b16 %v3598
        %v4155 = vunpack.c.h.b16 %v3598
        %v4156 = vunpack.c.l.b16 %v3599
        %v4157 = vunpack.c.h.b16 %v3599
        %v4158 = vunpack.c.l.b16 %v3600
        %v4159 = vunpack.c.l.b16 %v3601
        %v4160 = vunpack.c.h.b16 %v3601
        %v4161 = vunpack.c.l.b16 %v3602
        %v4162 = vunpack.c.h.b16 %v3602
        %v4163 = vunpack.c.l.b16 %v3603
        %v4164 = vunpack.c.h.b16 %v3603
        %v4165 = vunpack.c.l.b16 %v3604
        %v4166 = vunpack.c.l.b16 %v3605
        %v4167 = vunpack.c.h.b16 %v3605
        %v4168 = vunpack.c.l.b16 %v3606
        %v4169 = vunpack.c.h.b16 %v3606
        %v4170 = vunpack.c.l.b16 %v3607
        %v4171 = vunpack.c.h.b16 %v3607
        %v4172 = vunpack.c.l.b16 %v3608
        %v4173 = vunpack.c.l.b16 %v3609
        %v4174 = vunpack.c.h.b16 %v3609
        %v4175 = vunpack.c.l.b16 %v3610
        %v4176 = vunpack.c.h.b16 %v3610
        %v4177 = vunpack.c.l.b16 %v3611
        %v4178 = vunpack.c.h.b16 %v3611
        %v4179 = vunpack.c.l.b16 %v3612
        %v4180 = vunpack.c.l.b16 %v3613
        %v4181 = vunpack.c.h.b16 %v3613
        %v4182 = vunpack.c.l.b16 %v3614
        %v4183 = vunpack.c.h.b16 %v3614
        %v4184 = vunpack.c.l.b16 %v3615
        %v4185 = vunpack.c.h.b16 %v3615
        %v4186 = vunpack.c.l.b16 %v3616
        %v4187 = vunpack.c.l.b16 %v3617
        %v4188 = vunpack.c.h.b16 %v3617
        %v4189 = vunpack.c.l.b16 %v3618
        %v4190 = vunpack.c.h.b16 %v3618
        %v4191 = vunpack.c.l.b16 %v3619
        %v4192 = vunpack.c.h.b16 %v3619
        %v4193 = vunpack.c.l.b16 %v3620
        %v4194 = vunpack.c.l.b16 %v3621
        %v4195 = vunpack.c.h.b16 %v3621
        %v4196 = vunpack.c.l.b16 %v3622
        %v4197 = vunpack.c.h.b16 %v3622
        %v4198 = vunpack.c.l.b16 %v3623
        %v4199 = vunpack.c.h.b16 %v3623
        %v4200 = vunpack.c.l.b16 %v3624
        %v4201 = vunpack.c.l.b16 %v3625
        %v4202 = vunpack.c.h.b16 %v3625
        %v4203 = vunpack.c.l.b16 %v3626
        %v4204 = vunpack.c.h.b16 %v3626
        %v4205 = vunpack.c.l.b16 %v3627
        %v4206 = vunpack.c.h.b16 %v3627
        %v4207 = vunpack.c.l.b16 %v3628
        %v4208 = vunpack.c.l.b16 %v3629
        %v4209 = vunpack.c.h.b16 %v3629
        %v4210 = vunpack.c.l.b16 %v3630
        %v4211 = vunpack.c.h.b16 %v3630
        %v4212 = vunpack.c.l.b16 %v3631
        %v4213 = vunpack.c.h.b16 %v3631
        %v4214 = vunpack.c.l.b16 %v3632
        %v4215 = vunpack.c.l.b16 %v3633
        %v4216 = vunpack.c.h.b16 %v3633
        %v4217 = vunpack.c.l.b16 %v3634
        %v4218 = vunpack.c.h.b16 %v3634
        %v4219 = vunpack.c.l.b16 %v3635
        %v4220 = vunpack.c.h.b16 %v3635
        %v4221 = vunpack.c.l.b16 %v3636
        %v4222 = vunpack.c.l.b16 %v3637
        %v4223 = vunpack.c.h.b16 %v3637
        %v4224 = vunpack.c.l.b16 %v3638
        %v4225 = vunpack.c.h.b16 %v3638
        %v4226 = vunpack.c.l.b16 %v3639
        %v4227 = vunpack.c.h.b16 %v3639
        %v4228 = vunpack.c.l.b16 %v3640
        %v4229 = vunpack.c.l.b16 %v3641
        %v4230 = vunpack.c.h.b16 %v3641
        %v4231 = vunpack.c.l.b16 %v3642
        %v4232 = vunpack.c.h.b16 %v3642
        %v4233 = vunpack.c.l.b16 %v3643
        %v4234 = vunpack.c.h.b16 %v3643
        %v4235 = vunpack.c.l.b16 %v3644
        %v4236 = vunpack.c.l.b16 %v3645
        %v4237 = vunpack.c.h.b16 %v3645
        %v4238 = vunpack.c.l.b16 %v3646
        %v4239 = vunpack.c.h.b16 %v3646
        %v4240 = vunpack.c.l.b16 %v3647
        %v4241 = vunpack.c.h.b16 %v3647
        %v4242 = vunpack.c.l.b16 %v3648
        %v4243 = vunpack.c.l.b16 %v3649
        %v4244 = vunpack.c.h.b16 %v3649
        %v4245 = vunpack.c.l.b16 %v3650
        %v4246 = vunpack.c.h.b16 %v3650
        %v4247 = vunpack.c.l.b16 %v3651
        %v4248 = vunpack.c.h.b16 %v3651
        %v4249 = vunpack.c.l.b16 %v3652
        %v4250 = vunpack.c.l.b16 %v3653
        %v4251 = vunpack.c.h.b16 %v3653
        %v4252 = vunpack.c.l.b16 %v3654
        %v4253 = vunpack.c.h.b16 %v3654
        %v4254 = vunpack.c.l.b16 %v3655
        %v4255 = vunpack.c.h.b16 %v3655
        %v4256 = vunpack.c.l.b16 %v3656
        %v4257 = vunpack.c.l.b16 %v3657
        %v4258 = vunpack.c.h.b16 %v3657
        %v4259 = vunpack.c.l.b16 %v3658
        %v4260 = vunpack.c.h.b16 %v3658
        %v4261 = vunpack.c.l.b16 %v3659
        %v4262 = vunpack.c.h.b16 %v3659
        %v4263 = vunpack.c.l.b16 %v3660
        %v4264 = vunpack.c.l.b16 %v3661
        %v4265 = vunpack.c.h.b16 %v3661
        %v4266 = vunpack.c.l.b16 %v3662
        %v4267 = vunpack.c.h.b16 %v3662
        %v4268 = vunpack.c.l.b16 %v3663
        %v4269 = vunpack.c.h.b16 %v3663
        %v4270 = vunpack.c.l.b16 %v3664
        %v4271 = vunpack.c.l.b16 %v3665
        %v4272 = vunpack.c.h.b16 %v3665
        %v4273 = vunpack.c.l.b16 %v3666
        %v4274 = vunpack.c.h.b16 %v3666
        %v4275 = vunpack.c.l.b16 %v3667
        %v4276 = vunpack.c.h.b16 %v3667
        %v4277 = vunpack.c.l.b16 %v3668
        %v4278 = vunpack.c.l.b16 %v3669
        %v4279 = vunpack.c.h.b16 %v3669
        %v4280 = vunpack.c.l.b16 %v3670
        %v4281 = vunpack.c.h.b16 %v3670
        %v4282 = vunpack.c.l.b16 %v3671
        %v4283 = vunpack.c.h.b16 %v3671
        %v4284 = vunpack.c.l.b16 %v3672
        %v4285 = vunpack.c.l.b16 %v3673
        %v4286 = vunpack.c.h.b16 %v3673
        %v4287 = vunpack.c.l.b16 %v3674
        %v4288 = vunpack.c.h.b16 %v3674
        %v4289 = vunpack.c.l.b16 %v3675
        %v4290 = vunpack.c.h.b16 %v3675
        %v4291 = vunpack.c.l.b16 %v3676
        %v4292 = vunpack.c.l.b16 %v3677
        %v4293 = vunpack.c.h.b16 %v3677
        %v4294 = vunpack.c.l.b16 %v3678
        %v4295 = vunpack.c.h.b16 %v3678
        %v4296 = vunpack.c.l.b16 %v3679
        %v4297 = vunpack.c.h.b16 %v3679
        %v4298 = vunpack.c.l.b16 %v3680
        %v4299 = vunpack.c.l.b16 %v3681
        %v4300 = vunpack.c.h.b16 %v3681
        %v4301 = vunpack.c.l.b16 %v3682
        %v4302 = vunpack.c.h.b16 %v3682
        %v4303 = vunpack.c.l.b16 %v3683
        %v4304 = vunpack.c.h.b16 %v3683
        %v4305 = vunpack.c.l.b16 %v3684
        %v4306 = vunpack.c.l.b16 %v3685
        %v4307 = vunpack.c.h.b16 %v3685
        %v4308 = vunpack.c.l.b16 %v3686
        %v4309 = vunpack.c.h.b16 %v3686
        %v4310 = vunpack.c.l.b16 %v3687
        %v4311 = vunpack.c.h.b16 %v3687
        %v4312 = vunpack.c.l.b16 %v3688
        %v4313 = vunpack.c.l.b16 %v3689
        %v4314 = vunpack.c.h.b16 %v3689
        %v4315 = vunpack.c.l.b16 %v3690
        %v4316 = vunpack.c.h.b16 %v3690
        %v4317 = vunpack.c.l.b16 %v3691
        %v4318 = vunpack.c.h.b16 %v3691
        %v4319 = vunpack.c.l.b16 %v3692
        %v4320 = vunpack.c.l.b16 %v3693
        %v4321 = vunpack.c.h.b16 %v3693
        %v4322 = vunpack.c.l.b16 %v3694
        %v4323 = vunpack.c.h.b16 %v3694
        %v4324 = vunpack.c.l.b16 %v3695
        %v4325 = vunpack.c.h.b16 %v3695
        %v4326 = vunpack.c.l.b16 %v3696
        %v4327 = vunpack.c.l.b16 %v3697
        %v4328 = vunpack.c.h.b16 %v3697
        %v4329 = vunpack.c.l.b16 %v3698
        %v4330 = vunpack.c.h.b16 %v3698
        %v4331 = vunpack.c.l.b16 %v3699
        %v4332 = vunpack.c.h.b16 %v3699
        %v4333 = vunpack.c.l.b16 %v3700
        %v4334 = vunpack.c.l.b16 %v3701
        %v4335 = vunpack.c.h.b16 %v3701
        %v4336 = vunpack.c.l.b16 %v3702
        %v4337 = vunpack.c.h.b16 %v3702
        %v4338 = vunpack.c.l.b16 %v3703
        %v4339 = vunpack.c.h.b16 %v3703
        %v4340 = vunpack.c.l.b16 %v3704
        %v4341 = vunpack.c.l.b16 %v3705
        %v4342 = vunpack.c.h.b16 %v3705
        %v4343 = vunpack.c.l.b16 %v3706
        %v4344 = vunpack.c.h.b16 %v3706
        %v4345 = vunpack.c.l.b16 %v3707
        %v4346 = vunpack.c.h.b16 %v3707
        %v4347 = vunpack.c.l.b16 %v3708
        %v4348 = vunpack.c.l.b16 %v3709
        %v4349 = vunpack.c.h.b16 %v3709
        %v4350 = vunpack.c.l.b16 %v3710
        %v4351 = vunpack.c.h.b16 %v3710
        %v4352 = vunpack.c.l.b16 %v3711
        %v4353 = vunpack.c.h.b16 %v3711
        %v4354 = vunpack.c.l.b16 %v3712
        %v4355 = vunpack.c.l.b16 %v3713
        %v4356 = vunpack.c.h.b16 %v3713
        %v4357 = vunpack.c.l.b16 %v3714
        %v4358 = vunpack.c.h.b16 %v3714
        %v4359 = vunpack.c.l.b16 %v3715
        %v4360 = vunpack.c.h.b16 %v3715
        %v4361 = vunpack.c.l.b16 %v3716
        %v4362 = vunpack.c.l.b16 %v3717
        %v4363 = vunpack.c.h.b16 %v3717
        %v4364 = vunpack.c.l.b16 %v3718
        %v4365 = vunpack.c.h.b16 %v3718
        %v4366 = vunpack.c.l.b16 %v3719
        %v4367 = vunpack.c.h.b16 %v3719
        %v4368 = vunpack.c.l.b16 %v3720
        %v4369 = vunpack.c.l.b16 %v3721
        %v4370 = vunpack.c.h.b16 %v3721
        %v4371 = vunpack.c.l.b16 %v3722
        %v4372 = vunpack.c.h.b16 %v3722
        %v4373 = vunpack.c.l.b16 %v3723
        %v4374 = vunpack.c.h.b16 %v3723
        %v4375 = vunpack.c.l.b16 %v3724
        %v4376 = vunpack.c.l.b16 %v3725
        %v4377 = vunpack.c.h.b16 %v3725
        %v4378 = vunpack.c.l.b16 %v3726
        %v4379 = vunpack.c.h.b16 %v3726
        %v4380 = vunpack.c.l.b16 %v3727
        %v4381 = vunpack.c.h.b16 %v3727
        %v4382 = vunpack.c.l.b16 %v3728
        %v4383 = vunpack.c.l.b16 %v3729
        %v4384 = vunpack.c.h.b16 %v3729
        %v4385 = vunpack.c.l.b16 %v3730
        %v4386 = vunpack.c.h.b16 %v3730
        %v4387 = vunpack.c.l.b16 %v3731
        %v4388 = vunpack.c.h.b16 %v3731
        %v4389 = vunpack.c.l.b16 %v3732
        %v4390 = vunpack.c.l.b16 %v3733
        %v4391 = vunpack.c.h.b16 %v3733
        %v4392 = vunpack.c.l.b16 %v3734
        %v4393 = vunpack.c.h.b16 %v3734
        %v4394 = vunpack.c.l.b16 %v3735
        %v4395 = vunpack.c.h.b16 %v3735
        %v4396 = vunpack.c.l.b16 %v3736
        %v4397 = vunpack.c.l.b16 %v3737
        %v4398 = vunpack.c.h.b16 %v3737
        %v4399 = vunpack.c.l.b16 %v3738
        %v4400 = vunpack.c.h.b16 %v3738
        %v4401 = vunpack.c.l.b16 %v3739
        %v4402 = vunpack.c.h.b16 %v3739
        %v4403 = vunpack.c.l.b16 %v3740
        %v4404 = vunpack.c.l.b16 %v3741
        %v4405 = vunpack.c.h.b16 %v3741
        %v4406 = vunpack.c.l.b16 %v3742
        %v4407 = vunpack.c.h.b16 %v3742
        %v4408 = vunpack.c.l.b16 %v3743
        %v4409 = vunpack.c.h.b16 %v3743
        %v4410 = vunpack.c.l.b16 %v3744
        %v4411 = vunpack.c.l.b16 %v3745
        %v4412 = vunpack.c.h.b16 %v3745
        %v4413 = vunpack.c.l.b16 %v3746
        %v4414 = vunpack.c.h.b16 %v3746
        %v4415 = vunpack.c.l.b16 %v3747
        %v4416 = vunpack.c.h.b16 %v3747
        %v4417 = vunpack.c.l.b16 %v3748
        %v4418 = vunpack.c.l.b16 %v3749
        %v4419 = vunpack.c.h.b16 %v3749
        %v4420 = vunpack.c.l.b16 %v3750
        %v4421 = vunpack.c.h.b16 %v3750
        %v4422 = vunpack.c.l.b16 %v3751
        %v4423 = vunpack.c.h.b16 %v3751
        %v4424 = vunpack.c.l.b16 %v3752
        %v4425 = vunpack.c.l.b16 %v3753
        %v4426 = vunpack.c.h.b16 %v3753
        %v4427 = vunpack.c.l.b16 %v3754
        %v4428 = vunpack.c.h.b16 %v3754
        %v4429 = vunpack.c.l.b16 %v3755
        %v4430 = vunpack.c.h.b16 %v3755
        %v4431 = vunpack.c.l.b16 %v3756
        %v4432 = vunpack.c.l.b16 %v3757
        %v4433 = vunpack.c.h.b16 %v3757
        %v4434 = vunpack.c.l.b16 %v3758
        %v4435 = vunpack.c.h.b16 %v3758
        %v4436 = vunpack.c.l.b16 %v3759
        %v4437 = vunpack.c.h.b16 %v3759
        %v4438 = vunpack.c.l.b16 %v3760
        %v4439 = vunpack.c.l.b16 %v3761
        %v4440 = vunpack.c.h.b16 %v3761
        %v4441 = vunpack.c.l.b16 %v3762
        %v4442 = vunpack.c.h.b16 %v3762
        %v4443 = vunpack.c.l.b16 %v3763
        %v4444 = vunpack.c.h.b16 %v3763
        %v4445 = vunpack.c.l.b16 %v3764
        %v4446 = vunpack.c.l.b16 %v3765
        %v4447 = vunpack.c.h.b16 %v3765
        %v4448 = vunpack.c.l.b16 %v3766
        %v4449 = vunpack.c.h.b16 %v3766
        %v4450 = vunpack.c.l.b16 %v3767
        %v4451 = vunpack.c.h.b16 %v3767
        %v4452 = vunpack.c.l.b16 %v3768
        %v4453 = vunpack.c.l.b16 %v3769
        %v4454 = vunpack.c.h.b16 %v3769
        %v4455 = vunpack.c.l.b16 %v3770
        %v4456 = vunpack.c.h.b16 %v3770
        %v4457 = vunpack.c.l.b16 %v3771
        %v4458 = vunpack.c.h.b16 %v3771
        %v4459 = vunpack.c.l.b16 %v3772
        %v4460 = vunpack.c.l.b16 %v3773
        %v4461 = vunpack.c.h.b16 %v3773
        %v4462 = vunpack.c.l.b16 %v3774
        %v4463 = vunpack.c.h.b16 %v3774
        %v4464 = vunpack.c.l.b16 %v3775
        %v4465 = vunpack.c.h.b16 %v3775
        %v4466 = vunpack.c.l.b16 %v3776
        %v4467 = vunpack.c.l.b16 %v3777
        %v4468 = vunpack.c.h.b16 %v3777
        %v4469 = vunpack.c.l.b16 %v3778
        %v4470 = vunpack.c.h.b16 %v3778
        %v4471 = vunpack.c.l.b16 %v3779
        %v4472 = vunpack.c.h.b16 %v3779
        %v4473 = vunpack.c.l.b16 %v3780
        %v4474 = vunpack.c.l.b16 %v3781
        %v4475 = vunpack.c.h.b16 %v3781
        %v4476 = vunpack.c.l.b16 %v3782
        %v4477 = vunpack.c.h.b16 %v3782
        %v4478 = vunpack.c.l.b16 %v3783
        %v4479 = vunpack.c.h.b16 %v3783
        %v4480 = vunpack.c.l.b16 %v3784
        %v4481 = vunpack.c.l.b16 %v3785
        %v4482 = vunpack.c.h.b16 %v3785
        %v4483 = vunpack.c.l.b16 %v3786
        %v4484 = vunpack.c.h.b16 %v3786
        %v4485 = vunpack.c.l.b16 %v3787
        %v4486 = vunpack.c.h.b16 %v3787
        %v4487 = vunpack.c.l.b16 %v3788
        %v4488 = vunpack.c.l.b16 %v3789
        %v4489 = vunpack.c.h.b16 %v3789
        %v4490 = vunpack.c.l.b16 %v3790
        %v4491 = vunpack.c.h.b16 %v3790
        %v4492 = vunpack.c.l.b16 %v3791
        %v4493 = vunpack.c.h.b16 %v3791
        %v4494 = vunpack.c.l.b16 %v3792
        %v4495 = vunpack.c.l.b16 %v3793
        %v4496 = vunpack.c.h.b16 %v3793
        %v4497 = vunpack.c.l.b16 %v3794
        %v4498 = vunpack.c.h.b16 %v3794
        %v4499 = vunpack.c.l.b16 %v3795
        %v4500 = vunpack.c.h.b16 %v3795
        %v4501 = vunpack.c.l.b16 %v3796
        %v4502 = vunpack.c.l.b16 %v3797
        %v4503 = vunpack.c.h.b16 %v3797
        %v4504 = vunpack.c.l.b16 %v3798
        %v4505 = vunpack.c.h.b16 %v3798
        %v4506 = vunpack.c.l.b16 %v3799
        %v4507 = vunpack.c.h.b16 %v3799
        %v4508 = vunpack.c.l.b16 %v3800
        %v4509 = vunpack.c.l.b16 %v3801
        %v4510 = vunpack.c.h.b16 %v3801
        %v4511 = vunpack.c.l.b16 %v3802
        %v4512 = vunpack.c.h.b16 %v3802
        %v4513 = vunpack.c.l.b16 %v3803
        %v4514 = vunpack.c.h.b16 %v3803
        %v4515 = vunpack.c.l.b16 %v3804
        %v4516 = vunpack.c.l.b16 %v3805
        %v4517 = vunpack.c.h.b16 %v3805
        %v4518 = vunpack.c.l.b16 %v3806
        %v4519 = vunpack.c.h.b16 %v3806
        %v4520 = vunpack.c.l.b16 %v3807
        %v4521 = vunpack.c.h.b16 %v3807
        %v4522 = vunpack.c.l.b16 %v3808
        %v4523 = vunpack.c.l.b16 %v3809
        %v4524 = vunpack.c.h.b16 %v3809
        %v4525 = vunpack.c.l.b16 %v3810
        %v4526 = vunpack.c.h.b16 %v3810
        %v4527 = vunpack.c.l.b16 %v3811
        %v4528 = vunpack.c.h.b16 %v3811
        %v4529 = vunpack.c.l.b16 %v3812
        %v4530 = vunpack.c.l.b16 %v3813
        %v4531 = vunpack.c.h.b16 %v3813
        %v4532 = vunpack.c.l.b16 %v3814
        %v4533 = vunpack.c.h.b16 %v3814
        %v4534 = vunpack.c.l.b16 %v3815
        %v4535 = vunpack.c.h.b16 %v3815
        %v4536 = vunpack.c.l.b16 %v3816
        %v4537 = vunpack.c.l.b16 %v3817
        %v4538 = vunpack.c.h.b16 %v3817
        %v4539 = vunpack.c.l.b16 %v3818
        %v4540 = vunpack.c.h.b16 %v3818
        %v4541 = vunpack.c.l.b16 %v3819
        %v4542 = vunpack.c.h.b16 %v3819
        %v4543 = vunpack.c.l.b16 %v3820
        %v4544 = vunpack.c.l.b16 %v3821
        %v4545 = vunpack.c.h.b16 %v3821
        %v4546 = vunpack.c.l.b16 %v3822
        %v4547 = vunpack.c.h.b16 %v3822
        %v4548 = vunpack.c.l.b16 %v3823
        %v4549 = vunpack.c.h.b16 %v3823
        %v4550 = vunpack.c.l.b16 %v3824
        %v4551 = vunpack.c.l.b16 %v3825
        %v4552 = vunpack.c.h.b16 %v3825
        %v4553 = vunpack.c.l.b16 %v3826
        %v4554 = vunpack.c.h.b16 %v3826
        %v4555 = vunpack.c.l.b16 %v3827
        %v4556 = vunpack.c.h.b16 %v3827
        %v4557 = vunpack.c.l.b16 %v3828
        %v4558 = vunpack.c.l.b16 %v3829
        %v4559 = vunpack.c.h.b16 %v3829
        %v4560 = vunpack.c.l.b16 %v3830
        %v4561 = vunpack.c.h.b16 %v3830
        %v4562 = vunpack.c.l.b16 %v3831
        %v4563 = vunpack.c.h.b16 %v3831
        %v4564 = vunpack.c.l.b16 %v3832
        %v4565 = vunpack.c.l.b16 %v3833
        %v4566 = vunpack.c.h.b16 %v3833
        %v4567 = vunpack.c.l.b16 %v3834
        %v4568 = vunpack.c.h.b16 %v3834
        %v4569 = vunpack.c.l.b16 %v3835
        %v4570 = vunpack.c.h.b16 %v3835
        %v4571 = vunpack.c.l.b16 %v3836
        %v4572 = vunpack.c.l.b16 %v3837
        %v4573 = vunpack.c.h.b16 %v3837
        %v4574 = vunpack.c.l.b16 %v3838
        %v4575 = vunpack.c.h.b16 %v3838
        %v4576 = vunpack.c.l.b16 %v3839
        %v4577 = vunpack.c.h.b16 %v3839
        %v4578 = vunpack.c.l.b16 %v3840
        %v4579 = vunpack.c.l.b16 %v3841
        %v4580 = vunpack.c.h.b16 %v3841
        %v4581 = vunpack.c.l.b16 %v3842
        %v4582 = vunpack.c.h.b16 %v3842
        %v4583 = vunpack.c.l.b16 %v3843
        %v4584 = vunpack.c.h.b16 %v3843
        %v4585 = vunpack.c.l.b16 %v3844
        %v4586 = vpack.c.b16 %v4145, %v4138
        %v4587 = vpack.c.b16 %v4146, %v4139
        %v4588 = vpack.c.b16 %v4147, %v4140
        %v4589 = vpack.c.b16 %v4148, %v4141
        %v4590 = vpack.c.b16 %v4149, %v4142
        %v4591 = vpack.c.b16 %v4150, %v4143
        %v4592 = vpack.c.b16 %v4151, %v4144
        %v4593 = vpack.c.b16 %v4159, %v4152
        %v4594 = vpack.c.b16 %v4160, %v4153
        %v4595 = vpack.c.b16 %v4161, %v4154
        %v4596 = vpack.c.b16 %v4162, %v4155
        %v4597 = vpack.c.b16 %v4163, %v4156
        %v4598 = vpack.c.b16 %v4164, %v4157
        %v4599 = vpack.c.b16 %v4165, %v4158
        %v4600 = vpack.c.b16 %v4173, %v4166
        %v4601 = vpack.c.b16 %v4174, %v4167
        %v4602 = vpack.c.b16 %v4175, %v4168
        %v4603 = vpack.c.b16 %v4176, %v4169
        %v4604 = vpack.c.b16 %v4177, %v4170
        %v4605 = vpack.c.b16 %v4178, %v4171
        %v4606 = vpack.c.b16 %v4179, %v4172
        %v4607 = vpack.c.b16 %v4187, %v4180
        %v4608 = vpack.c.b16 %v4188, %v4181
        %v4609 = vpack.c.b16 %v4189, %v4182
        %v4610 = vpack.c.b16 %v4190, %v4183
        %v4611 = vpack.c.b16 %v4191, %v4184
        %v4612 = vpack.c.b16 %v4192, %v4185
        %v4613 = vpack.c.b16 %v4193, %v4186
        %v4614 = vpack.c.b16 %v4201, %v4194
        %v4615 = vpack.c.b16 %v4202, %v4195
        %v4616 = vpack.c.b16 %v4203, %v4196
        %v4617 = vpack.c.b16 %v4204, %v4197
        %v4618 = vpack.c.b16 %v4205, %v4198
        %v4619 = vpack.c.b16 %v4206, %v4199
        %v4620 = vpack.c.b16 %v4207, %v4200
        %v4621 = vpack.c.b16 %v4215, %v4208
        %v4622 = vpack.c.b16 %v4216, %v4209
        %v4623 = vpack.c.b16 %v4217, %v4210
        %v4624 = vpack.c.b16 %v4218, %v4211
        %v4625 = vpack.c.b16 %v4219, %v4212
        %v4626 = vpack.c.b16 %v4220, %v4213
        %v4627 = vpack.c.b16 %v4221, %v4214
        %v4628 = vpack.c.b16 %v4229, %v4222
        %v4629 = vpack.c.b16 %v4230, %v4223
        %v4630 = vpack.c.b16 %v4231, %v4224
        %v4631 = vpack.c.b16 %v4232, %v4225
        %v4632 = vpack.c.b16 %v4233, %v4226
        %v4633 = vpack.c.b16 %v4234, %v4227
        %v4634 = vpack.c.b16 %v4235, %v4228
        %v4635 = vpack.c.b16 %v4243, %v4236
        %v4636 = vpack.c.b16 %v4244, %v4237
        %v4637 = vpack.c.b16 %v4245, %v4238
        %v4638 = vpack.c.b16 %v4246, %v4239
        %v4639 = vpack.c.b16 %v4247, %v4240
        %v4640 = vpack.c.b16 %v4248, %v4241
        %v4641 = vpack.c.b16 %v4249, %v4242
        %v4642 = vpack.c.b16 %v4257, %v4250
        %v4643 = vpack.c.b16 %v4258, %v4251
        %v4644 = vpack.c.b16 %v4259, %v4252
        %v4645 = vpack.c.b16 %v4260, %v4253
        %v4646 = vpack.c.b16 %v4261, %v4254
        %v4647 = vpack.c.b16 %v4262, %v4255
        %v4648 = vpack.c.b16 %v4263, %v4256
        %v4649 = vpack.c.b16 %v4271, %v4264
        %v4650 = vpack.c.b16 %v4272, %v4265
        %v4651 = vpack.c.b16 %v4273, %v4266
        %v4652 = vpack.c.b16 %v4274, %v4267
        %v4653 = vpack.c.b16 %v4275, %v4268
        %v4654 = vpack.c.b16 %v4276, %v4269
        %v4655 = vpack.c.b16 %v4277, %v4270
        %v4656 = vpack.c.b16 %v4285, %v4278
        %v4657 = vpack.c.b16 %v4286, %v4279
        %v4658 = vpack.c.b16 %v4287, %v4280
        %v4659 = vpack.c.b16 %v4288, %v4281
        %v4660 = vpack.c.b16 %v4289, %v4282
        %v4661 = vpack.c.b16 %v4290, %v4283
        %v4662 = vpack.c.b16 %v4291, %v4284
        %v4663 = vpack.c.b16 %v4299, %v4292
        %v4664 = vpack.c.b16 %v4300, %v4293
        %v4665 = vpack.c.b16 %v4301, %v4294
        %v4666 = vpack.c.b16 %v4302, %v4295
        %v4667 = vpack.c.b16 %v4303, %v4296
        %v4668 = vpack.c.b16 %v4304, %v4297
        %v4669 = vpack.c.b16 %v4305, %v4298
        %v4670 = vpack.c.b16 %v4313, %v4306
        %v4671 = vpack.c.b16 %v4314, %v4307
        %v4672 = vpack.c.b16 %v4315, %v4308
        %v4673 = vpack.c.b16 %v4316, %v4309
        %v4674 = vpack.c.b16 %v4317, %v4310
        %v4675 = vpack.c.b16 %v4318, %v4311
        %v4676 = vpack.c.b16 %v4319, %v4312
        %v4677 = vpack.c.b16 %v4327, %v4320
        %v4678 = vpack.c.b16 %v4328, %v4321
        %v4679 = vpack.c.b16 %v4329, %v4322
        %v4680 = vpack.c.b16 %v4330, %v4323
        %v4681 = vpack.c.b16 %v4331, %v4324
        %v4682 = vpack.c.b16 %v4332, %v4325
        %v4683 = vpack.c.b16 %v4333, %v4326
        %v4684 = vpack.c.b16 %v4341, %v4334
        %v4685 = vpack.c.b16 %v4342, %v4335
        %v4686 = vpack.c.b16 %v4343, %v4336
        %v4687 = vpack.c.b16 %v4344, %v4337
        %v4688 = vpack.c.b16 %v4345, %v4338
        %v4689 = vpack.c.b16 %v4346, %v4339
        %v4690 = vpack.c.b16 %v4347, %v4340
        %v4691 = vpack.c.b16 %v4355, %v4348
        %v4692 = vpack.c.b16 %v4356, %v4349
        %v4693 = vpack.c.b16 %v4357, %v4350
        %v4694 = vpack.c.b16 %v4358, %v4351
        %v4695 = vpack.c.b16 %v4359, %v4352
        %v4696 = vpack.c.b16 %v4360, %v4353
        %v4697 = vpack.c.b16 %v4361, %v4354
        %v4698 = vpack.c.b16 %v4369, %v4362
        %v4699 = vpack.c.b16 %v4370, %v4363
        %v4700 = vpack.c.b16 %v4371, %v4364
        %v4701 = vpack.c.b16 %v4372, %v4365
        %v4702 = vpack.c.b16 %v4373, %v4366
        %v4703 = vpack.c.b16 %v4374, %v4367
        %v4704 = vpack.c.b16 %v4375, %v4368
        %v4705 = vpack.c.b16 %v4383, %v4376
        %v4706 = vpack.c.b16 %v4384, %v4377
        %v4707 = vpack.c.b16 %v4385, %v4378
        %v4708 = vpack.c.b16 %v4386, %v4379
        %v4709 = vpack.c.b16 %v4387, %v4380
        %v4710 = vpack.c.b16 %v4388, %v4381
        %v4711 = vpack.c.b16 %v4389, %v4382
        %v4712 = vpack.c.b16 %v4397, %v4390
        %v4713 = vpack.c.b16 %v4398, %v4391
        %v4714 = vpack.c.b16 %v4399, %v4392
        %v4715 = vpack.c.b16 %v4400, %v4393
        %v4716 = vpack.c.b16 %v4401, %v4394
        %v4717 = vpack.c.b16 %v4402, %v4395
        %v4718 = vpack.c.b16 %v4403, %v4396
        %v4719 = vpack.c.b16 %v4411, %v4404
        %v4720 = vpack.c.b16 %v4412, %v4405
        %v4721 = vpack.c.b16 %v4413, %v4406
        %v4722 = vpack.c.b16 %v4414, %v4407
        %v4723 = vpack.c.b16 %v4415, %v4408
        %v4724 = vpack.c.b16 %v4416, %v4409
        %v4725 = vpack.c.b16 %v4417, %v4410
        %v4726 = vpack.c.b16 %v4425, %v4418
        %v4727 = vpack.c.b16 %v4426, %v4419
        %v4728 = vpack.c.b16 %v4427, %v4420
        %v4729 = vpack.c.b16 %v4428, %v4421
        %v4730 = vpack.c.b16 %v4429, %v4422
        %v4731 = vpack.c.b16 %v4430, %v4423
        %v4732 = vpack.c.b16 %v4431, %v4424
        %v4733 = vpack.c.b16 %v4439, %v4432
        %v4734 = vpack.c.b16 %v4440, %v4433
        %v4735 = vpack.c.b16 %v4441, %v4434
        %v4736 = vpack.c.b16 %v4442, %v4435
        %v4737 = vpack.c.b16 %v4443, %v4436
        %v4738 = vpack.c.b16 %v4444, %v4437
        %v4739 = vpack.c.b16 %v4445, %v4438
        %v4740 = vpack.c.b16 %v4453, %v4446
        %v4741 = vpack.c.b16 %v4454, %v4447
        %v4742 = vpack.c.b16 %v4455, %v4448
        %v4743 = vpack.c.b16 %v4456, %v4449
        %v4744 = vpack.c.b16 %v4457, %v4450
        %v4745 = vpack.c.b16 %v4458, %v4451
        %v4746 = vpack.c.b16 %v4459, %v4452
        %v4747 = vpack.c.b16 %v4467, %v4460
        %v4748 = vpack.c.b16 %v4468, %v4461
        %v4749 = vpack.c.b16 %v4469, %v4462
        %v4750 = vpack.c.b16 %v4470, %v4463
        %v4751 = vpack.c.b16 %v4471, %v4464
        %v4752 = vpack.c.b16 %v4472, %v4465
        %v4753 = vpack.c.b16 %v4473, %v4466
        %v4754 = vpack.c.b16 %v4481, %v4474
        %v4755 = vpack.c.b16 %v4482, %v4475
        %v4756 = vpack.c.b16 %v4483, %v4476
        %v4757 = vpack.c.b16 %v4484, %v4477
        %v4758 = vpack.c.b16 %v4485, %v4478
        %v4759 = vpack.c.b16 %v4486, %v4479
        %v4760 = vpack.c.b16 %v4487, %v4480
        %v4761 = vpack.c.b16 %v4495, %v4488
        %v4762 = vpack.c.b16 %v4496, %v4489
        %v4763 = vpack.c.b16 %v4497, %v4490
        %v4764 = vpack.c.b16 %v4498, %v4491
        %v4765 = vpack.c.b16 %v4499, %v4492
        %v4766 = vpack.c.b16 %v4500, %v4493
        %v4767 = vpack.c.b16 %v4501, %v4494
        %v4768 = vpack.c.b16 %v4509, %v4502
        %v4769 = vpack.c.b16 %v4510, %v4503
        %v4770 = vpack.c.b16 %v4511, %v4504
        %v4771 = vpack.c.b16 %v4512, %v4505
        %v4772 = vpack.c.b16 %v4513, %v4506
        %v4773 = vpack.c.b16 %v4514, %v4507
        %v4774 = vpack.c.b16 %v4515, %v4508
        %v4775 = vpack.c.b16 %v4523, %v4516
        %v4776 = vpack.c.b16 %v4524, %v4517
        %v4777 = vpack.c.b16 %v4525, %v4518
        %v4778 = vpack.c.b16 %v4526, %v4519
        %v4779 = vpack.c.b16 %v4527, %v4520
        %v4780 = vpack.c.b16 %v4528, %v4521
        %v4781 = vpack.c.b16 %v4529, %v4522
        %v4782 = vpack.c.b16 %v4537, %v4530
        %v4783 = vpack.c.b16 %v4538, %v4531
        %v4784 = vpack.c.b16 %v4539, %v4532
        %v4785 = vpack.c.b16 %v4540, %v4533
        %v4786 = vpack.c.b16 %v4541, %v4534
        %v4787 = vpack.c.b16 %v4542, %v4535
        %v4788 = vpack.c.b16 %v4543, %v4536
        %v4789 = vpack.c.b16 %v4551, %v4544
        %v4790 = vpack.c.b16 %v4552, %v4545
        %v4791 = vpack.c.b16 %v4553, %v4546
        %v4792 = vpack.c.b16 %v4554, %v4547
        %v4793 = vpack.c.b16 %v4555, %v4548
        %v4794 = vpack.c.b16 %v4556, %v4549
        %v4795 = vpack.c.b16 %v4557, %v4550
        %v4796 = vpack.c.b16 %v4565, %v4558
        %v4797 = vpack.c.b16 %v4566, %v4559
        %v4798 = vpack.c.b16 %v4567, %v4560
        %v4799 = vpack.c.b16 %v4568, %v4561
        %v4800 = vpack.c.b16 %v4569, %v4562
        %v4801 = vpack.c.b16 %v4570, %v4563
        %v4802 = vpack.c.b16 %v4571, %v4564
        %v4803 = vpack.c.b16 %v4579, %v4572
        %v4804 = vpack.c.b16 %v4580, %v4573
        %v4805 = vpack.c.b16 %v4581, %v4574
        %v4806 = vpack.c.b16 %v4582, %v4575
        %v4807 = vpack.c.b16 %v4583, %v4576
        %v4808 = vpack.c.b16 %v4584, %v4577
        %v4809 = vpack.c.b16 %v4585, %v4578
        %5034 = vmatprep.subr.bf16.mxu0 %v4587
        %5035 = vmatpush1.bf16.msra.mxu0 %v4586
        %5036 = vmatprep.subr.bf16.mxu0 %v4594
        %5037 = vmatpush1.bf16.msra.mxu0 %v4593
        %5038 = vmatprep.subr.bf16.mxu0 %v4601
        %5039 = vmatpush1.bf16.msra.mxu0 %v4600
        %5040 = vmatprep.subr.bf16.mxu0 %v4608
        %5041 = vmatpush1.bf16.msra.mxu0 %v4607
        %5042 = vmatprep.subr.bf16.mxu0 %v4615
        %5043 = vmatpush1.bf16.msra.mxu0 %v4614
        %5044 = vmatprep.subr.bf16.mxu0 %v4622
        %5045 = vmatpush1.bf16.msra.mxu0 %v4621
        %5046 = vmatprep.subr.bf16.mxu0 %v4629
        %5047 = vmatpush1.bf16.msra.mxu0 %v4628
        %5048 = vmatprep.subr.bf16.mxu0 %v4636
        %5049 = vmatpush1.bf16.msra.mxu0 %v4635
        %5050 = vmatprep.subr.bf16.mxu0 %v4643
        %5051 = vmatpush1.bf16.msra.mxu0 %v4642
        %5052 = vmatprep.subr.bf16.mxu0 %v4650
        %5053 = vmatpush1.bf16.msra.mxu0 %v4649
        %5054 = vmatprep.subr.bf16.mxu0 %v4657
        %5055 = vmatpush1.bf16.msra.mxu0 %v4656
        %5056 = vmatprep.subr.bf16.mxu0 %v4664
        %5057 = vmatpush1.bf16.msra.mxu0 %v4663
        %5058 = vmatprep.subr.bf16.mxu0 %v4671
        %5059 = vmatpush1.bf16.msra.mxu0 %v4670
        %5060 = vmatprep.subr.bf16.mxu0 %v4678
        %5061 = vmatpush1.bf16.msra.mxu0 %v4677
        %5062 = vmatprep.subr.bf16.mxu0 %v4685
        %5063 = vmatpush1.bf16.msra.mxu0 %v4684
        %5064 = vmatprep.subr.bf16.mxu0 %v4692
        %5065 = vmatpush1.bf16.msra.mxu0 %v4691
        %5066 = vmatprep.mubr.bf16.mxu0 %v3558
        %5067 = vmatmul.mubr.bf16.gmra.mrb[0].mxu0 %v3557
        %v5068 = vpop.f32.mrb[0].mxu0
        %v5069 = vadd.f32 %v3850, %v5068
        %v5070 = vpop.f32.mrb[0].mxu0
        %v5071 = vadd.f32 %v3854, %v5070
        %v5072 = vpop.f32.mrb[0].mxu0
        %v5073 = vadd.f32 %v3850, %v5072
        %v5074 = vpop.f32.mrb[0].mxu0
        %v5075 = vadd.f32 %v3854, %v5074
        %5076 = vmatprep.mubr.bf16.mxu0 %v3562
        %5077 = vmatmul.mubr.bf16.gmra.mrb[0].mxu0 %v3561
        %v5078 = vpop.f32.mrb[0].mxu0
        %v5079 = vadd.f32 %v3850, %v5078
        %v5080 = vpop.f32.mrb[0].mxu0
        %v5081 = vadd.f32 %v3854, %v5080
        %v5082 = vpop.f32.mrb[0].mxu0
        %v5083 = vadd.f32 %v3850, %v5082
        %v5084 = vpop.f32.mrb[0].mxu0
        %v5085 = vadd.f32 %v3854, %v5084
        %5086 = vmatprep.mubr.bf16.mxu0 %v3566
        %5087 = vmatmul.mubr.bf16.gmra.mrb[0].mxu0 %v3565
        %v5088 = vpop.f32.mrb[0].mxu0
        %v5089 = vadd.f32 %v3850, %v5088
        %v5090 = vpop.f32.mrb[0].mxu0
        %v5091 = vadd.f32 %v3854, %v5090
        %v5092 = vpop.f32.mrb[0].mxu0
        %v5093 = vadd.f32 %v3850, %v5092
        %v5094 = vpop.f32.mrb[0].mxu0
        %v5095 = vadd.f32 %v3854, %v5094
        %5096 = vmatprep.mubr.bf16.mxu0 %v3570
        %5097 = vmatmul.mubr.bf16.gmra.mrb[0].mxu0 %v3569
        %v5098 = vpop.f32.mrb[0].mxu0
        %v5099 = vadd.f32 %v3850, %v5098
        %v5100 = vpop.f32.mrb[0].mxu0
        %v5101 = vadd.f32 %v3854, %v5100
        %v5102 = vpop.f32.mrb[0].mxu0
        %v5103 = vadd.f32 %v3850, %v5102
        %v5104 = vpop.f32.mrb[0].mxu0
        %v5105 = vadd.f32 %v3854, %v5104
        %5106 = vmatprep.mubr.bf16.mxu0 %v3574
        %5107 = vmatmul.mubr.bf16.gmra.mrb[0].mxu0 %v3573
        %v5108 = vpop.f32.mrb[0].mxu0
        %v5109 = vadd.f32 %v3850, %v5108
        %v5110 = vpop.f32.mrb[0].mxu0
        %v5111 = vadd.f32 %v3854, %v5110
        %v5112 = vpop.f32.mrb[0].mxu0
        %v5113 = vadd.f32 %v3850, %v5112
        %v5114 = vpop.f32.mrb[0].mxu0
        %v5115 = vadd.f32 %v3854, %v5114
        %5116 = vmatprep.mubr.bf16.mxu0 %v3578
        %5117 = vmatmul.mubr.bf16.gmra.mrb[0].mxu0 %v3577
        %v5118 = vpop.f32.mrb[0].mxu0
        %v5119 = vadd.f32 %v3850, %v5118
        %v5120 = vpop.f32.mrb[0].mxu0
        %v5121 = vadd.f32 %v3854, %v5120
        %v5122 = vpop.f32.mrb[0].mxu0
        %v5123 = vadd.f32 %v3850, %v5122
        %v5124 = vpop.f32.mrb[0].mxu0
        %v5125 = vadd.f32 %v3854, %v5124
        %5126 = vmatprep.mubr.bf16.mxu0 %v3582
        %5127 = vmatmul.mubr.bf16.gmra.mrb[0].mxu0 %v3581
        %v5128 = vpop.f32.mrb[0].mxu0
        %v5129 = vadd.f32 %v3850, %v5128
        %v5130 = vpop.f32.mrb[0].mxu0
        %v5131 = vadd.f32 %v3854, %v5130
        %v5132 = vpop.f32.mrb[0].mxu0
        %v5133 = vadd.f32 %v3850, %v5132
        %v5134 = vpop.f32.mrb[0].mxu0
        %v5135 = vadd.f32 %v3854, %v5134
        %5136 = vmatprep.mubr.bf16.mxu0 %v3586
        %5137 = vmatmul.mubr.bf16.gmra.mrb[0].mxu0 %v3585
        %v5138 = vpop.f32.mrb[0].mxu0
        %v5139 = vadd.f32 %v3850, %v5138
        %v5140 = vpop.f32.mrb[0].mxu0
        %v5141 = vadd.f32 %v3854, %v5140
        %v5142 = vpop.f32.mrb[0].mxu0
        %v5143 = vadd.f32 %v3850, %v5142
        %v5144 = vpop.f32.mrb[0].mxu0
        %v5145 = vadd.f32 %v3854, %v5144
        %5146 = vdwg.mxu0
        %5147 = vmatprep.subr.bf16.mxu0 %v4699
        %5148 = vmatpush1.bf16.msra.mxu0 %v4698
        %5149 = vmatprep.subr.bf16.mxu0 %v4706
        %5150 = vmatpush1.bf16.msra.mxu0 %v4705
        %5151 = vmatprep.subr.bf16.mxu0 %v4713
        %5152 = vmatpush1.bf16.msra.mxu0 %v4712
        %5153 = vmatprep.subr.bf16.mxu0 %v4720
        %5154 = vmatpush1.bf16.msra.mxu0 %v4719
        %5155 = vmatprep.subr.bf16.mxu0 %v4727
        %5156 = vmatpush1.bf16.msra.mxu0 %v4726
        %5157 = vmatprep.subr.bf16.mxu0 %v4734
        %5158 = vmatpush1.bf16.msra.mxu0 %v4733
        %5159 = vmatprep.subr.bf16.mxu0 %v4741
        %5160 = vmatpush1.bf16.msra.mxu0 %v4740
        %5161 = vmatprep.subr.bf16.mxu0 %v4748
        %5162 = vmatpush1.bf16.msra.mxu0 %v4747
        %5163 = vmatprep.subr.bf16.mxu0 %v4755
        %5164 = vmatpush1.bf16.msra.mxu0 %v4754
        %5165 = vmatprep.subr.bf16.mxu0 %v4762
        %5166 = vmatpush1.bf16.msra.mxu0 %v4761
        %5167 = vmatprep.subr.bf16.mxu0 %v4769
        %5168 = vmatpush1.bf16.msra.mxu0 %v4768
        %5169 = vmatprep.subr.bf16.mxu0 %v4776
        %5170 = vmatpush1.bf16.msra.mxu0 %v4775
        %5171 = vmatprep.subr.bf16.mxu0 %v4783
        %5172 = vmatpush1.bf16.msra.mxu0 %v4782
        %5173 = vmatprep.subr.bf16.mxu0 %v4790
        %5174 = vmatpush1.bf16.msra.mxu0 %v4789
        %5175 = vmatprep.subr.bf16.mxu0 %v4797
        %5176 = vmatpush1.bf16.msra.mxu0 %v4796
        %5177 = vmatprep.subr.bf16.mxu0 %v4804
        %5178 = vmatpush1.bf16.msra.mxu0 %v4803
        %5179 = vmatprep.mubr.bf16.mxu0 %v3560
        %5180 = vmatmul.mubr.bf16.gmra.mrb[0].mxu0 %v3559
        %v5181 = vpop.f32.mrb[0].mxu0
        %v5182 = vadd.f32 %v5069, %v5181
        %v5183 = vpop.f32.mrb[0].mxu0
        %v5184 = vadd.f32 %v5071, %v5183
        %v5185 = vpop.f32.mrb[0].mxu0
        %v5186 = vadd.f32 %v5073, %v5185
        %v5187 = vpop.f32.mrb[0].mxu0
        %v5188 = vadd.f32 %v5075, %v5187
        %5189 = vmatprep.mubr.bf16.mxu0 %v3564
        %5190 = vmatmul.mubr.bf16.gmra.mrb[0].mxu0 %v3563
        %v5191 = vpop.f32.mrb[0].mxu0
        %v5192 = vadd.f32 %v5079, %v5191
        %v5193 = vpop.f32.mrb[0].mxu0
        %v5194 = vadd.f32 %v5081, %v5193
        %v5195 = vpop.f32.mrb[0].mxu0
        %v5196 = vadd.f32 %v5083, %v5195
        %v5197 = vpop.f32.mrb[0].mxu0
        %v5198 = vadd.f32 %v5085, %v5197
        %5199 = vmatprep.mubr.bf16.mxu0 %v3568
        %5200 = vmatmul.mubr.bf16.gmra.mrb[0].mxu0 %v3567
        %v5201 = vpop.f32.mrb[0].mxu0
        %v5202 = vadd.f32 %v5089, %v5201
        %v5203 = vpop.f32.mrb[0].mxu0
        %v5204 = vadd.f32 %v5091, %v5203
        %v5205 = vpop.f32.mrb[0].mxu0
        %v5206 = vadd.f32 %v5093, %v5205
        %v5207 = vpop.f32.mrb[0].mxu0
        %v5208 = vadd.f32 %v5095, %v5207
        %5209 = vmatprep.mubr.bf16.mxu0 %v3572
        %5210 = vmatmul.mubr.bf16.gmra.mrb[0].mxu0 %v3571
        %v5211 = vpop.f32.mrb[0].mxu0
        %v5212 = vadd.f32 %v5099, %v5211
        %v5213 = vpop.f32.mrb[0].mxu0
        %v5214 = vadd.f32 %v5101, %v5213
        %v5215 = vpop.f32.mrb[0].mxu0
        %v5216 = vadd.f32 %v5103, %v5215
        %v5217 = vpop.f32.mrb[0].mxu0
        %v5218 = vadd.f32 %v5105, %v5217
        %5219 = vmatprep.mubr.bf16.mxu0 %v3576
        %5220 = vmatmul.mubr.bf16.gmra.mrb[0].mxu0 %v3575
        %v5221 = vpop.f32.mrb[0].mxu0
        %v5222 = vadd.f32 %v5109, %v5221
        %v5223 = vpop.f32.mrb[0].mxu0
        %v5224 = vadd.f32 %v5111, %v5223
        %v5225 = vpop.f32.mrb[0].mxu0
        %v5226 = vadd.f32 %v5113, %v5225
        %v5227 = vpop.f32.mrb[0].mxu0
        %v5228 = vadd.f32 %v5115, %v5227
        %5229 = vmatprep.mubr.bf16.mxu0 %v3580
        %5230 = vmatmul.mubr.bf16.gmra.mrb[0].mxu0 %v3579
        %v5231 = vpop.f32.mrb[0].mxu0
        %v5232 = vadd.f32 %v5119, %v5231
        %v5233 = vpop.f32.mrb[0].mxu0
        %v5234 = vadd.f32 %v5121, %v5233
        %v5235 = vpop.f32.mrb[0].mxu0
        %v5236 = vadd.f32 %v5123, %v5235
        %v5237 = vpop.f32.mrb[0].mxu0
        %v5238 = vadd.f32 %v5125, %v5237
        %5239 = vmatprep.mubr.bf16.mxu0 %v3584
        %5240 = vmatmul.mubr.bf16.gmra.mrb[0].mxu0 %v3583
        %v5241 = vpop.f32.mrb[0].mxu0
        %v5242 = vadd.f32 %v5129, %v5241
        %v5243 = vpop.f32.mrb[0].mxu0
        %v5244 = vadd.f32 %v5131, %v5243
        %v5245 = vpop.f32.mrb[0].mxu0
        %v5246 = vadd.f32 %v5133, %v5245
        %v5247 = vpop.f32.mrb[0].mxu0
        %v5248 = vadd.f32 %v5135, %v5247
        %5249 = vmatprep.mubr.bf16.mxu0 %v3588
        %5250 = vmatmul.mubr.bf16.gmra.mrb[0].mxu0 %v3587
        %v5251 = vpop.f32.mrb[0].mxu0
        %v5252 = vadd.f32 %v5139, %v5251
        %v5253 = vpop.f32.mrb[0].mxu0
        %v5254 = vadd.f32 %v5141, %v5253
        %v5255 = vpop.f32.mrb[0].mxu0
        %v5256 = vadd.f32 %v5143, %v5255
        %v5257 = vpop.f32.mrb[0].mxu0
        %v5258 = vadd.f32 %v5145, %v5257
        %5259 = vdwg.mxu0
        %5260 = vmatprep.subr.bf16.mxu0 %v4589
        %5261 = vmatpush1.bf16.msra.mxu0 %v4588
        %5262 = vmatprep.subr.bf16.mxu0 %v4596
        %5263 = vmatpush1.bf16.msra.mxu0 %v4595
        %5264 = vmatprep.subr.bf16.mxu0 %v4603
        %5265 = vmatpush1.bf16.msra.mxu0 %v4602
        %5266 = vmatprep.subr.bf16.mxu0 %v4610
        %5267 = vmatpush1.bf16.msra.mxu0 %v4609
        %5268 = vmatprep.subr.bf16.mxu0 %v4617
        %5269 = vmatpush1.bf16.msra.mxu0 %v4616
        %5270 = vmatprep.subr.bf16.mxu0 %v4624
        %5271 = vmatpush1.bf16.msra.mxu0 %v4623
        %5272 = vmatprep.subr.bf16.mxu0 %v4631
        %5273 = vmatpush1.bf16.msra.mxu0 %v4630
        %5274 = vmatprep.subr.bf16.mxu0 %v4638
        %5275 = vmatpush1.bf16.msra.mxu0 %v4637
        %5276 = vmatprep.subr.bf16.mxu0 %v4645
        %5277 = vmatpush1.bf16.msra.mxu0 %v4644
        %5278 = vmatprep.subr.bf16.mxu0 %v4652
        %5279 = vmatpush1.bf16.msra.mxu0 %v4651
        %5280 = vmatprep.subr.bf16.mxu0 %v4659
        %5281 = vmatpush1.bf16.msra.mxu0 %v4658
        %5282 = vmatprep.subr.bf16.mxu0 %v4666
        %5283 = vmatpush1.bf16.msra.mxu0 %v4665
        %5284 = vmatprep.subr.bf16.mxu0 %v4673
        %5285 = vmatpush1.bf16.msra.mxu0 %v4672
        %5286 = vmatprep.subr.bf16.mxu0 %v4680
        %5287 = vmatpush1.bf16.msra.mxu0 %v4679
        %5288 = vmatprep.subr.bf16.mxu0 %v4687
        %5289 = vmatpush1.bf16.msra.mxu0 %v4686
        %5290 = vmatprep.subr.bf16.mxu0 %v4694
        %5291 = vmatpush1.bf16.msra.mxu0 %v4693
        %5292 = vmatprep.mubr.bf16.mxu0 %v3558
        %5293 = vmatmul.mubr.bf16.gmra.mrb[0].mxu0 %v3557
        %v5294 = vpop.f32.mrb[0].mxu0
        %v5295 = vadd.f32 %v3858, %v5294
        %v5296 = vpop.f32.mrb[0].mxu0
        %v5297 = vadd.f32 %v3862, %v5296
        %v5298 = vpop.f32.mrb[0].mxu0
        %v5299 = vadd.f32 %v3858, %v5298
        %v5300 = vpop.f32.mrb[0].mxu0
        %v5301 = vadd.f32 %v3862, %v5300
        %5302 = vmatprep.mubr.bf16.mxu0 %v3562
        %5303 = vmatmul.mubr.bf16.gmra.mrb[0].mxu0 %v3561
        %v5304 = vpop.f32.mrb[0].mxu0
        %v5305 = vadd.f32 %v3858, %v5304
        %v5306 = vpop.f32.mrb[0].mxu0
        %v5307 = vadd.f32 %v3862, %v5306
        %v5308 = vpop.f32.mrb[0].mxu0
        %v5309 = vadd.f32 %v3858, %v5308
        %v5310 = vpop.f32.mrb[0].mxu0
        %v5311 = vadd.f32 %v3862, %v5310
        %5312 = vmatprep.mubr.bf16.mxu0 %v3566
        %5313 = vmatmul.mubr.bf16.gmra.mrb[0].mxu0 %v3565
        %v5314 = vpop.f32.mrb[0].mxu0
        %v5315 = vadd.f32 %v3858, %v5314
        %v5316 = vpop.f32.mrb[0].mxu0
        %v5317 = vadd.f32 %v3862, %v5316
        %v5318 = vpop.f32.mrb[0].mxu0
        %v5319 = vadd.f32 %v3858, %v5318
        %v5320 = vpop.f32.mrb[0].mxu0
        %v5321 = vadd.f32 %v3862, %v5320
        %5322 = vmatprep.mubr.bf16.mxu0 %v3570
        %5323 = vmatmul.mubr.bf16.gmra.mrb[0].mxu0 %v3569
        %v5324 = vpop.f32.mrb[0].mxu0
        %v5325 = vadd.f32 %v3858, %v5324
        %v5326 = vpop.f32.mrb[0].mxu0
        %v5327 = vadd.f32 %v3862, %v5326
        %v5328 = vpop.f32.mrb[0].mxu0
        %v5329 = vadd.f32 %v3858, %v5328
        %v5330 = vpop.f32.mrb[0].mxu0
        %v5331 = vadd.f32 %v3862, %v5330
        %5332 = vmatprep.mubr.bf16.mxu0 %v3574
        %5333 = vmatmul.mubr.bf16.gmra.mrb[0].mxu0 %v3573
        %v5334 = vpop.f32.mrb[0].mxu0
        %v5335 = vadd.f32 %v3858, %v5334
        %v5336 = vpop.f32.mrb[0].mxu0
        %v5337 = vadd.f32 %v3862, %v5336
        %v5338 = vpop.f32.mrb[0].mxu0
        %v5339 = vadd.f32 %v3858, %v5338
        %v5340 = vpop.f32.mrb[0].mxu0
        %v5341 = vadd.f32 %v3862, %v5340
        %5342 = vmatprep.mubr.bf16.mxu0 %v3578
        %5343 = vmatmul.mubr.bf16.gmra.mrb[0].mxu0 %v3577
        %v5344 = vpop.f32.mrb[0].mxu0
        %v5345 = vadd.f32 %v3858, %v5344
        %v5346 = vpop.f32.mrb[0].mxu0
        %v5347 = vadd.f32 %v3862, %v5346
        %v5348 = vpop.f32.mrb[0].mxu0
        %v5349 = vadd.f32 %v3858, %v5348
        %v5350 = vpop.f32.mrb[0].mxu0
        %v5351 = vadd.f32 %v3862, %v5350
        %5352 = vmatprep.mubr.bf16.mxu0 %v3582
        %5353 = vmatmul.mubr.bf16.gmra.mrb[0].mxu0 %v3581
        %v5354 = vpop.f32.mrb[0].mxu0
        %v5355 = vadd.f32 %v3858, %v5354
        %v5356 = vpop.f32.mrb[0].mxu0
        %v5357 = vadd.f32 %v3862, %v5356
        %v5358 = vpop.f32.mrb[0].mxu0
        %v5359 = vadd.f32 %v3858, %v5358
        %v5360 = vpop.f32.mrb[0].mxu0
        %v5361 = vadd.f32 %v3862, %v5360
        %5362 = vmatprep.mubr.bf16.mxu0 %v3586
        %5363 = vmatmul.mubr.bf16.gmra.mrb[0].mxu0 %v3585
        %v5364 = vpop.f32.mrb[0].mxu0
        %v5365 = vadd.f32 %v3858, %v5364
        %v5366 = vpop.f32.mrb[0].mxu0
        %v5367 = vadd.f32 %v3862, %v5366
        %v5368 = vpop.f32.mrb[0].mxu0
        %v5369 = vadd.f32 %v3858, %v5368
        %v5370 = vpop.f32.mrb[0].mxu0
        %v5371 = vadd.f32 %v3862, %v5370
        %5372 = vdwg.mxu0
        %5373 = vmatprep.subr.bf16.mxu0 %v4701
        %5374 = vmatpush1.bf16.msra.mxu0 %v4700
        %5375 = vmatprep.subr.bf16.mxu0 %v4708
        %5376 = vmatpush1.bf16.msra.mxu0 %v4707
        %5377 = vmatprep.subr.bf16.mxu0 %v4715
        %5378 = vmatpush1.bf16.msra.mxu0 %v4714
        %5379 = vmatprep.subr.bf16.mxu0 %v4722
        %5380 = vmatpush1.bf16.msra.mxu0 %v4721
        %5381 = vmatprep.subr.bf16.mxu0 %v4729
        %5382 = vmatpush1.bf16.msra.mxu0 %v4728
        %5383 = vmatprep.subr.bf16.mxu0 %v4736
        %5384 = vmatpush1.bf16.msra.mxu0 %v4735
        %5385 = vmatprep.subr.bf16.mxu0 %v4743
        %5386 = vmatpush1.bf16.msra.mxu0 %v4742
        %5387 = vmatprep.subr.bf16.mxu0 %v4750
        %5388 = vmatpush1.bf16.msra.mxu0 %v4749
        %5389 = vmatprep.subr.bf16.mxu0 %v4757
        %5390 = vmatpush1.bf16.msra.mxu0 %v4756
        %5391 = vmatprep.subr.bf16.mxu0 %v4764
        %5392 = vmatpush1.bf16.msra.mxu0 %v4763
        %5393 = vmatprep.subr.bf16.mxu0 %v4771
        %5394 = vmatpush1.bf16.msra.mxu0 %v4770
        %5395 = vmatprep.subr.bf16.mxu0 %v4778
        %5396 = vmatpush1.bf16.msra.mxu0 %v4777
        %5397 = vmatprep.subr.bf16.mxu0 %v4785
        %5398 = vmatpush1.bf16.msra.mxu0 %v4784
        %5399 = vmatprep.subr.bf16.mxu0 %v4792
        %5400 = vmatpush1.bf16.msra.mxu0 %v4791
        %5401 = vmatprep.subr.bf16.mxu0 %v4799
        %5402 = vmatpush1.bf16.msra.mxu0 %v4798
        %5403 = vmatprep.subr.bf16.mxu0 %v4806
        %5404 = vmatpush1.bf16.msra.mxu0 %v4805
        %5405 = vmatprep.mubr.bf16.mxu0 %v3560
        %5406 = vmatmul.mubr.bf16.gmra.mrb[0].mxu0 %v3559
        %v5407 = vpop.f32.mrb[0].mxu0
        %v5408 = vadd.f32 %v5295, %v5407
        %v5409 = vpop.f32.mrb[0].mxu0
        %v5410 = vadd.f32 %v5297, %v5409
        %v5411 = vpop.f32.mrb[0].mxu0
        %v5412 = vadd.f32 %v5299, %v5411
        %v5413 = vpop.f32.mrb[0].mxu0
        %v5414 = vadd.f32 %v5301, %v5413
        %5415 = vmatprep.mubr.bf16.mxu0 %v3564
        %5416 = vmatmul.mubr.bf16.gmra.mrb[0].mxu0 %v3563
        %v5417 = vpop.f32.mrb[0].mxu0
        %v5418 = vadd.f32 %v5305, %v5417
        %v5419 = vpop.f32.mrb[0].mxu0
        %v5420 = vadd.f32 %v5307, %v5419
        %v5421 = vpop.f32.mrb[0].mxu0
        %v5422 = vadd.f32 %v5309, %v5421
        %v5423 = vpop.f32.mrb[0].mxu0
        %v5424 = vadd.f32 %v5311, %v5423
        %5425 = vmatprep.mubr.bf16.mxu0 %v3568
        %5426 = vmatmul.mubr.bf16.gmra.mrb[0].mxu0 %v3567
        %v5427 = vpop.f32.mrb[0].mxu0
        %v5428 = vadd.f32 %v5315, %v5427
        %v5429 = vpop.f32.mrb[0].mxu0
        %v5430 = vadd.f32 %v5317, %v5429
        %v5431 = vpop.f32.mrb[0].mxu0
        %v5432 = vadd.f32 %v5319, %v5431
        %v5433 = vpop.f32.mrb[0].mxu0
        %v5434 = vadd.f32 %v5321, %v5433
        %5435 = vmatprep.mubr.bf16.mxu0 %v3572
        %5436 = vmatmul.mubr.bf16.gmra.mrb[0].mxu0 %v3571
        %v5437 = vpop.f32.mrb[0].mxu0
        %v5438 = vadd.f32 %v5325, %v5437
        %v5439 = vpop.f32.mrb[0].mxu0
        %v5440 = vadd.f32 %v5327, %v5439
        %v5441 = vpop.f32.mrb[0].mxu0
        %v5442 = vadd.f32 %v5329, %v5441
        %v5443 = vpop.f32.mrb[0].mxu0
        %v5444 = vadd.f32 %v5331, %v5443
        %5445 = vmatprep.mubr.bf16.mxu0 %v3576
        %5446 = vmatmul.mubr.bf16.gmra.mrb[0].mxu0 %v3575
        %v5447 = vpop.f32.mrb[0].mxu0
        %v5448 = vadd.f32 %v5335, %v5447
        %v5449 = vpop.f32.mrb[0].mxu0
        %v5450 = vadd.f32 %v5337, %v5449
        %v5451 = vpop.f32.mrb[0].mxu0
        %v5452 = vadd.f32 %v5339, %v5451
        %v5453 = vpop.f32.mrb[0].mxu0
        %v5454 = vadd.f32 %v5341, %v5453
        %5455 = vmatprep.mubr.bf16.mxu0 %v3580
        %5456 = vmatmul.mubr.bf16.gmra.mrb[0].mxu0 %v3579
        %v5457 = vpop.f32.mrb[0].mxu0
        %v5458 = vadd.f32 %v5345, %v5457
        %v5459 = vpop.f32.mrb[0].mxu0
        %v5460 = vadd.f32 %v5347, %v5459
        %v5461 = vpop.f32.mrb[0].mxu0
        %v5462 = vadd.f32 %v5349, %v5461
        %v5463 = vpop.f32.mrb[0].mxu0
        %v5464 = vadd.f32 %v5351, %v5463
        %5465 = vmatprep.mubr.bf16.mxu0 %v3584
        %5466 = vmatmul.mubr.bf16.gmra.mrb[0].mxu0 %v3583
        %v5467 = vpop.f32.mrb[0].mxu0
        %v5468 = vadd.f32 %v5355, %v5467
        %v5469 = vpop.f32.mrb[0].mxu0
        %v5470 = vadd.f32 %v5357, %v5469
        %v5471 = vpop.f32.mrb[0].mxu0
        %v5472 = vadd.f32 %v5359, %v5471
        %v5473 = vpop.f32.mrb[0].mxu0
        %v5474 = vadd.f32 %v5361, %v5473
        %5475 = vmatprep.mubr.bf16.mxu0 %v3588
        %5476 = vmatmul.mubr.bf16.gmra.mrb[0].mxu0 %v3587
        %v5477 = vpop.f32.mrb[0].mxu0
        %v5478 = vadd.f32 %v5365, %v5477
        %v5479 = vpop.f32.mrb[0].mxu0
        %v5480 = vadd.f32 %v5367, %v5479
        %v5481 = vpop.f32.mrb[0].mxu0
        %v5482 = vadd.f32 %v5369, %v5481
        %v5483 = vpop.f32.mrb[0].mxu0
        %v5484 = vadd.f32 %v5371, %v5483
        %5485 = vdwg.mxu0
        %5486 = vmatprep.subr.bf16.mxu0 %v4591
        %5487 = vmatpush1.bf16.msra.mxu0 %v4590
        %5488 = vmatprep.subr.bf16.mxu0 %v4598
        %5489 = vmatpush1.bf16.msra.mxu0 %v4597
        %5490 = vmatprep.subr.bf16.mxu0 %v4605
        %5491 = vmatpush1.bf16.msra.mxu0 %v4604
        %5492 = vmatprep.subr.bf16.mxu0 %v4612
        %5493 = vmatpush1.bf16.msra.mxu0 %v4611
        %5494 = vmatprep.subr.bf16.mxu0 %v4619
        %5495 = vmatpush1.bf16.msra.mxu0 %v4618
        %5496 = vmatprep.subr.bf16.mxu0 %v4626
        %5497 = vmatpush1.bf16.msra.mxu0 %v4625
        %5498 = vmatprep.subr.bf16.mxu0 %v4633
        %5499 = vmatpush1.bf16.msra.mxu0 %v4632
        %5500 = vmatprep.subr.bf16.mxu0 %v4640
        %5501 = vmatpush1.bf16.msra.mxu0 %v4639
        %5502 = vmatprep.subr.bf16.mxu0 %v4647
        %5503 = vmatpush1.bf16.msra.mxu0 %v4646
        %5504 = vmatprep.subr.bf16.mxu0 %v4654
        %5505 = vmatpush1.bf16.msra.mxu0 %v4653
        %5506 = vmatprep.subr.bf16.mxu0 %v4661
        %5507 = vmatpush1.bf16.msra.mxu0 %v4660
        %5508 = vmatprep.subr.bf16.mxu0 %v4668
        %5509 = vmatpush1.bf16.msra.mxu0 %v4667
        %5510 = vmatprep.subr.bf16.mxu0 %v4675
        %5511 = vmatpush1.bf16.msra.mxu0 %v4674
        %5512 = vmatprep.subr.bf16.mxu0 %v4682
        %5513 = vmatpush1.bf16.msra.mxu0 %v4681
        %5514 = vmatprep.subr.bf16.mxu0 %v4689
        %5515 = vmatpush1.bf16.msra.mxu0 %v4688
        %5516 = vmatprep.subr.bf16.mxu0 %v4696
        %5517 = vmatpush1.bf16.msra.mxu0 %v4695
        %5518 = vmatprep.mubr.bf16.mxu0 %v3558
        %5519 = vmatmul.mubr.bf16.gmra.mrb[0].mxu0 %v3557
        %v5520 = vpop.f32.mrb[0].mxu0
        %v5521 = vadd.f32 %v3866, %v5520
        %v5522 = vpop.f32.mrb[0].mxu0
        %v5523 = vadd.f32 %v3870, %v5522
        %v5524 = vpop.f32.mrb[0].mxu0
        %v5525 = vadd.f32 %v3866, %v5524
        %v5526 = vpop.f32.mrb[0].mxu0
        %v5527 = vadd.f32 %v3870, %v5526
        %5528 = vmatprep.mubr.bf16.mxu0 %v3562
        %5529 = vmatmul.mubr.bf16.gmra.mrb[0].mxu0 %v3561
        %v5530 = vpop.f32.mrb[0].mxu0
        %v5531 = vadd.f32 %v3866, %v5530
        %v5532 = vpop.f32.mrb[0].mxu0
        %v5533 = vadd.f32 %v3870, %v5532
        %v5534 = vpop.f32.mrb[0].mxu0
        %v5535 = vadd.f32 %v3866, %v5534
        %v5536 = vpop.f32.mrb[0].mxu0
        %v5537 = vadd.f32 %v3870, %v5536
        %5538 = vmatprep.mubr.bf16.mxu0 %v3566
        %5539 = vmatmul.mubr.bf16.gmra.mrb[0].mxu0 %v3565
        %v5540 = vpop.f32.mrb[0].mxu0
        %v5541 = vadd.f32 %v3866, %v5540
        %v5542 = vpop.f32.mrb[0].mxu0
        %v5543 = vadd.f32 %v3870, %v5542
        %v5544 = vpop.f32.mrb[0].mxu0
        %v5545 = vadd.f32 %v3866, %v5544
        %v5546 = vpop.f32.mrb[0].mxu0
        %v5547 = vadd.f32 %v3870, %v5546
        %5548 = vmatprep.mubr.bf16.mxu0 %v3570
        %5549 = vmatmul.mubr.bf16.gmra.mrb[0].mxu0 %v3569
        %v5550 = vpop.f32.mrb[0].mxu0
        %v5551 = vadd.f32 %v3866, %v5550
        %v5552 = vpop.f32.mrb[0].mxu0
        %v5553 = vadd.f32 %v3870, %v5552
        %v5554 = vpop.f32.mrb[0].mxu0
        %v5555 = vadd.f32 %v3866, %v5554
        %v5556 = vpop.f32.mrb[0].mxu0
        %v5557 = vadd.f32 %v3870, %v5556
        %5558 = vmatprep.mubr.bf16.mxu0 %v3574
        %5559 = vmatmul.mubr.bf16.gmra.mrb[0].mxu0 %v3573
        %v5560 = vpop.f32.mrb[0].mxu0
        %v5561 = vadd.f32 %v3866, %v5560
        %v5562 = vpop.f32.mrb[0].mxu0
        %v5563 = vadd.f32 %v3870, %v5562
        %v5564 = vpop.f32.mrb[0].mxu0
        %v5565 = vadd.f32 %v3866, %v5564
        %v5566 = vpop.f32.mrb[0].mxu0
        %v5567 = vadd.f32 %v3870, %v5566
        %5568 = vmatprep.mubr.bf16.mxu0 %v3578
        %5569 = vmatmul.mubr.bf16.gmra.mrb[0].mxu0 %v3577
        %v5570 = vpop.f32.mrb[0].mxu0
        %v5571 = vadd.f32 %v3866, %v5570
        %v5572 = vpop.f32.mrb[0].mxu0
        %v5573 = vadd.f32 %v3870, %v5572
        %v5574 = vpop.f32.mrb[0].mxu0
        %v5575 = vadd.f32 %v3866, %v5574
        %v5576 = vpop.f32.mrb[0].mxu0
        %v5577 = vadd.f32 %v3870, %v5576
        %5578 = vmatprep.mubr.bf16.mxu0 %v3582
        %5579 = vmatmul.mubr.bf16.gmra.mrb[0].mxu0 %v3581
        %v5580 = vpop.f32.mrb[0].mxu0
        %v5581 = vadd.f32 %v3866, %v5580
        %v5582 = vpop.f32.mrb[0].mxu0
        %v5583 = vadd.f32 %v3870, %v5582
        %v5584 = vpop.f32.mrb[0].mxu0
        %v5585 = vadd.f32 %v3866, %v5584
        %v5586 = vpop.f32.mrb[0].mxu0
        %v5587 = vadd.f32 %v3870, %v5586
        %5588 = vmatprep.mubr.bf16.mxu0 %v3586
        %5589 = vmatmul.mubr.bf16.gmra.mrb[0].mxu0 %v3585
        %v5590 = vpop.f32.mrb[0].mxu0
        %v5591 = vadd.f32 %v3866, %v5590
        %v5592 = vpop.f32.mrb[0].mxu0
        %v5593 = vadd.f32 %v3870, %v5592
        %v5594 = vpop.f32.mrb[0].mxu0
        %v5595 = vadd.f32 %v3866, %v5594
        %v5596 = vpop.f32.mrb[0].mxu0
        %v5597 = vadd.f32 %v3870, %v5596
        %5598 = vdwg.mxu0
        %5599 = vmatprep.subr.bf16.mxu0 %v4703
        %5600 = vmatpush1.bf16.msra.mxu0 %v4702
        %5601 = vmatprep.subr.bf16.mxu0 %v4710
        %5602 = vmatpush1.bf16.msra.mxu0 %v4709
        %5603 = vmatprep.subr.bf16.mxu0 %v4717
        %5604 = vmatpush1.bf16.msra.mxu0 %v4716
        %5605 = vmatprep.subr.bf16.mxu0 %v4724
        %5606 = vmatpush1.bf16.msra.mxu0 %v4723
        %5607 = vmatprep.subr.bf16.mxu0 %v4731
        %5608 = vmatpush1.bf16.msra.mxu0 %v4730
        %5609 = vmatprep.subr.bf16.mxu0 %v4738
        %5610 = vmatpush1.bf16.msra.mxu0 %v4737
        %5611 = vmatprep.subr.bf16.mxu0 %v4745
        %5612 = vmatpush1.bf16.msra.mxu0 %v4744
        %5613 = vmatprep.subr.bf16.mxu0 %v4752
        %5614 = vmatpush1.bf16.msra.mxu0 %v4751
        %5615 = vmatprep.subr.bf16.mxu0 %v4759
        %5616 = vmatpush1.bf16.msra.mxu0 %v4758
        %5617 = vmatprep.subr.bf16.mxu0 %v4766
        %5618 = vmatpush1.bf16.msra.mxu0 %v4765
        %5619 = vmatprep.subr.bf16.mxu0 %v4773
        %5620 = vmatpush1.bf16.msra.mxu0 %v4772
        %5621 = vmatprep.subr.bf16.mxu0 %v4780
        %5622 = vmatpush1.bf16.msra.mxu0 %v4779
        %5623 = vmatprep.subr.bf16.mxu0 %v4787
        %5624 = vmatpush1.bf16.msra.mxu0 %v4786
        %5625 = vmatprep.subr.bf16.mxu0 %v4794
        %5626 = vmatpush1.bf16.msra.mxu0 %v4793
        %5627 = vmatprep.subr.bf16.mxu0 %v4801
        %5628 = vmatpush1.bf16.msra.mxu0 %v4800
        %5629 = vmatprep.subr.bf16.mxu0 %v4808
        %5630 = vmatpush1.bf16.msra.mxu0 %v4807
        %5631 = vmatprep.mubr.bf16.mxu0 %v3560
        %5632 = vmatmul.mubr.bf16.gmra.mrb[0].mxu0 %v3559
        %v5633 = vpop.f32.mrb[0].mxu0
        %v5634 = vadd.f32 %v5521, %v5633
        %v5635 = vpop.f32.mrb[0].mxu0
        %v5636 = vadd.f32 %v5523, %v5635
        %v5637 = vpop.f32.mrb[0].mxu0
        %v5638 = vadd.f32 %v5525, %v5637
        %v5639 = vpop.f32.mrb[0].mxu0
        %v5640 = vadd.f32 %v5527, %v5639
        %5641 = vmatprep.mubr.bf16.mxu0 %v3564
        %5642 = vmatmul.mubr.bf16.gmra.mrb[0].mxu0 %v3563
        %v5643 = vpop.f32.mrb[0].mxu0
        %v5644 = vadd.f32 %v5531, %v5643
        %v5645 = vpop.f32.mrb[0].mxu0
        %v5646 = vadd.f32 %v5533, %v5645
        %v5647 = vpop.f32.mrb[0].mxu0
        %v5648 = vadd.f32 %v5535, %v5647
        %v5649 = vpop.f32.mrb[0].mxu0
        %v5650 = vadd.f32 %v5537, %v5649
        %5651 = vmatprep.mubr.bf16.mxu0 %v3568
        %5652 = vmatmul.mubr.bf16.gmra.mrb[0].mxu0 %v3567
        %v5653 = vpop.f32.mrb[0].mxu0
        %v5654 = vadd.f32 %v5541, %v5653
        %v5655 = vpop.f32.mrb[0].mxu0
        %v5656 = vadd.f32 %v5543, %v5655
        %v5657 = vpop.f32.mrb[0].mxu0
        %v5658 = vadd.f32 %v5545, %v5657
        %v5659 = vpop.f32.mrb[0].mxu0
        %v5660 = vadd.f32 %v5547, %v5659
        %5661 = vmatprep.mubr.bf16.mxu0 %v3572
        %5662 = vmatmul.mubr.bf16.gmra.mrb[0].mxu0 %v3571
        %v5663 = vpop.f32.mrb[0].mxu0
        %v5664 = vadd.f32 %v5551, %v5663
        %v5665 = vpop.f32.mrb[0].mxu0
        %v5666 = vadd.f32 %v5553, %v5665
        %v5667 = vpop.f32.mrb[0].mxu0
        %v5668 = vadd.f32 %v5555, %v5667
        %v5669 = vpop.f32.mrb[0].mxu0
        %v5670 = vadd.f32 %v5557, %v5669
        %5671 = vmatprep.mubr.bf16.mxu0 %v3576
        %5672 = vmatmul.mubr.bf16.gmra.mrb[0].mxu0 %v3575
        %v5673 = vpop.f32.mrb[0].mxu0
        %v5674 = vadd.f32 %v5561, %v5673
        %v5675 = vpop.f32.mrb[0].mxu0
        %v5676 = vadd.f32 %v5563, %v5675
        %v5677 = vpop.f32.mrb[0].mxu0
        %v5678 = vadd.f32 %v5565, %v5677
        %v5679 = vpop.f32.mrb[0].mxu0
        %v5680 = vadd.f32 %v5567, %v5679
        %5681 = vmatprep.mubr.bf16.mxu0 %v3580
        %5682 = vmatmul.mubr.bf16.gmra.mrb[0].mxu0 %v3579
        %v5683 = vpop.f32.mrb[0].mxu0
        %v5684 = vadd.f32 %v5571, %v5683
        %v5685 = vpop.f32.mrb[0].mxu0
        %v5686 = vadd.f32 %v5573, %v5685
        %v5687 = vpop.f32.mrb[0].mxu0
        %v5688 = vadd.f32 %v5575, %v5687
        %v5689 = vpop.f32.mrb[0].mxu0
        %v5690 = vadd.f32 %v5577, %v5689
        %5691 = vmatprep.mubr.bf16.mxu0 %v3584
        %5692 = vmatmul.mubr.bf16.gmra.mrb[0].mxu0 %v3583
        %v5693 = vpop.f32.mrb[0].mxu0
        %v5694 = vadd.f32 %v5581, %v5693
        %v5695 = vpop.f32.mrb[0].mxu0
        %v5696 = vadd.f32 %v5583, %v5695
        %v5697 = vpop.f32.mrb[0].mxu0
        %v5698 = vadd.f32 %v5585, %v5697
        %v5699 = vpop.f32.mrb[0].mxu0
        %v5700 = vadd.f32 %v5587, %v5699
        %5701 = vmatprep.mubr.bf16.mxu0 %v3588
        %5702 = vmatmul.mubr.bf16.gmra.mrb[0].mxu0 %v3587
        %v5703 = vpop.f32.mrb[0].mxu0
        %v5704 = vadd.f32 %v5591, %v5703
        %v5705 = vpop.f32.mrb[0].mxu0
        %v5706 = vadd.f32 %v5593, %v5705
        %v5707 = vpop.f32.mrb[0].mxu0
        %v5708 = vadd.f32 %v5595, %v5707
        %v5709 = vpop.f32.mrb[0].mxu0
        %v5710 = vadd.f32 %v5597, %v5709
        %5711 = vdwg.mxu0
        %5712 = vmatprep.subr.bf16.mxu0 0
        %5713 = vmatpush1.bf16.msra.mxu0 %v4592
        %5714 = vmatprep.subr.bf16.mxu0 0
        %5715 = vmatpush1.bf16.msra.mxu0 %v4599
        %5716 = vmatprep.subr.bf16.mxu0 0
        %5717 = vmatpush1.bf16.msra.mxu0 %v4606
        %5718 = vmatprep.subr.bf16.mxu0 0
        %5719 = vmatpush1.bf16.msra.mxu0 %v4613
        %5720 = vmatprep.subr.bf16.mxu0 0
        %5721 = vmatpush1.bf16.msra.mxu0 %v4620
        %5722 = vmatprep.subr.bf16.mxu0 0
        %5723 = vmatpush1.bf16.msra.mxu0 %v4627
        %5724 = vmatprep.subr.bf16.mxu0 0
        %5725 = vmatpush1.bf16.msra.mxu0 %v4634
        %5726 = vmatprep.subr.bf16.mxu0 0
        %5727 = vmatpush1.bf16.msra.mxu0 %v4641
        %5728 = vmatprep.subr.bf16.mxu0 0
        %5729 = vmatpush1.bf16.msra.mxu0 %v4648
        %5730 = vmatprep.subr.bf16.mxu0 0
        %5731 = vmatpush1.bf16.msra.mxu0 %v4655
        %5732 = vmatprep.subr.bf16.mxu0 0
        %5733 = vmatpush1.bf16.msra.mxu0 %v4662
        %5734 = vmatprep.subr.bf16.mxu0 0
        %5735 = vmatpush1.bf16.msra.mxu0 %v4669
        %5736 = vmatprep.subr.bf16.mxu0 0
        %5737 = vmatpush1.bf16.msra.mxu0 %v4676
        %5738 = vmatprep.subr.bf16.mxu0 0
        %5739 = vmatpush1.bf16.msra.mxu0 %v4683
        %5740 = vmatprep.subr.bf16.mxu0 0
        %5741 = vmatpush1.bf16.msra.mxu0 %v4690
        %5742 = vmatprep.subr.bf16.mxu0 0
        %5743 = vmatpush1.bf16.msra.mxu0 %v4697
        %5744 = vmatprep.mubr.bf16.mxu0 %v3558
        %5745 = vmatmul.mubr.bf16.gmra.mrb[0].mxu0 %v3557
        %v5746 = vpop.f32.mrb[0].mxu0
        %v5747 = vadd.f32 %v3874, %v5746
        %v5748 = vpop.f32.mrb[0].mxu0
        %v5749 = vpop.f32.mrb[0].mxu0
        %v5750 = vadd.f32 %v3874, %v5749
        %v5751 = vpop.f32.mrb[0].mxu0
        %5752 = vmatprep.mubr.bf16.mxu0 %v3562
        %5753 = vmatmul.mubr.bf16.gmra.mrb[0].mxu0 %v3561
        %v5754 = vpop.f32.mrb[0].mxu0
        %v5755 = vadd.f32 %v3874, %v5754
        %v5756 = vpop.f32.mrb[0].mxu0
        %v5757 = vpop.f32.mrb[0].mxu0
        %v5758 = vadd.f32 %v3874, %v5757
        %v5759 = vpop.f32.mrb[0].mxu0
        %5760 = vmatprep.mubr.bf16.mxu0 %v3566
        %5761 = vmatmul.mubr.bf16.gmra.mrb[0].mxu0 %v3565
        %v5762 = vpop.f32.mrb[0].mxu0
        %v5763 = vadd.f32 %v3874, %v5762
        %v5764 = vpop.f32.mrb[0].mxu0
        %v5765 = vpop.f32.mrb[0].mxu0
        %v5766 = vadd.f32 %v3874, %v5765
        %v5767 = vpop.f32.mrb[0].mxu0
        %5768 = vmatprep.mubr.bf16.mxu0 %v3570
        %5769 = vmatmul.mubr.bf16.gmra.mrb[0].mxu0 %v3569
        %v5770 = vpop.f32.mrb[0].mxu0
        %v5771 = vadd.f32 %v3874, %v5770
        %v5772 = vpop.f32.mrb[0].mxu0
        %v5773 = vpop.f32.mrb[0].mxu0
        %v5774 = vadd.f32 %v3874, %v5773
        %v5775 = vpop.f32.mrb[0].mxu0
        %5776 = vmatprep.mubr.bf16.mxu0 %v3574
        %5777 = vmatmul.mubr.bf16.gmra.mrb[0].mxu0 %v3573
        %v5778 = vpop.f32.mrb[0].mxu0
        %v5779 = vadd.f32 %v3874, %v5778
        %v5780 = vpop.f32.mrb[0].mxu0
        %v5781 = vpop.f32.mrb[0].mxu0
        %v5782 = vadd.f32 %v3874, %v5781
        %v5783 = vpop.f32.mrb[0].mxu0
        %5784 = vmatprep.mubr.bf16.mxu0 %v3578
        %5785 = vmatmul.mubr.bf16.gmra.mrb[0].mxu0 %v3577
        %v5786 = vpop.f32.mrb[0].mxu0
        %v5787 = vadd.f32 %v3874, %v5786
        %v5788 = vpop.f32.mrb[0].mxu0
        %v5789 = vpop.f32.mrb[0].mxu0
        %v5790 = vadd.f32 %v3874, %v5789
        %v5791 = vpop.f32.mrb[0].mxu0
        %5792 = vmatprep.mubr.bf16.mxu0 %v3582
        %5793 = vmatmul.mubr.bf16.gmra.mrb[0].mxu0 %v3581
        %v5794 = vpop.f32.mrb[0].mxu0
        %v5795 = vadd.f32 %v3874, %v5794
        %v5796 = vpop.f32.mrb[0].mxu0
        %v5797 = vpop.f32.mrb[0].mxu0
        %v5798 = vadd.f32 %v3874, %v5797
        %v5799 = vpop.f32.mrb[0].mxu0
        %5800 = vmatprep.mubr.bf16.mxu0 %v3586
        %5801 = vmatmul.mubr.bf16.gmra.mrb[0].mxu0 %v3585
        %v5802 = vpop.f32.mrb[0].mxu0
        %v5803 = vadd.f32 %v3874, %v5802
        %v5804 = vpop.f32.mrb[0].mxu0
        %v5805 = vpop.f32.mrb[0].mxu0
        %v5806 = vadd.f32 %v3874, %v5805
        %v5807 = vpop.f32.mrb[0].mxu0
        %5808 = vdwg.mxu0
        %5809 = vmatprep.subr.bf16.mxu0 0
        %5810 = vmatpush1.bf16.msra.mxu0 %v4704
        %5811 = vmatprep.subr.bf16.mxu0 0
        %5812 = vmatpush1.bf16.msra.mxu0 %v4711
        %5813 = vmatprep.subr.bf16.mxu0 0
        %5814 = vmatpush1.bf16.msra.mxu0 %v4718
        %5815 = vmatprep.subr.bf16.mxu0 0
        %5816 = vmatpush1.bf16.msra.mxu0 %v4725
        %5817 = vmatprep.subr.bf16.mxu0 0
        %5818 = vmatpush1.bf16.msra.mxu0 %v4732
        %5819 = vmatprep.subr.bf16.mxu0 0
        %5820 = vmatpush1.bf16.msra.mxu0 %v4739
        %5821 = vmatprep.subr.bf16.mxu0 0
        %5822 = vmatpush1.bf16.msra.mxu0 %v4746
        %5823 = vmatprep.subr.bf16.mxu0 0
        %5824 = vmatpush1.bf16.msra.mxu0 %v4753
        %5825 = vmatprep.subr.bf16.mxu0 0
        %5826 = vmatpush1.bf16.msra.mxu0 %v4760
        %5827 = vmatprep.subr.bf16.mxu0 0
        %5828 = vmatpush1.bf16.msra.mxu0 %v4767
        %5829 = vmatprep.subr.bf16.mxu0 0
        %5830 = vmatpush1.bf16.msra.mxu0 %v4774
        %5831 = vmatprep.subr.bf16.mxu0 0
        %5832 = vmatpush1.bf16.msra.mxu0 %v4781
        %5833 = vmatprep.subr.bf16.mxu0 0
        %5834 = vmatpush1.bf16.msra.mxu0 %v4788
        %5835 = vmatprep.subr.bf16.mxu0 0
        %5836 = vmatpush1.bf16.msra.mxu0 %v4795
        %5837 = vmatprep.subr.bf16.mxu0 0
        %5838 = vmatpush1.bf16.msra.mxu0 %v4802
        %5839 = vmatprep.subr.bf16.mxu0 0
        %5840 = vmatpush1.bf16.msra.mxu0 %v4809
        %5841 = vmatprep.mubr.bf16.mxu0 %v3560
        %5842 = vmatmul.mubr.bf16.gmra.mrb[0].mxu0 %v3559
        %v5843 = vpop.f32.mrb[0].mxu0
        %v5844 = vadd.f32 %v5747, %v5843
        %v5845 = vpop.f32.mrb[0].mxu0
        %v5846 = vpop.f32.mrb[0].mxu0
        %v5847 = vadd.f32 %v5750, %v5846
        %v5848 = vpop.f32.mrb[0].mxu0
        %5849 = vmatprep.mubr.bf16.mxu0 %v3564
        %5850 = vmatmul.mubr.bf16.gmra.mrb[0].mxu0 %v3563
        %v5851 = vpop.f32.mrb[0].mxu0
        %v5852 = vadd.f32 %v5755, %v5851
        %v5853 = vpop.f32.mrb[0].mxu0
        %v5854 = vpop.f32.mrb[0].mxu0
        %v5855 = vadd.f32 %v5758, %v5854
        %v5856 = vpop.f32.mrb[0].mxu0
        %5857 = vmatprep.mubr.bf16.mxu0 %v3568
        %5858 = vmatmul.mubr.bf16.gmra.mrb[0].mxu0 %v3567
        %v5859 = vpop.f32.mrb[0].mxu0
        %v5860 = vadd.f32 %v5763, %v5859
        %v5861 = vpop.f32.mrb[0].mxu0
        %v5862 = vpop.f32.mrb[0].mxu0
        %v5863 = vadd.f32 %v5766, %v5862
        %v5864 = vpop.f32.mrb[0].mxu0
        %5865 = vmatprep.mubr.bf16.mxu0 %v3572
        %5866 = vmatmul.mubr.bf16.gmra.mrb[0].mxu0 %v3571
        %v5867 = vpop.f32.mrb[0].mxu0
        %v5868 = vadd.f32 %v5771, %v5867
        %v5869 = vpop.f32.mrb[0].mxu0
        %v5870 = vpop.f32.mrb[0].mxu0
        %v5871 = vadd.f32 %v5774, %v5870
        %v5872 = vpop.f32.mrb[0].mxu0
        %5873 = vmatprep.mubr.bf16.mxu0 %v3576
        %5874 = vmatmul.mubr.bf16.gmra.mrb[0].mxu0 %v3575
        %v5875 = vpop.f32.mrb[0].mxu0
        %v5876 = vadd.f32 %v5779, %v5875
        %v5877 = vpop.f32.mrb[0].mxu0
        %v5878 = vpop.f32.mrb[0].mxu0
        %v5879 = vadd.f32 %v5782, %v5878
        %v5880 = vpop.f32.mrb[0].mxu0
        %5881 = vmatprep.mubr.bf16.mxu0 %v3580
        %5882 = vmatmul.mubr.bf16.gmra.mrb[0].mxu0 %v3579
        %v5883 = vpop.f32.mrb[0].mxu0
        %v5884 = vadd.f32 %v5787, %v5883
        %v5885 = vpop.f32.mrb[0].mxu0
        %v5886 = vpop.f32.mrb[0].mxu0
        %v5887 = vadd.f32 %v5790, %v5886
        %v5888 = vpop.f32.mrb[0].mxu0
        %5889 = vmatprep.mubr.bf16.mxu0 %v3584
        %5890 = vmatmul.mubr.bf16.gmra.mrb[0].mxu0 %v3583
        %v5891 = vpop.f32.mrb[0].mxu0
        %v5892 = vadd.f32 %v5795, %v5891
        %v5893 = vpop.f32.mrb[0].mxu0
        %v5894 = vpop.f32.mrb[0].mxu0
        %v5895 = vadd.f32 %v5798, %v5894
        %v5896 = vpop.f32.mrb[0].mxu0
        %5897 = vmatprep.mubr.bf16.mxu0 %v3588
        %5898 = vmatmul.mubr.bf16.gmra.mrb[0].mxu0 %v3587
        %v5899 = vpop.f32.mrb[0].mxu0
        %v5900 = vadd.f32 %v5803, %v5899
        %v5901 = vpop.f32.mrb[0].mxu0
        %v5902 = vpop.f32.mrb[0].mxu0
        %v5903 = vadd.f32 %v5806, %v5902
        %v5904 = vpop.f32.mrb[0].mxu0
        %5905 = vdwg.mxu0
        %v5906 = vsub.f32 0.0, %v5182
        %v5907 = vsub.f32 0.0, %v5184
        %v5908 = vsub.f32 0.0, %v5408
        %v5909 = vsub.f32 0.0, %v5410
        %v5910 = vsub.f32 0.0, %v5634
        %v5911 = vsub.f32 0.0, %v5636
        %v5912 = vsub.f32 0.0, %v5844
        %v5913 = vsub.f32 0.0, %v5186
        %v5914 = vsub.f32 0.0, %v5188
        %v5915 = vsub.f32 0.0, %v5412
        %v5916 = vsub.f32 0.0, %v5414
        %v5917 = vsub.f32 0.0, %v5638
        %v5918 = vsub.f32 0.0, %v5640
        %v5919 = vsub.f32 0.0, %v5847
        %v5920 = vsub.f32 0.0, %v5192
        %v5921 = vsub.f32 0.0, %v5194
        %v5922 = vsub.f32 0.0, %v5418
        %v5923 = vsub.f32 0.0, %v5420
        %v5924 = vsub.f32 0.0, %v5644
        %v5925 = vsub.f32 0.0, %v5646
        %v5926 = vsub.f32 0.0, %v5852
        %v5927 = vsub.f32 0.0, %v5196
        %v5928 = vsub.f32 0.0, %v5198
        %v5929 = vsub.f32 0.0, %v5422
        %v5930 = vsub.f32 0.0, %v5424
        %v5931 = vsub.f32 0.0, %v5648
        %v5932 = vsub.f32 0.0, %v5650
        %v5933 = vsub.f32 0.0, %v5855
        %v5934 = vsub.f32 0.0, %v5202
        %v5935 = vsub.f32 0.0, %v5204
        %v5936 = vsub.f32 0.0, %v5428
        %v5937 = vsub.f32 0.0, %v5430
        %v5938 = vsub.f32 0.0, %v5654
        %v5939 = vsub.f32 0.0, %v5656
        %v5940 = vsub.f32 0.0, %v5860
        %v5941 = vsub.f32 0.0, %v5206
        %v5942 = vsub.f32 0.0, %v5208
        %v5943 = vsub.f32 0.0, %v5432
        %v5944 = vsub.f32 0.0, %v5434
        %v5945 = vsub.f32 0.0, %v5658
        %v5946 = vsub.f32 0.0, %v5660
        %v5947 = vsub.f32 0.0, %v5863
        %v5948 = vsub.f32 0.0, %v5212
        %v5949 = vsub.f32 0.0, %v5214
        %v5950 = vsub.f32 0.0, %v5438
        %v5951 = vsub.f32 0.0, %v5440
        %v5952 = vsub.f32 0.0, %v5664
        %v5953 = vsub.f32 0.0, %v5666
        %v5954 = vsub.f32 0.0, %v5868
        %v5955 = vsub.f32 0.0, %v5216
        %v5956 = vsub.f32 0.0, %v5218
        %v5957 = vsub.f32 0.0, %v5442
        %v5958 = vsub.f32 0.0, %v5444
        %v5959 = vsub.f32 0.0, %v5668
        %v5960 = vsub.f32 0.0, %v5670
        %v5961 = vsub.f32 0.0, %v5871
        %v5962 = vsub.f32 0.0, %v5222
        %v5963 = vsub.f32 0.0, %v5224
        %v5964 = vsub.f32 0.0, %v5448
        %v5965 = vsub.f32 0.0, %v5450
        %v5966 = vsub.f32 0.0, %v5674
        %v5967 = vsub.f32 0.0, %v5676
        %v5968 = vsub.f32 0.0, %v5876
        %v5969 = vsub.f32 0.0, %v5226
        %v5970 = vsub.f32 0.0, %v5228
        %v5971 = vsub.f32 0.0, %v5452
        %v5972 = vsub.f32 0.0, %v5454
        %v5973 = vsub.f32 0.0, %v5678
        %v5974 = vsub.f32 0.0, %v5680
        %v5975 = vsub.f32 0.0, %v5879
        %v5976 = vsub.f32 0.0, %v5232
        %v5977 = vsub.f32 0.0, %v5234
        %v5978 = vsub.f32 0.0, %v5458
        %v5979 = vsub.f32 0.0, %v5460
        %v5980 = vsub.f32 0.0, %v5684
        %v5981 = vsub.f32 0.0, %v5686
        %v5982 = vsub.f32 0.0, %v5884
        %v5983 = vsub.f32 0.0, %v5236
        %v5984 = vsub.f32 0.0, %v5238
        %v5985 = vsub.f32 0.0, %v5462
        %v5986 = vsub.f32 0.0, %v5464
        %v5987 = vsub.f32 0.0, %v5688
        %v5988 = vsub.f32 0.0, %v5690
        %v5989 = vsub.f32 0.0, %v5887
        %v5990 = vsub.f32 0.0, %v5242
        %v5991 = vsub.f32 0.0, %v5244
        %v5992 = vsub.f32 0.0, %v5468
        %v5993 = vsub.f32 0.0, %v5470
        %v5994 = vsub.f32 0.0, %v5694
        %v5995 = vsub.f32 0.0, %v5696
        %v5996 = vsub.f32 0.0, %v5892
        %v5997 = vsub.f32 0.0, %v5246
        %v5998 = vsub.f32 0.0, %v5248
        %v5999 = vsub.f32 0.0, %v5472
        %v6000 = vsub.f32 0.0, %v5474
        %v6001 = vsub.f32 0.0, %v5698
        %v6002 = vsub.f32 0.0, %v5700
        %v6003 = vsub.f32 0.0, %v5895
        %v6004 = vsub.f32 0.0, %v5252
        %v6005 = vsub.f32 0.0, %v5254
        %v6006 = vsub.f32 0.0, %v5478
        %v6007 = vsub.f32 0.0, %v5480
        %v6008 = vsub.f32 0.0, %v5704
        %v6009 = vsub.f32 0.0, %v5706
        %v6010 = vsub.f32 0.0, %v5900
        %v6011 = vsub.f32 0.0, %v5256
        %v6012 = vsub.f32 0.0, %v5258
        %v6013 = vsub.f32 0.0, %v5482
        %v6014 = vsub.f32 0.0, %v5484
        %v6015 = vsub.f32 0.0, %v5708
        %v6016 = vsub.f32 0.0, %v5710
        %v6017 = vsub.f32 0.0, %v5903
        %v6018 = vmul.f32 %v5906, 1.442695
        %v6019 = vpow.pop %v6018
        %v6020 = vmul.f32 %v5907, 1.442695
        %v6021 = vpow.pop %v6020
        %v6022 = vmul.f32 %v5908, 1.442695
        %v6023 = vpow.pop %v6022
        %v6024 = vmul.f32 %v5909, 1.442695
        %v6025 = vpow.pop %v6024
        %v6026 = vmul.f32 %v5910, 1.442695
        %v6027 = vpow.pop %v6026
        %v6028 = vmul.f32 %v5911, 1.442695
        %v6029 = vpow.pop %v6028
        %v6030 = vmul.f32 %v5912, 1.442695
        %v6031 = vpow.pop %v6030
        %v6032 = vmul.f32 %v5913, 1.442695
        %v6033 = vpow.pop %v6032
        %v6034 = vmul.f32 %v5914, 1.442695
        %v6035 = vpow.pop %v6034
        %v6036 = vmul.f32 %v5915, 1.442695
        %v6037 = vpow.pop %v6036
        %v6038 = vmul.f32 %v5916, 1.442695
        %v6039 = vpow.pop %v6038
        %v6040 = vmul.f32 %v5917, 1.442695
        %v6041 = vpow.pop %v6040
        %v6042 = vmul.f32 %v5918, 1.442695
        %v6043 = vpow.pop %v6042
        %v6044 = vmul.f32 %v5919, 1.442695
        %v6045 = vpow.pop %v6044
        %v6046 = vmul.f32 %v5920, 1.442695
        %v6047 = vpow.pop %v6046
        %v6048 = vmul.f32 %v5921, 1.442695
        %v6049 = vpow.pop %v6048
        %v6050 = vmul.f32 %v5922, 1.442695
        %v6051 = vpow.pop %v6050
        %v6052 = vmul.f32 %v5923, 1.442695
        %v6053 = vpow.pop %v6052
        %v6054 = vmul.f32 %v5924, 1.442695
        %v6055 = vpow.pop %v6054
        %v6056 = vmul.f32 %v5925, 1.442695
        %v6057 = vpow.pop %v6056
        %v6058 = vmul.f32 %v5926, 1.442695
        %v6059 = vpow.pop %v6058
        %v6060 = vmul.f32 %v5927, 1.442695
        %v6061 = vpow.pop %v6060
        %v6062 = vmul.f32 %v5928, 1.442695
        %v6063 = vpow.pop %v6062
        %v6064 = vmul.f32 %v5929, 1.442695
        %v6065 = vpow.pop %v6064
        %v6066 = vmul.f32 %v5930, 1.442695
        %v6067 = vpow.pop %v6066
        %v6068 = vmul.f32 %v5931, 1.442695
        %v6069 = vpow.pop %v6068
        %v6070 = vmul.f32 %v5932, 1.442695
        %v6071 = vpow.pop %v6070
        %v6072 = vmul.f32 %v5933, 1.442695
        %v6073 = vpow.pop %v6072
        %v6074 = vmul.f32 %v5934, 1.442695
        %v6075 = vpow.pop %v6074
        %v6076 = vmul.f32 %v5935, 1.442695
        %v6077 = vpow.pop %v6076
        %v6078 = vmul.f32 %v5936, 1.442695
        %v6079 = vpow.pop %v6078
        %v6080 = vmul.f32 %v5937, 1.442695
        %v6081 = vpow.pop %v6080
        %v6082 = vmul.f32 %v5938, 1.442695
        %v6083 = vpow.pop %v6082
        %v6084 = vmul.f32 %v5939, 1.442695
        %v6085 = vpow.pop %v6084
        %v6086 = vmul.f32 %v5940, 1.442695
        %v6087 = vpow.pop %v6086
        %v6088 = vmul.f32 %v5941, 1.442695
        %v6089 = vpow.pop %v6088
        %v6090 = vmul.f32 %v5942, 1.442695
        %v6091 = vpow.pop %v6090
        %v6092 = vmul.f32 %v5943, 1.442695
        %v6093 = vpow.pop %v6092
        %v6094 = vmul.f32 %v5944, 1.442695
        %v6095 = vpow.pop %v6094
        %v6096 = vmul.f32 %v5945, 1.442695
        %v6097 = vpow.pop %v6096
        %v6098 = vmul.f32 %v5946, 1.442695
        %v6099 = vpow.pop %v6098
        %v6100 = vmul.f32 %v5947, 1.442695
        %v6101 = vpow.pop %v6100
        %v6102 = vmul.f32 %v5948, 1.442695
        %v6103 = vpow.pop %v6102
        %v6104 = vmul.f32 %v5949, 1.442695
        %v6105 = vpow.pop %v6104
        %v6106 = vmul.f32 %v5950, 1.442695
        %v6107 = vpow.pop %v6106
        %v6108 = vmul.f32 %v5951, 1.442695
        %v6109 = vpow.pop %v6108
        %v6110 = vmul.f32 %v5952, 1.442695
        %v6111 = vpow.pop %v6110
        %v6112 = vmul.f32 %v5953, 1.442695
        %v6113 = vpow.pop %v6112
        %v6114 = vmul.f32 %v5954, 1.442695
        %v6115 = vpow.pop %v6114
        %v6116 = vmul.f32 %v5955, 1.442695
        %v6117 = vpow.pop %v6116
        %v6118 = vmul.f32 %v5956, 1.442695
        %v6119 = vpow.pop %v6118
        %v6120 = vmul.f32 %v5957, 1.442695
        %v6121 = vpow.pop %v6120
        %v6122 = vmul.f32 %v5958, 1.442695
        %v6123 = vpow.pop %v6122
        %v6124 = vmul.f32 %v5959, 1.442695
        %v6125 = vpow.pop %v6124
        %v6126 = vmul.f32 %v5960, 1.442695
        %v6127 = vpow.pop %v6126
        %v6128 = vmul.f32 %v5961, 1.442695
        %v6129 = vpow.pop %v6128
        %v6130 = vmul.f32 %v5962, 1.442695
        %v6131 = vpow.pop %v6130
        %v6132 = vmul.f32 %v5963, 1.442695
        %v6133 = vpow.pop %v6132
        %v6134 = vmul.f32 %v5964, 1.442695
        %v6135 = vpow.pop %v6134
        %v6136 = vmul.f32 %v5965, 1.442695
        %v6137 = vpow.pop %v6136
        %v6138 = vmul.f32 %v5966, 1.442695
        %v6139 = vpow.pop %v6138
        %v6140 = vmul.f32 %v5967, 1.442695
        %v6141 = vpow.pop %v6140
        %v6142 = vmul.f32 %v5968, 1.442695
        %v6143 = vpow.pop %v6142
        %v6144 = vmul.f32 %v5969, 1.442695
        %v6145 = vpow.pop %v6144
        %v6146 = vmul.f32 %v5970, 1.442695
        %v6147 = vpow.pop %v6146
        %v6148 = vmul.f32 %v5971, 1.442695
        %v6149 = vpow.pop %v6148
        %v6150 = vmul.f32 %v5972, 1.442695
        %v6151 = vpow.pop %v6150
        %v6152 = vmul.f32 %v5973, 1.442695
        %v6153 = vpow.pop %v6152
        %v6154 = vmul.f32 %v5974, 1.442695
        %v6155 = vpow.pop %v6154
        %v6156 = vmul.f32 %v5975, 1.442695
        %v6157 = vpow.pop %v6156
        %v6158 = vmul.f32 %v5976, 1.442695
        %v6159 = vpow.pop %v6158
        %v6160 = vmul.f32 %v5977, 1.442695
        %v6161 = vpow.pop %v6160
        %v6162 = vmul.f32 %v5978, 1.442695
        %v6163 = vpow.pop %v6162
        %v6164 = vmul.f32 %v5979, 1.442695
        %v6165 = vpow.pop %v6164
        %v6166 = vmul.f32 %v5980, 1.442695
        %v6167 = vpow.pop %v6166
        %v6168 = vmul.f32 %v5981, 1.442695
        %v6169 = vpow.pop %v6168
        %v6170 = vmul.f32 %v5982, 1.442695
        %v6171 = vpow.pop %v6170
        %v6172 = vmul.f32 %v5983, 1.442695
        %v6173 = vpow.pop %v6172
        %v6174 = vmul.f32 %v5984, 1.442695
        %v6175 = vpow.pop %v6174
        %v6176 = vmul.f32 %v5985, 1.442695
        %v6177 = vpow.pop %v6176
        %v6178 = vmul.f32 %v5986, 1.442695
        %v6179 = vpow.pop %v6178
        %v6180 = vmul.f32 %v5987, 1.442695
        %v6181 = vpow.pop %v6180
        %v6182 = vmul.f32 %v5988, 1.442695
        %v6183 = vpow.pop %v6182
        %v6184 = vmul.f32 %v5989, 1.442695
        %v6185 = vpow.pop %v6184
        %v6186 = vmul.f32 %v5990, 1.442695
        %v6187 = vpow.pop %v6186
        %v6188 = vmul.f32 %v5991, 1.442695
        %v6189 = vpow.pop %v6188
        %v6190 = vmul.f32 %v5992, 1.442695
        %v6191 = vpow.pop %v6190
        %v6192 = vmul.f32 %v5993, 1.442695
        %v6193 = vpow.pop %v6192
        %v6194 = vmul.f32 %v5994, 1.442695
        %v6195 = vpow.pop %v6194
        %v6196 = vmul.f32 %v5995, 1.442695
        %v6197 = vpow.pop %v6196
        %v6198 = vmul.f32 %v5996, 1.442695
        %v6199 = vpow.pop %v6198
        %v6200 = vmul.f32 %v5997, 1.442695
        %v6201 = vpow.pop %v6200
        %v6202 = vmul.f32 %v5998, 1.442695
        %v6203 = vpow.pop %v6202
        %v6204 = vmul.f32 %v5999, 1.442695
        %v6205 = vpow.pop %v6204
        %v6206 = vmul.f32 %v6000, 1.442695
        %v6207 = vpow.pop %v6206
        %v6208 = vmul.f32 %v6001, 1.442695
        %v6209 = vpow.pop %v6208
        %v6210 = vmul.f32 %v6002, 1.442695
        %v6211 = vpow.pop %v6210
        %v6212 = vmul.f32 %v6003, 1.442695
        %v6213 = vpow.pop %v6212
        %v6214 = vmul.f32 %v6004, 1.442695
        %v6215 = vpow.pop %v6214
        %v6216 = vmul.f32 %v6005, 1.442695
        %v6217 = vpow.pop %v6216
        %v6218 = vmul.f32 %v6006, 1.442695
        %v6219 = vpow.pop %v6218
        %v6220 = vmul.f32 %v6007, 1.442695
        %v6221 = vpow.pop %v6220
        %v6222 = vmul.f32 %v6008, 1.442695
        %v6223 = vpow.pop %v6222
        %v6224 = vmul.f32 %v6009, 1.442695
        %v6225 = vpow.pop %v6224
        %v6226 = vmul.f32 %v6010, 1.442695
        %v6227 = vpow.pop %v6226
        %v6228 = vmul.f32 %v6011, 1.442695
        %v6229 = vpow.pop %v6228
        %v6230 = vmul.f32 %v6012, 1.442695
        %v6231 = vpow.pop %v6230
        %v6232 = vmul.f32 %v6013, 1.442695
        %v6233 = vpow.pop %v6232
        %v6234 = vmul.f32 %v6014, 1.442695
        %v6235 = vpow.pop %v6234
        %v6236 = vmul.f32 %v6015, 1.442695
        %v6237 = vpow.pop %v6236
        %v6238 = vmul.f32 %v6016, 1.442695
        %v6239 = vpow.pop %v6238
        %v6240 = vmul.f32 %v6017, 1.442695
        %v6241 = vpow.pop %v6240
        %v6242 = vadd.f32 %v6019, 1.0
        %v6243 = vadd.f32 %v6021, 1.0
        %v6244 = vadd.f32 %v6023, 1.0
        %v6245 = vadd.f32 %v6025, 1.0
        %v6246 = vadd.f32 %v6027, 1.0
        %v6247 = vadd.f32 %v6029, 1.0
        %v6248 = vadd.f32 %v6031, 1.0
        %v6249 = vadd.f32 %v6033, 1.0
        %v6250 = vadd.f32 %v6035, 1.0
        %v6251 = vadd.f32 %v6037, 1.0
        %v6252 = vadd.f32 %v6039, 1.0
        %v6253 = vadd.f32 %v6041, 1.0
        %v6254 = vadd.f32 %v6043, 1.0
        %v6255 = vadd.f32 %v6045, 1.0
        %v6256 = vadd.f32 %v6047, 1.0
        %v6257 = vadd.f32 %v6049, 1.0
        %v6258 = vadd.f32 %v6051, 1.0
        %v6259 = vadd.f32 %v6053, 1.0
        %v6260 = vadd.f32 %v6055, 1.0
        %v6261 = vadd.f32 %v6057, 1.0
        %v6262 = vadd.f32 %v6059, 1.0
        %v6263 = vadd.f32 %v6061, 1.0
        %v6264 = vadd.f32 %v6063, 1.0
        %v6265 = vadd.f32 %v6065, 1.0
        %v6266 = vadd.f32 %v6067, 1.0
        %v6267 = vadd.f32 %v6069, 1.0
        %v6268 = vadd.f32 %v6071, 1.0
        %v6269 = vadd.f32 %v6073, 1.0
        %v6270 = vadd.f32 %v6075, 1.0
        %v6271 = vadd.f32 %v6077, 1.0
        %v6272 = vadd.f32 %v6079, 1.0
        %v6273 = vadd.f32 %v6081, 1.0
        %v6274 = vadd.f32 %v6083, 1.0
        %v6275 = vadd.f32 %v6085, 1.0
        %v6276 = vadd.f32 %v6087, 1.0
        %v6277 = vadd.f32 %v6089, 1.0
        %v6278 = vadd.f32 %v6091, 1.0
        %v6279 = vadd.f32 %v6093, 1.0
        %v6280 = vadd.f32 %v6095, 1.0
        %v6281 = vadd.f32 %v6097, 1.0
        %v6282 = vadd.f32 %v6099, 1.0
        %v6283 = vadd.f32 %v6101, 1.0
        %v6284 = vadd.f32 %v6103, 1.0
        %v6285 = vadd.f32 %v6105, 1.0
        %v6286 = vadd.f32 %v6107, 1.0
        %v6287 = vadd.f32 %v6109, 1.0
        %v6288 = vadd.f32 %v6111, 1.0
        %v6289 = vadd.f32 %v6113, 1.0
        %v6290 = vadd.f32 %v6115, 1.0
        %v6291 = vadd.f32 %v6117, 1.0
        %v6292 = vadd.f32 %v6119, 1.0
        %v6293 = vadd.f32 %v6121, 1.0
        %v6294 = vadd.f32 %v6123, 1.0
        %v6295 = vadd.f32 %v6125, 1.0
        %v6296 = vadd.f32 %v6127, 1.0
        %v6297 = vadd.f32 %v6129, 1.0
        %v6298 = vadd.f32 %v6131, 1.0
        %v6299 = vadd.f32 %v6133, 1.0
        %v6300 = vadd.f32 %v6135, 1.0
        %v6301 = vadd.f32 %v6137, 1.0
        %v6302 = vadd.f32 %v6139, 1.0
        %v6303 = vadd.f32 %v6141, 1.0
        %v6304 = vadd.f32 %v6143, 1.0
        %v6305 = vadd.f32 %v6145, 1.0
        %v6306 = vadd.f32 %v6147, 1.0
        %v6307 = vadd.f32 %v6149, 1.0
        %v6308 = vadd.f32 %v6151, 1.0
        %v6309 = vadd.f32 %v6153, 1.0
        %v6310 = vadd.f32 %v6155, 1.0
        %v6311 = vadd.f32 %v6157, 1.0
        %v6312 = vadd.f32 %v6159, 1.0
        %v6313 = vadd.f32 %v6161, 1.0
        %v6314 = vadd.f32 %v6163, 1.0
        %v6315 = vadd.f32 %v6165, 1.0
        %v6316 = vadd.f32 %v6167, 1.0
        %v6317 = vadd.f32 %v6169, 1.0
        %v6318 = vadd.f32 %v6171, 1.0
        %v6319 = vadd.f32 %v6173, 1.0
        %v6320 = vadd.f32 %v6175, 1.0
        %v6321 = vadd.f32 %v6177, 1.0
        %v6322 = vadd.f32 %v6179, 1.0
        %v6323 = vadd.f32 %v6181, 1.0
        %v6324 = vadd.f32 %v6183, 1.0
        %v6325 = vadd.f32 %v6185, 1.0
        %v6326 = vadd.f32 %v6187, 1.0
        %v6327 = vadd.f32 %v6189, 1.0
        %v6328 = vadd.f32 %v6191, 1.0
        %v6329 = vadd.f32 %v6193, 1.0
        %v6330 = vadd.f32 %v6195, 1.0
        %v6331 = vadd.f32 %v6197, 1.0
        %v6332 = vadd.f32 %v6199, 1.0
        %v6333 = vadd.f32 %v6201, 1.0
        %v6334 = vadd.f32 %v6203, 1.0
        %v6335 = vadd.f32 %v6205, 1.0
        %v6336 = vadd.f32 %v6207, 1.0
        %v6337 = vadd.f32 %v6209, 1.0
        %v6338 = vadd.f32 %v6211, 1.0
        %v6339 = vadd.f32 %v6213, 1.0
        %v6340 = vadd.f32 %v6215, 1.0
        %v6341 = vadd.f32 %v6217, 1.0
        %v6342 = vadd.f32 %v6219, 1.0
        %v6343 = vadd.f32 %v6221, 1.0
        %v6344 = vadd.f32 %v6223, 1.0
        %v6345 = vadd.f32 %v6225, 1.0
        %v6346 = vadd.f32 %v6227, 1.0
        %v6347 = vadd.f32 %v6229, 1.0
        %v6348 = vadd.f32 %v6231, 1.0
        %v6349 = vadd.f32 %v6233, 1.0
        %v6350 = vadd.f32 %v6235, 1.0
        %v6351 = vadd.f32 %v6237, 1.0
        %v6352 = vadd.f32 %v6239, 1.0
        %v6353 = vadd.f32 %v6241, 1.0
        %v6354 = vrcp.pop %v6242
        %v6355 = vrcp.pop %v6243
        %v6356 = vrcp.pop %v6244
        %v6357 = vrcp.pop %v6245
        %v6358 = vrcp.pop %v6246
        %v6359 = vrcp.pop %v6247
        %v6360 = vrcp.pop %v6248
        %v6361 = vrcp.pop %v6249
        %v6362 = vrcp.pop %v6250
        %v6363 = vrcp.pop %v6251
        %v6364 = vrcp.pop %v6252
        %v6365 = vrcp.pop %v6253
        %v6366 = vrcp.pop %v6254
        %v6367 = vrcp.pop %v6255
        %v6368 = vrcp.pop %v6256
        %v6369 = vrcp.pop %v6257
        %v6370 = vrcp.pop %v6258
        %v6371 = vrcp.pop %v6259
        %v6372 = vrcp.pop %v6260
        %v6373 = vrcp.pop %v6261
        %v6374 = vrcp.pop %v6262
        %v6375 = vrcp.pop %v6263
        %v6376 = vrcp.pop %v6264
        %v6377 = vrcp.pop %v6265
        %v6378 = vrcp.pop %v6266
        %v6379 = vrcp.pop %v6267
        %v6380 = vrcp.pop %v6268
        %v6381 = vrcp.pop %v6269
        %v6382 = vrcp.pop %v6270
        %v6383 = vrcp.pop %v6271
        %v6384 = vrcp.pop %v6272
        %v6385 = vrcp.pop %v6273
        %v6386 = vrcp.pop %v6274
        %v6387 = vrcp.pop %v6275
        %v6388 = vrcp.pop %v6276
        %v6389 = vrcp.pop %v6277
        %v6390 = vrcp.pop %v6278
        %v6391 = vrcp.pop %v6279
        %v6392 = vrcp.pop %v6280
        %v6393 = vrcp.pop %v6281
        %v6394 = vrcp.pop %v6282
        %v6395 = vrcp.pop %v6283
        %v6396 = vrcp.pop %v6284
        %v6397 = vrcp.pop %v6285
        %v6398 = vrcp.pop %v6286
        %v6399 = vrcp.pop %v6287
        %v6400 = vrcp.pop %v6288
        %v6401 = vrcp.pop %v6289
        %v6402 = vrcp.pop %v6290
        %v6403 = vrcp.pop %v6291
        %v6404 = vrcp.pop %v6292
        %v6405 = vrcp.pop %v6293
        %v6406 = vrcp.pop %v6294
        %v6407 = vrcp.pop %v6295
        %v6408 = vrcp.pop %v6296
        %v6409 = vrcp.pop %v6297
        %v6410 = vrcp.pop %v6298
        %v6411 = vrcp.pop %v6299
        %v6412 = vrcp.pop %v6300
        %v6413 = vrcp.pop %v6301
        %v6414 = vrcp.pop %v6302
        %v6415 = vrcp.pop %v6303
        %v6416 = vrcp.pop %v6304
        %v6417 = vrcp.pop %v6305
        %v6418 = vrcp.pop %v6306
        %v6419 = vrcp.pop %v6307
        %v6420 = vrcp.pop %v6308
        %v6421 = vrcp.pop %v6309
        %v6422 = vrcp.pop %v6310
        %v6423 = vrcp.pop %v6311
        %v6424 = vrcp.pop %v6312
        %v6425 = vrcp.pop %v6313
        %v6426 = vrcp.pop %v6314
        %v6427 = vrcp.pop %v6315
        %v6428 = vrcp.pop %v6316
        %v6429 = vrcp.pop %v6317
        %v6430 = vrcp.pop %v6318
        %v6431 = vrcp.pop %v6319
        %v6432 = vrcp.pop %v6320
        %v6433 = vrcp.pop %v6321
        %v6434 = vrcp.pop %v6322
        %v6435 = vrcp.pop %v6323
        %v6436 = vrcp.pop %v6324
        %v6437 = vrcp.pop %v6325
        %v6438 = vrcp.pop %v6326
        %v6439 = vrcp.pop %v6327
        %v6440 = vrcp.pop %v6328
        %v6441 = vrcp.pop %v6329
        %v6442 = vrcp.pop %v6330
        %v6443 = vrcp.pop %v6331
        %v6444 = vrcp.pop %v6332
        %v6445 = vrcp.pop %v6333
        %v6446 = vrcp.pop %v6334
        %v6447 = vrcp.pop %v6335
        %v6448 = vrcp.pop %v6336
        %v6449 = vrcp.pop %v6337
        %v6450 = vrcp.pop %v6338
        %v6451 = vrcp.pop %v6339
        %v6452 = vrcp.pop %v6340
        %v6453 = vrcp.pop %v6341
        %v6454 = vrcp.pop %v6342
        %v6455 = vrcp.pop %v6343
        %v6456 = vrcp.pop %v6344
        %v6457 = vrcp.pop %v6345
        %v6458 = vrcp.pop %v6346
        %v6459 = vrcp.pop %v6347
        %v6460 = vrcp.pop %v6348
        %v6461 = vrcp.pop %v6349
        %v6462 = vrcp.pop %v6350
        %v6463 = vrcp.pop %v6351
        %v6464 = vrcp.pop %v6352
        %v6465 = vrcp.pop %v6353
        %v6466 = vpack.c.bf16 %v6361, %v6354
        %v6467 = vpack.c.bf16 %v6362, %v6355
        %v6468 = vpack.c.bf16 %v6363, %v6356
        %v6469 = vpack.c.bf16 %v6364, %v6357
        %v6470 = vpack.c.bf16 %v6365, %v6358
        %v6471 = vpack.c.bf16 %v6366, %v6359
        %v6472 = vpack.c.bf16 %v6367, %v6360
        %v6473 = vpack.c.bf16 %v6375, %v6368
        %v6474 = vpack.c.bf16 %v6376, %v6369
        %v6475 = vpack.c.bf16 %v6377, %v6370
        %v6476 = vpack.c.bf16 %v6378, %v6371
        %v6477 = vpack.c.bf16 %v6379, %v6372
        %v6478 = vpack.c.bf16 %v6380, %v6373
        %v6479 = vpack.c.bf16 %v6381, %v6374
        %v6480 = vpack.c.bf16 %v6389, %v6382
        %v6481 = vpack.c.bf16 %v6390, %v6383
        %v6482 = vpack.c.bf16 %v6391, %v6384
        %v6483 = vpack.c.bf16 %v6392, %v6385
        %v6484 = vpack.c.bf16 %v6393, %v6386
        %v6485 = vpack.c.bf16 %v6394, %v6387
        %v6486 = vpack.c.bf16 %v6395, %v6388
        %v6487 = vpack.c.bf16 %v6403, %v6396
        %v6488 = vpack.c.bf16 %v6404, %v6397
        %v6489 = vpack.c.bf16 %v6405, %v6398
        %v6490 = vpack.c.bf16 %v6406, %v6399
        %v6491 = vpack.c.bf16 %v6407, %v6400
        %v6492 = vpack.c.bf16 %v6408, %v6401
        %v6493 = vpack.c.bf16 %v6409, %v6402
        %v6494 = vpack.c.bf16 %v6417, %v6410
        %v6495 = vpack.c.bf16 %v6418, %v6411
        %v6496 = vpack.c.bf16 %v6419, %v6412
        %v6497 = vpack.c.bf16 %v6420, %v6413
        %v6498 = vpack.c.bf16 %v6421, %v6414
        %v6499 = vpack.c.bf16 %v6422, %v6415
        %v6500 = vpack.c.bf16 %v6423, %v6416
        %v6501 = vpack.c.bf16 %v6431, %v6424
        %v6502 = vpack.c.bf16 %v6432, %v6425
        %v6503 = vpack.c.bf16 %v6433, %v6426
        %v6504 = vpack.c.bf16 %v6434, %v6427
        %v6505 = vpack.c.bf16 %v6435, %v6428
        %v6506 = vpack.c.bf16 %v6436, %v6429
        %v6507 = vpack.c.bf16 %v6437, %v6430
        %v6508 = vpack.c.bf16 %v6445, %v6438
        %v6509 = vpack.c.bf16 %v6446, %v6439
        %v6510 = vpack.c.bf16 %v6447, %v6440
        %v6511 = vpack.c.bf16 %v6448, %v6441
        %v6512 = vpack.c.bf16 %v6449, %v6442
        %v6513 = vpack.c.bf16 %v6450, %v6443
        %v6514 = vpack.c.bf16 %v6451, %v6444
        %v6515 = vpack.c.bf16 %v6459, %v6452
        %v6516 = vpack.c.bf16 %v6460, %v6453
        %v6517 = vpack.c.bf16 %v6461, %v6454
        %v6518 = vpack.c.bf16 %v6462, %v6455
        %v6519 = vpack.c.bf16 %v6463, %v6456
        %v6520 = vpack.c.bf16 %v6464, %v6457
        %v6521 = vpack.c.bf16 %v6465, %v6458
        %v6578 = vunpack.c.l.b16 %v6466
        %v6579 = vunpack.c.l.b16 %v6467
        %v6580 = vunpack.c.l.b16 %v6468
        %v6581 = vunpack.c.l.b16 %v6469
        %v6582 = vunpack.c.l.b16 %v6470
        %v6583 = vunpack.c.l.b16 %v6471
        %v6584 = vunpack.c.l.b16 %v6472
        %v6585 = vunpack.c.h.b16 %v6466
        %v6586 = vunpack.c.h.b16 %v6467
        %v6587 = vunpack.c.h.b16 %v6468
        %v6588 = vunpack.c.h.b16 %v6469
        %v6589 = vunpack.c.h.b16 %v6470
        %v6590 = vunpack.c.h.b16 %v6471
        %v6591 = vunpack.c.h.b16 %v6472
        %v6592 = vunpack.c.l.b16 %v6473
        %v6593 = vunpack.c.l.b16 %v6474
        %v6594 = vunpack.c.l.b16 %v6475
        %v6595 = vunpack.c.l.b16 %v6476
        %v6596 = vunpack.c.l.b16 %v6477
        %v6597 = vunpack.c.l.b16 %v6478
        %v6598 = vunpack.c.l.b16 %v6479
        %v6599 = vunpack.c.h.b16 %v6473
        %v6600 = vunpack.c.h.b16 %v6474
        %v6601 = vunpack.c.h.b16 %v6475
        %v6602 = vunpack.c.h.b16 %v6476
        %v6603 = vunpack.c.h.b16 %v6477
        %v6604 = vunpack.c.h.b16 %v6478
        %v6605 = vunpack.c.h.b16 %v6479
        %v6606 = vunpack.c.l.b16 %v6480
        %v6607 = vunpack.c.l.b16 %v6481
        %v6608 = vunpack.c.l.b16 %v6482
        %v6609 = vunpack.c.l.b16 %v6483
        %v6610 = vunpack.c.l.b16 %v6484
        %v6611 = vunpack.c.l.b16 %v6485
        %v6612 = vunpack.c.l.b16 %v6486
        %v6613 = vunpack.c.h.b16 %v6480
        %v6614 = vunpack.c.h.b16 %v6481
        %v6615 = vunpack.c.h.b16 %v6482
        %v6616 = vunpack.c.h.b16 %v6483
        %v6617 = vunpack.c.h.b16 %v6484
        %v6618 = vunpack.c.h.b16 %v6485
        %v6619 = vunpack.c.h.b16 %v6486
        %v6620 = vunpack.c.l.b16 %v6487
        %v6621 = vunpack.c.l.b16 %v6488
        %v6622 = vunpack.c.l.b16 %v6489
        %v6623 = vunpack.c.l.b16 %v6490
        %v6624 = vunpack.c.l.b16 %v6491
        %v6625 = vunpack.c.l.b16 %v6492
        %v6626 = vunpack.c.l.b16 %v6493
        %v6627 = vunpack.c.h.b16 %v6487
        %v6628 = vunpack.c.h.b16 %v6488
        %v6629 = vunpack.c.h.b16 %v6489
        %v6630 = vunpack.c.h.b16 %v6490
        %v6631 = vunpack.c.h.b16 %v6491
        %v6632 = vunpack.c.h.b16 %v6492
        %v6633 = vunpack.c.h.b16 %v6493
        %v6634 = vunpack.c.l.b16 %v6494
        %v6635 = vunpack.c.l.b16 %v6495
        %v6636 = vunpack.c.l.b16 %v6496
        %v6637 = vunpack.c.l.b16 %v6497
        %v6638 = vunpack.c.l.b16 %v6498
        %v6639 = vunpack.c.l.b16 %v6499
        %v6640 = vunpack.c.l.b16 %v6500
        %v6641 = vunpack.c.h.b16 %v6494
        %v6642 = vunpack.c.h.b16 %v6495
        %v6643 = vunpack.c.h.b16 %v6496
        %v6644 = vunpack.c.h.b16 %v6497
        %v6645 = vunpack.c.h.b16 %v6498
        %v6646 = vunpack.c.h.b16 %v6499
        %v6647 = vunpack.c.h.b16 %v6500
        %v6648 = vunpack.c.l.b16 %v6501
        %v6649 = vunpack.c.l.b16 %v6502
        %v6650 = vunpack.c.l.b16 %v6503
        %v6651 = vunpack.c.l.b16 %v6504
        %v6652 = vunpack.c.l.b16 %v6505
        %v6653 = vunpack.c.l.b16 %v6506
        %v6654 = vunpack.c.l.b16 %v6507
        %v6655 = vunpack.c.h.b16 %v6501
        %v6656 = vunpack.c.h.b16 %v6502
        %v6657 = vunpack.c.h.b16 %v6503
        %v6658 = vunpack.c.h.b16 %v6504
        %v6659 = vunpack.c.h.b16 %v6505
        %v6660 = vunpack.c.h.b16 %v6506
        %v6661 = vunpack.c.h.b16 %v6507
        %v6662 = vunpack.c.l.b16 %v6508
        %v6663 = vunpack.c.l.b16 %v6509
        %v6664 = vunpack.c.l.b16 %v6510
        %v6665 = vunpack.c.l.b16 %v6511
        %v6666 = vunpack.c.l.b16 %v6512
        %v6667 = vunpack.c.l.b16 %v6513
        %v6668 = vunpack.c.l.b16 %v6514
        %v6669 = vunpack.c.h.b16 %v6508
        %v6670 = vunpack.c.h.b16 %v6509
        %v6671 = vunpack.c.h.b16 %v6510
        %v6672 = vunpack.c.h.b16 %v6511
        %v6673 = vunpack.c.h.b16 %v6512
        %v6674 = vunpack.c.h.b16 %v6513
        %v6675 = vunpack.c.h.b16 %v6514
        %v6676 = vunpack.c.l.b16 %v6515
        %v6677 = vunpack.c.l.b16 %v6516
        %v6678 = vunpack.c.l.b16 %v6517
        %v6679 = vunpack.c.l.b16 %v6518
        %v6680 = vunpack.c.l.b16 %v6519
        %v6681 = vunpack.c.l.b16 %v6520
        %v6682 = vunpack.c.l.b16 %v6521
        %v6683 = vunpack.c.h.b16 %v6515
        %v6684 = vunpack.c.h.b16 %v6516
        %v6685 = vunpack.c.h.b16 %v6517
        %v6686 = vunpack.c.h.b16 %v6518
        %v6687 = vunpack.c.h.b16 %v6519
        %v6688 = vunpack.c.h.b16 %v6520
        %v6689 = vunpack.c.h.b16 %v6521
        %v6690 = vpack.c.b16 %v6579, %v6578
        %v6691 = vpack.c.b16 %v6581, %v6580
        %v6692 = vpack.c.b16 %v6583, %v6582
        %v6693 = vpack.c.b16 %v6584, %v6584
        %v6694 = vpack.c.b16 %v6586, %v6585
        %v6695 = vpack.c.b16 %v6588, %v6587
        %v6696 = vpack.c.b16 %v6590, %v6589
        %v6697 = vpack.c.b16 %v6591, %v6591
        %v6698 = vpack.c.b16 %v6593, %v6592
        %v6699 = vpack.c.b16 %v6595, %v6594
        %v6700 = vpack.c.b16 %v6597, %v6596
        %v6701 = vpack.c.b16 %v6598, %v6598
        %v6702 = vpack.c.b16 %v6600, %v6599
        %v6703 = vpack.c.b16 %v6602, %v6601
        %v6704 = vpack.c.b16 %v6604, %v6603
        %v6705 = vpack.c.b16 %v6605, %v6605
        %v6706 = vpack.c.b16 %v6607, %v6606
        %v6707 = vpack.c.b16 %v6609, %v6608
        %v6708 = vpack.c.b16 %v6611, %v6610
        %v6709 = vpack.c.b16 %v6612, %v6612
        %v6710 = vpack.c.b16 %v6614, %v6613
        %v6711 = vpack.c.b16 %v6616, %v6615
        %v6712 = vpack.c.b16 %v6618, %v6617
        %v6713 = vpack.c.b16 %v6619, %v6619
        %v6714 = vpack.c.b16 %v6621, %v6620
        %v6715 = vpack.c.b16 %v6623, %v6622
        %v6716 = vpack.c.b16 %v6625, %v6624
        %v6717 = vpack.c.b16 %v6626, %v6626
        %v6718 = vpack.c.b16 %v6628, %v6627
        %v6719 = vpack.c.b16 %v6630, %v6629
        %v6720 = vpack.c.b16 %v6632, %v6631
        %v6721 = vpack.c.b16 %v6633, %v6633
        %v6722 = vpack.c.b16 %v6635, %v6634
        %v6723 = vpack.c.b16 %v6637, %v6636
        %v6724 = vpack.c.b16 %v6639, %v6638
        %v6725 = vpack.c.b16 %v6640, %v6640
        %v6726 = vpack.c.b16 %v6642, %v6641
        %v6727 = vpack.c.b16 %v6644, %v6643
        %v6728 = vpack.c.b16 %v6646, %v6645
        %v6729 = vpack.c.b16 %v6647, %v6647
        %v6730 = vpack.c.b16 %v6649, %v6648
        %v6731 = vpack.c.b16 %v6651, %v6650
        %v6732 = vpack.c.b16 %v6653, %v6652
        %v6733 = vpack.c.b16 %v6654, %v6654
        %v6734 = vpack.c.b16 %v6656, %v6655
        %v6735 = vpack.c.b16 %v6658, %v6657
        %v6736 = vpack.c.b16 %v6660, %v6659
        %v6737 = vpack.c.b16 %v6661, %v6661
        %v6738 = vpack.c.b16 %v6663, %v6662
        %v6739 = vpack.c.b16 %v6665, %v6664
        %v6740 = vpack.c.b16 %v6667, %v6666
        %v6741 = vpack.c.b16 %v6668, %v6668
        %v6742 = vpack.c.b16 %v6670, %v6669
        %v6743 = vpack.c.b16 %v6672, %v6671
        %v6744 = vpack.c.b16 %v6674, %v6673
        %v6745 = vpack.c.b16 %v6675, %v6675
        %v6746 = vpack.c.b16 %v6677, %v6676
        %v6747 = vpack.c.b16 %v6679, %v6678
        %v6748 = vpack.c.b16 %v6681, %v6680
        %v6749 = vpack.c.b16 %v6682, %v6682
        %v6750 = vpack.c.b16 %v6684, %v6683
        %v6751 = vpack.c.b16 %v6686, %v6685
        %v6752 = vpack.c.b16 %v6688, %v6687
        %v6753 = vpack.c.b16 %v6689, %v6689
        %6818 = vst [vmem:[%s446] sm:$0xff] %v6690
        %6819 = vst [vmem:[%s446 + $0x8] sm:$0xff] %v6691
        %6820 = vst [vmem:[%s446 + $0x10] sm:$0xff] %v6692
        %6821 = vst [vmem:[%s446 + $0x18] sm:$0xf] %v6693
        %6822 = vst [vmem:[%s446 + $0x1c] sm:$0xff] %v6694
        %6823 = vst [vmem:[%s446 + $0x24] sm:$0xff] %v6695
        %6824 = vst [vmem:[%s446 + $0x2c] sm:$0xff] %v6696
        %6825 = vst [vmem:[%s446 + $0x34] sm:$0xf] %v6697
        %6826 = vst [vmem:[%s446 + $0x38] sm:$0xff] %v6698
        %6827 = vst [vmem:[%s446 + $0x40] sm:$0xff] %v6699
        %6828 = vst [vmem:[%s446 + $0x48] sm:$0xff] %v6700
        %6829 = vst [vmem:[%s446 + $0x50] sm:$0xf] %v6701
        %6830 = vst [vmem:[%s446 + $0x54] sm:$0xff] %v6702
        %6831 = vst [vmem:[%s446 + $0x5c] sm:$0xff] %v6703
        %6832 = vst [vmem:[%s446 + $0x64] sm:$0xff] %v6704
        %6833 = vst [vmem:[%s446 + $0x6c] sm:$0xf] %v6705
        %6834 = vst [vmem:[%s446 + $0x70] sm:$0xff] %v6706
        %6835 = vst [vmem:[%s446 + $0x78] sm:$0xff] %v6707
        %6836 = vst [vmem:[%s446 + $0x80] sm:$0xff] %v6708
        %6837 = vst [vmem:[%s446 + $0x88] sm:$0xf] %v6709
        %6838 = vst [vmem:[%s446 + $0x8c] sm:$0xff] %v6710
        %6839 = vst [vmem:[%s446 + $0x94] sm:$0xff] %v6711
        %6840 = vst [vmem:[%s446 + $0x9c] sm:$0xff] %v6712
        %6841 = vst [vmem:[%s446 + $0xa4] sm:$0xf] %v6713
        %6842 = vst [vmem:[%s446 + $0xa8] sm:$0xff] %v6714
        %6843 = vst [vmem:[%s446 + $0xb0] sm:$0xff] %v6715
        %6844 = vst [vmem:[%s446 + $0xb8] sm:$0xff] %v6716
        %6845 = vst [vmem:[%s446 + $0xc0] sm:$0xf] %v6717
        %6846 = vst [vmem:[%s446 + $0xc4] sm:$0xff] %v6718
        %6847 = vst [vmem:[%s446 + $0xcc] sm:$0xff] %v6719
        %6848 = vst [vmem:[%s446 + $0xd4] sm:$0xff] %v6720
        %6849 = vst [vmem:[%s446 + $0xdc] sm:$0xf] %v6721
        %6850 = vst [vmem:[%s446 + $0xe0] sm:$0xff] %v6722
        %6851 = vst [vmem:[%s446 + $0xe8] sm:$0xff] %v6723
        %6852 = vst [vmem:[%s446 + $0xf0] sm:$0xff] %v6724
        %6853 = vst [vmem:[%s446 + $0xf8] sm:$0xf] %v6725
        %6854 = vst [vmem:[%s446 + $0xfc] sm:$0xff] %v6726
        %6855 = vst [vmem:[%s446 + $0x104] sm:$0xff] %v6727
        %6856 = vst [vmem:[%s446 + $0x10c] sm:$0xff] %v6728
        %6857 = vst [vmem:[%s446 + $0x114] sm:$0xf] %v6729
        %6858 = vst [vmem:[%s446 + $0x118] sm:$0xff] %v6730
        %6859 = vst [vmem:[%s446 + $0x120] sm:$0xff] %v6731
        %6860 = vst [vmem:[%s446 + $0x128] sm:$0xff] %v6732
        %6861 = vst [vmem:[%s446 + $0x130] sm:$0xf] %v6733
        %6862 = vst [vmem:[%s446 + $0x134] sm:$0xff] %v6734
        %6863 = vst [vmem:[%s446 + $0x13c] sm:$0xff] %v6735
        %6864 = vst [vmem:[%s446 + $0x144] sm:$0xff] %v6736
        %6865 = vst [vmem:[%s446 + $0x14c] sm:$0xf] %v6737
        %6866 = vst [vmem:[%s446 + $0x150] sm:$0xff] %v6738
        %6867 = vst [vmem:[%s446 + $0x158] sm:$0xff] %v6739
        %6868 = vst [vmem:[%s446 + $0x160] sm:$0xff] %v6740
        %6869 = vst [vmem:[%s446 + $0x168] sm:$0xf] %v6741
        %6870 = vst [vmem:[%s446 + $0x16c] sm:$0xff] %v6742
        %6871 = vst [vmem:[%s446 + $0x174] sm:$0xff] %v6743
        %6872 = vst [vmem:[%s446 + $0x17c] sm:$0xff] %v6744
        %6873 = vst [vmem:[%s446 + $0x184] sm:$0xf] %v6745
        %6874 = vst [vmem:[%s446 + $0x188] sm:$0xff] %v6746
        %6875 = vst [vmem:[%s446 + $0x190] sm:$0xff] %v6747
        %6876 = vst [vmem:[%s446 + $0x198] sm:$0xff] %v6748
        %6877 = vst [vmem:[%s446 + $0x1a0] sm:$0xf] %v6749
        %6878 = vst [vmem:[%s446 + $0x1a4] sm:$0xff] %v6750
        %6879 = vst [vmem:[%s446 + $0x1ac] sm:$0xff] %v6751
        %6880 = vst [vmem:[%s446 + $0x1b4] sm:$0xff] %v6752
        %6881 = vst [vmem:[%s446 + $0x1bc] sm:$0xf] %v6753
        %s6882 = sand.u32 %s235, 1
        %s6883 = scalar_lea.sflag [#allocation4], %s6882
        %s6884 = sand.u32 %s235, 1
        %s6885 = smul.addr %s6884, 256
        %s6886 = scalar_lea.vmem [#allocation11], %s6885
        %s6887 = sand.u32 %s261, 1
        %s6888 = scalar_lea.sflag [#allocation13], %s6887
        %s6889 = sand.u32 %s261, 1
        %s6890 = smul.addr %s6889, 448
        %s6891 = scalar_lea.vmem [#allocation12], %s6890
        // Predicated region
        $region77: #{tpu_custom_call.1} parent=55 // pred_check
          %p6892 = pneg %p245
        $region78: #{tpu_custom_call.1} parent=55 // pred_check_branch
          %6894 = sbr.rel (%p6892) target = $region80
        $region79: #{tpu_custom_call.1} parent=55 // pred_region
          %s6895 = smul.u32 16, %s33
          %s6897 = ssub.s32 4096, 4096
          %6898 = vsyncadd %s6883, %s6897
          %s6899 = smul.addr %s6895, 4
          %s6900 = smul.addr %s6899, 64
          %s6901 = scalar_lea.hbm %s9, %s6900
          %s6902 = sshll.u32 %s6886, 4
          %s6903 = int_to_ptr.vmem [resolvable:$true] %s6902
          %6908 = dma.vmem_to_hbm [thread:$0]  %s6903, 4096, %s6901, %s6883, 256, 256, 16
        $region80: #{tpu_custom_call.1} parent=55 // pred_fallthru
          _
        // Predicated region
        $region81: #{tpu_custom_call.1} parent=55 // pred_check
          %p6909 = pneg %p271
        $region82: #{tpu_custom_call.1} parent=55 // pred_check_branch
          %6911 = sbr.rel (%p6909) target = $region84
        $region83: #{tpu_custom_call.1} parent=55 // pred_region
          %s6912 = smul.u32 16, %s33
          %s6914 = ssub.s32 7168, 7168
          %6915 = vsyncadd %s6888, %s6914
          %s6916 = smul.addr %s6912, 7
          %s6917 = smul.addr %s6916, 64
          %s6918 = scalar_lea.hbm %s10, %s6917
          %s6919 = sshll.u32 %s6891, 4
          %s6920 = int_to_ptr.vmem [resolvable:$true] %s6919
          %6925 = dma.vmem_to_hbm [thread:$0]  %s6920, 7168, %s6918, %s6888, 448, 448, 28
        $region84: #{tpu_custom_call.1} parent=55 // pred_fallthru
          _
      $region56: #{tpu_custom_call.1} parent=5 // pred_fallthru
        _
      %p6926 = scmp.le.s32.totalorder 2, %s28
      // Predicated region
      $region85: #{tpu_custom_call.1} parent=5 // pred_check
        %p6927 = pneg %p6926
      $region86: #{tpu_custom_call.1} parent=5 // pred_check_branch
        %6929 = sbr.rel (%p6927) target = $region88
      $region87: #{tpu_custom_call.1} parent=5 // pred_region
        %s6930 = ssub.s32 %s28, 2
        // Predicated region
        $region89: #{tpu_custom_call.1} parent=87 // pred_check
          %p6931 = pneg %p251
        $region90: #{tpu_custom_call.1} parent=87 // pred_check_branch
          %6933 = sbr.rel (%p6931) target = $region92
        $region91: #{tpu_custom_call.1} parent=87 // pred_region
          %s6934 = sand.u32 %s236, 1
          %s6935 = scalar_lea.sflag [#allocation4], %s6934
          %s6936 = sand.u32 %s236, 1
          %s6937 = smul.addr %s6936, 256
          %s6938 = scalar_lea.vmem [#allocation11], %s6937
          %6939 = dma.done %s6935, 4096
        $region92: #{tpu_custom_call.1} parent=87 // pred_fallthru
          _
        // Predicated region
        $region93: #{tpu_custom_call.1} parent=87 // pred_check
          %p6940 = pneg %p277
        $region94: #{tpu_custom_call.1} parent=87 // pred_check_branch
          %6942 = sbr.rel (%p6940) target = $region96
        $region95: #{tpu_custom_call.1} parent=87 // pred_region
          %s6943 = sand.u32 %s262, 1
          %s6944 = scalar_lea.sflag [#allocation13], %s6943
          %s6945 = sand.u32 %s262, 1
          %s6946 = smul.addr %s6945, 448
          %s6947 = scalar_lea.vmem [#allocation12], %s6946
          %6948 = dma.done %s6944, 7168
        $region96: #{tpu_custom_call.1} parent=87 // pred_fallthru
          _
      $region88: #{tpu_custom_call.1} parent=5 // pred_fallthru
        _
    $region6: #{tpu_custom_call.1} parent=1 // loop_footer
      %s32 = sadd.s32 1, %s28
    $region7: #{tpu_custom_call.1} parent=1 // loop_footer_branch
      %27 = sbr.rel target = $region3
    $region8: #{tpu_custom_call.1} parent=1 // loop_exit
      _
    %6949 = vsyncpa [#allocation3], 1
    %s6950 = scalar_lea.sflag [#allocation3], 1
    %6951 = vsyncpa %s6950, 1
    %6952 = vsyncpa [#allocation6], 1
    %6953 = vsyncpa [#allocation9], 1
    %6954 = vsyncpa [#allocation4], 1
    %s6955 = scalar_lea.sflag [#allocation4], 1
    %6956 = vsyncpa %s6955, 1
    %6957 = vsyncpa [#allocation13], 1
    %s6958 = scalar_lea.sflag [#allocation13], 1
    %6959 = vsyncpa %s6958, 1

</llo_original>
